<compile_context>
chip_gen: v6e
topology: v6e:2x2x1
jax: 0.10.0
libtpu: 0.0.40
codegen_flags: <defaults>
</compile_context>

<pallas_src>
import math
import functools

import jax
import jax.numpy as jnp
from jax import lax
from jax.experimental import pallas as pl
from jax.experimental.pallas import tpu as pltpu


def _layernorm(x, gamma, beta, eps=1e-5):
    mu = jnp.mean(x, axis=-1, keepdims=True)
    var = jnp.mean((x - mu) ** 2, axis=-1, keepdims=True)
    return (x - mu) * lax.rsqrt(var + eps) * gamma + beta


def block_kernel(xq_ref, xf_ref,
                 ln1_g_ref, ln1_b_ref,
                 wq_ref, bq_ref, wkv_ref, bkv_ref,
                 wproj_ref, bproj_ref,
                 ln2_g_ref, ln2_b_ref,
                 wfc_ref, bfc_ref, wfp_ref, bfp_ref,
                 o_ref, *, n_head):
    f32 = jnp.float32
    bf16 = jnp.bfloat16

    x_q = xq_ref[0]                    # (tq, C) residual stream for this query tile
    x_f = xf_ref[0]                    # (T,  C) full sequence (source of K/V)
    tq, C = x_q.shape
    T = x_f.shape[0]
    hd = C // n_head
    scale = 1.0 / math.sqrt(hd)

    ln1_g = ln1_g_ref[...]
    ln1_b = ln1_b_ref[...]

    # ---------------- attention branch ----------------
    # K/V from the whole (causally visible) sequence.
    xn_f = _layernorm(x_f, ln1_g, ln1_b)
    kv = jnp.dot(xn_f.astype(bf16), wkv_ref[...],
                 preferred_element_type=f32) + bkv_ref[...]
    kv = jnp.maximum(kv, 0.0)                          # F.relu(k), F.relu(v)
    k = kv[:, :C].astype(bf16)
    v = kv[:, C:].astype(bf16)

    # Q only for this query tile; fold 1/sqrt(hd) into q once.
    xn_q = _layernorm(x_q, ln1_g, ln1_b)
    q = jnp.dot(xn_q.astype(bf16), wq_ref[...],
                preferred_element_type=f32) + bq_ref[...]
    q = (jnp.maximum(q, 0.0) * scale).astype(bf16)     # F.relu(q) * scale

    # Head-batched attention: (n_head, tq, hd) vs (n_head, T, hd); leading batch
    # dim, contraction over the last dim of both operands (no transpose).
    q3 = jnp.stack([q[:, h * hd:(h + 1) * hd] for h in range(n_head)], axis=0)
    k3 = jnp.stack([k[:, h * hd:(h + 1) * hd] for h in range(n_head)], axis=0)
    v3 = jnp.stack([v[:, h * hd:(h + 1) * hd] for h in range(n_head)], axis=0)

    att = jnp.einsum('hqd,hkd->hqk', q3, k3,
                     preferred_element_type=f32)       # (n_head, tq, T)

    # Causal mask: relu(att) * mask  ==  relu(masked_fill(att, -inf)).
    q0 = pl.program_id(1) * tq
    row = q0 + lax.broadcasted_iota(jnp.int32, (tq, T), 0)
    col = lax.broadcasted_iota(jnp.int32, (tq, T), 1)
    mask = (col <= row).astype(f32)
    att = jnp.maximum(att, 0.0) * mask[None, :, :]
    # attn_dropout: identity (eval)

    y3 = jnp.einsum('hqk,hkd->hqd', att.astype(bf16), v3,
                    preferred_element_type=f32)        # (n_head, tq, hd)
    y = jnp.concatenate([y3[h] for h in range(n_head)], axis=-1)   # (tq, C)

    attn_out = jnp.dot(y.astype(bf16), wproj_ref[...],
                       preferred_element_type=f32) + bproj_ref[...]
    # resid_dropout: identity (eval)
    x1 = x_q + attn_out

    # ---------------- MLP branch ----------------
    xn2 = _layernorm(x1, ln2_g_ref[...], ln2_b_ref[...])
    h1 = jnp.dot(xn2.astype(bf16), wfc_ref[...],
                 preferred_element_type=f32) + bfc_ref[...]
    h1 = jnp.maximum(h1, 0.0)                          # ReLU
    mlp_out = jnp.dot(h1.astype(bf16), wfp_ref[...],
                      preferred_element_type=f32) + bfp_ref[...]
    # mlp dropout: identity (eval)
    x2 = x1 + mlp_out

    o_ref[0] = x2.astype(o_ref.dtype)


def block_forward(x, params, n_head, t_tile=128, single_buffer_weights=True):
    B, T, C = x.shape
    assert C % n_head == 0
    bf16 = jnp.bfloat16

    # Query-tile size: an 8-aligned divisor of T, else the whole sequence.
    if t_tile < T and T % t_tile == 0 and t_tile % 8 == 0:
        tq = t_tile
    else:
        tq = T
    n_qt = T // tq

    # Weights pre-split (q vs kv) and pre-cast to bf16 once in the wrapper:
    # bf16 MXU operands and half the resident weight VMEM.  Biases / LayerNorm
    # params stay f32.
    w_q = params["w_attn"][:, :C].astype(bf16)
    w_kv = params["w_attn"][:, C:].astype(bf16)
    b_q = params["b_attn"][:, :C]
    b_kv = params["b_attn"][:, C:]
    param_list = [
        params["ln1_g"], params["ln1_b"],
        w_q, b_q, w_kv, b_kv,
        params["w_proj"].astype(bf16), params["b_proj"],
        params["ln2_g"], params["ln2_b"],
        params["w_fc"].astype(bf16), params["b_fc"],
        params["w_fcproj"].astype(bf16), params["b_fcproj"],
    ]

    def const_spec(arr):
        idx = lambda b, qi: (0, 0)            # constant across the whole grid
        if single_buffer_weights and hasattr(pl, "Buffered"):
            try:
                # Constant operands never change -> no need to double-buffer.
                return pl.BlockSpec(arr.shape, idx, pipeline_mode=pl.Buffered(1))
            except TypeError:
                pass
        return pl.BlockSpec(arr.shape, idx)

    kernel = functools.partial(block_kernel, n_head=n_head)

    return pl.pallas_call(
        kernel,
        out_shape=jax.ShapeDtypeStruct((B, T, C), x.dtype),
        grid=(B, n_qt),
        in_specs=[
            pl.BlockSpec((1, tq, C), lambda b, qi: (b, qi, 0)),   # query tile of x
            pl.BlockSpec((1, T, C), lambda b, qi: (b, 0, 0)),     # full sequence (K/V)
        ] + [const_spec(p) for p in param_list],
        out_specs=pl.BlockSpec((1, tq, C), lambda b, qi: (b, qi, 0)),
        compiler_params=pltpu.CompilerParams(
            dimension_semantics=("parallel", "parallel"),
            vmem_limit_bytes=64 * 1024 * 1024,
        ),
    )(x, x, *param_list)


# ---------------- pure-JAX reference (for correctness check only) ----------------
def block_reference(x, p, n_head, mm_dtype=jnp.float32):
    B, T, C = x.shape
    hd = C // n_head
    f32 = jnp.float32

    def ln(z, g, b):
        mu = jnp.mean(z, axis=-1, keepdims=True)
        var = jnp.mean((z - mu) ** 2, axis=-1, keepdims=True)
        return (z - mu) / jnp.sqrt(var + 1e-5) * g + b

    def mm(a, w):
        return jnp.dot(a.astype(mm_dtype), w.astype(mm_dtype),
                       preferred_element_type=f32)

    xn = ln(x, p["ln1_g"], p["ln1_b"])
    qkv = mm(xn, p["w_attn"]) + p["b_attn"]
    q, k, v = jnp.split(qkv, 3, axis=-1)
    q, k, v = jax.nn.relu(q), jax.nn.relu(k), jax.nn.relu(v)
    q = q.reshape(B, T, n_head, hd).transpose(0, 2, 1, 3) * (1.0 / math.sqrt(hd))
    k = k.reshape(B, T, n_head, hd).transpose(0, 2, 1, 3)
    v = v.reshape(B, T, n_head, hd).transpose(0, 2, 1, 3)
    att = jnp.einsum('bhqd,bhkd->bhqk', q.astype(mm_dtype), k.astype(mm_dtype),
                     preferred_element_type=f32)
    mask = jnp.tril(jnp.ones((T, T), bool)).astype(f32)
    att = jax.nn.relu(att) * mask
    y = jnp.einsum('bhqk,bhkd->bhqd', att.astype(mm_dtype), v.astype(mm_dtype),
                   preferred_element_type=f32)
    y = y.transpose(0, 2, 1, 3).reshape(B, T, C)
    x = x + mm(y, p["w_proj"]) + p["b_proj"]
    xn2 = ln(x, p["ln2_g"], p["ln2_b"])
    h = jax.nn.relu(mm(xn2, p["w_fc"]) + p["b_fc"])
    return x + mm(h, p["w_fcproj"]) + p["b_fcproj"]


def init_params(key, n_embd):
    ks = jax.random.split(key, 4)
    f32 = jnp.float32
    # 1-D params stored as (1, N) so all kernel operands are >= 2-D.
    return {
        "ln1_g": jnp.ones((1, n_embd), f32),
        "ln1_b": jnp.zeros((1, n_embd), f32),
        "w_attn": 0.02 * jax.random.normal(ks[0], (n_embd, 3 * n_embd), f32),
        "b_attn": jnp.zeros((1, 3 * n_embd), f32),
        "w_proj": 0.02 * jax.random.normal(ks[1], (n_embd, n_embd), f32),
        "b_proj": jnp.zeros((1, n_embd), f32),
        "ln2_g": jnp.ones((1, n_embd), f32),
        "ln2_b": jnp.zeros((1, n_embd), f32),
        "w_fc": 0.02 * jax.random.normal(ks[2], (n_embd, 2 * n_embd), f32),
        "b_fc": jnp.zeros((1, 2 * n_embd), f32),
        "w_fcproj": 0.02 * jax.random.normal(ks[3], (2 * n_embd, n_embd), f32),
        "b_fcproj": jnp.zeros((1, n_embd), f32),
    }


if __name__ == "__main__":
    B, T, C, n_head = 2, 16, 32, 4
    key = jax.random.PRNGKey(0)
    kx, kp = jax.random.split(key)
    x = jax.random.normal(kx, (B, T, C), jnp.float32)
    params = init_params(kp, C)

    def run(single_buffer):
        fn = jax.jit(functools.partial(block_forward, n_head=n_head, t_tile=8,
                                       single_buffer_weights=single_buffer))
        return jax.block_until_ready(fn(x, params))

    try:
        out = run(True)
    except Exception:
        # Some Pallas versions reject single-buffered (Buffered(1)) operands;
        # fall back to default double-buffering of the constant weights.
        out = run(False)

    ref_bf16 = block_reference(x, params, n_head, mm_dtype=jnp.bfloat16)
    ref_f32 = block_reference(x, params, n_head, mm_dtype=jnp.float32)

    assert out.shape == (B, T, C)
    assert jnp.allclose(out, ref_bf16, atol=2e-3, rtol=2e-3), \
        "mismatch vs bf16-matmul reference"
    assert jnp.allclose(out, ref_f32, atol=3e-2, rtol=3e-2), \
        "mismatch vs f32 reference"

    print("KERNEL_OK")
</pallas_src>

<mosaic_0001>
module attributes {stable_mosaic.version = 11 : i64} {
  func.func @block_kernel(%arg0: i32, %arg1: i32, %arg2: memref<1x8x32xf32, #tpu.memory_space<vmem>>, %arg3: memref<1x16x32xf32, #tpu.memory_space<vmem>>, %arg4: memref<1x32xf32, #tpu.memory_space<vmem>>, %arg5: memref<1x32xf32, #tpu.memory_space<vmem>>, %arg6: memref<32x32xbf16, #tpu.memory_space<vmem>>, %arg7: memref<1x32xf32, #tpu.memory_space<vmem>>, %arg8: memref<32x64xbf16, #tpu.memory_space<vmem>>, %arg9: memref<1x64xf32, #tpu.memory_space<vmem>>, %arg10: memref<32x32xbf16, #tpu.memory_space<vmem>>, %arg11: memref<1x32xf32, #tpu.memory_space<vmem>>, %arg12: memref<1x32xf32, #tpu.memory_space<vmem>>, %arg13: memref<1x32xf32, #tpu.memory_space<vmem>>, %arg14: memref<32x64xbf16, #tpu.memory_space<vmem>>, %arg15: memref<1x64xf32, #tpu.memory_space<vmem>>, %arg16: memref<64x32xbf16, #tpu.memory_space<vmem>>, %arg17: memref<1x32xf32, #tpu.memory_space<vmem>>, %arg18: memref<1x8x32xf32, #tpu.memory_space<vmem>>) attributes {dimension_semantics = [#tpu.dimension_semantics<parallel>, #tpu.dimension_semantics<parallel>], iteration_bounds = array<i64: 2, 2>, scalar_prefetch = 0 : i64, scratch_operands = 0 : i64, tpu.core_type = #tpu.core_type<tc>, window_params = [{transform_indices = @transform_0, window_bounds = array<i64: 1, 8, 32>}, {transform_indices = @transform_1, window_bounds = array<i64: 1, 16, 32>}, {pipeline_mode = #tpu.pipeline_mode<synchronous>, transform_indices = @transform_2, window_bounds = array<i64: 1, 32>}, {pipeline_mode = #tpu.pipeline_mode<synchronous>, transform_indices = @transform_3, window_bounds = array<i64: 1, 32>}, {pipeline_mode = #tpu.pipeline_mode<synchronous>, transform_indices = @transform_4, window_bounds = array<i64: 32, 32>}, {pipeline_mode = #tpu.pipeline_mode<synchronous>, transform_indices = @transform_5, window_bounds = array<i64: 1, 32>}, {pipeline_mode = #tpu.pipeline_mode<synchronous>, transform_indices = @transform_6, window_bounds = array<i64: 32, 64>}, {pipeline_mode = #tpu.pipeline_mode<synchronous>, transform_indices = @transform_7, window_bounds = array<i64: 1, 64>}, {pipeline_mode = #tpu.pipeline_mode<synchronous>, transform_indices = @transform_8, window_bounds = array<i64: 32, 32>}, {pipeline_mode = #tpu.pipeline_mode<synchronous>, transform_indices = @transform_9, window_bounds = array<i64: 1, 32>}, {pipeline_mode = #tpu.pipeline_mode<synchronous>, transform_indices = @transform_10, window_bounds = array<i64: 1, 32>}, {pipeline_mode = #tpu.pipeline_mode<synchronous>, transform_indices = @transform_11, window_bounds = array<i64: 1, 32>}, {pipeline_mode = #tpu.pipeline_mode<synchronous>, transform_indices = @transform_12, window_bounds = array<i64: 32, 64>}, {pipeline_mode = #tpu.pipeline_mode<synchronous>, transform_indices = @transform_13, window_bounds = array<i64: 1, 64>}, {pipeline_mode = #tpu.pipeline_mode<synchronous>, transform_indices = @transform_14, window_bounds = array<i64: 64, 32>}, {pipeline_mode = #tpu.pipeline_mode<synchronous>, transform_indices = @transform_15, window_bounds = array<i64: 1, 32>}, {transform_indices = @transform_16, window_bounds = array<i64: 1, 8, 32>}]} {
    %c0 = arith.constant 0 : index
    %c0_0 = arith.constant 0 : index
    %c0_1 = arith.constant 0 : index
    %0 = vector.load %arg2[%c0, %c0_0, %c0_1] : memref<1x8x32xf32, #tpu.memory_space<vmem>>, vector<1x8x32xf32>
    %1 = vector.shape_cast %0 : vector<1x8x32xf32> to vector<8x32xf32>
    %c0_2 = arith.constant 0 : index
    %c0_3 = arith.constant 0 : index
    %c0_4 = arith.constant 0 : index
    %2 = vector.load %arg3[%c0_2, %c0_3, %c0_4] : memref<1x16x32xf32, #tpu.memory_space<vmem>>, vector<1x16x32xf32>
    %3 = vector.shape_cast %2 : vector<1x16x32xf32> to vector<16x32xf32>
    %c0_5 = arith.constant 0 : index
    %c0_6 = arith.constant 0 : index
    %4 = vector.load %arg4[%c0_5, %c0_6] : memref<1x32xf32, #tpu.memory_space<vmem>>, vector<1x32xf32>
    %c0_7 = arith.constant 0 : index
    %c0_8 = arith.constant 0 : index
    %5 = vector.load %arg5[%c0_7, %c0_8] : memref<1x32xf32, #tpu.memory_space<vmem>>, vector<1x32xf32>
    %cst = arith.constant dense<0.000000e+00> : vector<16xf32>
    %6 = vector.multi_reduction <add>, %3, %cst [1] : vector<16x32xf32> to vector<16xf32>
    %7 = vector.shape_cast %6 : vector<16xf32> to vector<16x1xf32>
    %cst_9 = arith.constant 3.200000e+01 : f32
    %8 = vector.broadcast %cst_9 : f32 to vector<16x1xf32>
    %9 = arith.divf %7, %8 : vector<16x1xf32>
    %10 = vector.broadcast %9 : vector<16x1xf32> to vector<16x32xf32>
    %11 = arith.subf %3, %10 : vector<16x32xf32>
    %12 = arith.mulf %11, %11 : vector<16x32xf32>
    %cst_10 = arith.constant dense<0.000000e+00> : vector<16xf32>
    %13 = vector.multi_reduction <add>, %12, %cst_10 [1] : vector<16x32xf32> to vector<16xf32>
    %14 = vector.shape_cast %13 : vector<16xf32> to vector<16x1xf32>
    %cst_11 = arith.constant 3.200000e+01 : f32
    %15 = vector.broadcast %cst_11 : f32 to vector<16x1xf32>
    %16 = arith.divf %14, %15 : vector<16x1xf32>
    %17 = vector.broadcast %9 : vector<16x1xf32> to vector<16x32xf32>
    %18 = arith.subf %3, %17 : vector<16x32xf32>
    %cst_12 = arith.constant 9.99999974E-6 : f32
    %19 = vector.broadcast %cst_12 : f32 to vector<16x1xf32>
    %20 = arith.addf %16, %19 : vector<16x1xf32>
    %21 = math.rsqrt %20 : vector<16x1xf32>
    %22 = vector.broadcast %21 : vector<16x1xf32> to vector<16x32xf32>
    %23 = arith.mulf %18, %22 : vector<16x32xf32>
    %24 = vector.broadcast %4 : vector<1x32xf32> to vector<16x32xf32>
    %25 = arith.mulf %23, %24 : vector<16x32xf32>
    %26 = vector.broadcast %5 : vector<1x32xf32> to vector<16x32xf32>
    %27 = arith.addf %25, %26 : vector<16x32xf32>
    %28 = arith.truncf %27 : vector<16x32xf32> to vector<16x32xbf16>
    %c0_13 = arith.constant 0 : index
    %c0_14 = arith.constant 0 : index
    %29 = vector.load %arg8[%c0_13, %c0_14] : memref<32x64xbf16, #tpu.memory_space<vmem>>, vector<32x64xbf16>
    %cst_15 = arith.constant dense<0.000000e+00> : vector<16x64xf32>
    %30 = tpu.matmul %28, %29, %cst_15 {dimension_numbers = #tpu.dot_dimension_numbers<[1], [0], [0], [1], [0, 0, 1, 1], [], []>} : vector<16x32xbf16>, vector<32x64xbf16>, vector<16x64xf32> -> vector<16x64xf32>
    %c0_16 = arith.constant 0 : index
    %c0_17 = arith.constant 0 : index
    %31 = vector.load %arg9[%c0_16, %c0_17] : memref<1x64xf32, #tpu.memory_space<vmem>>, vector<1x64xf32>
    %32 = vector.broadcast %31 : vector<1x64xf32> to vector<16x64xf32>
    %33 = arith.addf %30, %32 : vector<16x64xf32>
    %cst_18 = arith.constant 0.000000e+00 : f32
    %34 = vector.broadcast %cst_18 : f32 to vector<16x64xf32>
    %35 = arith.maximumf %33, %34 : vector<16x64xf32>
    %36 = vector.extract_strided_slice %35 {offsets = [0, 0], sizes = [16, 32], strides = [1, 1]} : vector<16x64xf32> to vector<16x32xf32>
    %37 = arith.truncf %36 : vector<16x32xf32> to vector<16x32xbf16>
    %38 = vector.extract_strided_slice %35 {offsets = [0, 32], sizes = [16, 32], strides = [1, 1]} : vector<16x64xf32> to vector<16x32xf32>
    %39 = arith.truncf %38 : vector<16x32xf32> to vector<16x32xbf16>
    %cst_19 = arith.constant dense<0.000000e+00> : vector<8xf32>
    %40 = vector.multi_reduction <add>, %1, %cst_19 [1] : vector<8x32xf32> to vector<8xf32>
    %41 = vector.shape_cast %40 : vector<8xf32> to vector<8x1xf32>
    %cst_20 = arith.constant 3.200000e+01 : f32
    %42 = vector.broadcast %cst_20 : f32 to vector<8x1xf32>
    %43 = arith.divf %41, %42 : vector<8x1xf32>
    %44 = vector.broadcast %43 : vector<8x1xf32> to vector<8x32xf32>
    %45 = arith.subf %1, %44 : vector<8x32xf32>
    %46 = arith.mulf %45, %45 : vector<8x32xf32>
    %cst_21 = arith.constant dense<0.000000e+00> : vector<8xf32>
    %47 = vector.multi_reduction <add>, %46, %cst_21 [1] : vector<8x32xf32> to vector<8xf32>
    %48 = vector.shape_cast %47 : vector<8xf32> to vector<8x1xf32>
    %cst_22 = arith.constant 3.200000e+01 : f32
    %49 = vector.broadcast %cst_22 : f32 to vector<8x1xf32>
    %50 = arith.divf %48, %49 : vector<8x1xf32>
    %51 = vector.broadcast %43 : vector<8x1xf32> to vector<8x32xf32>
    %52 = arith.subf %1, %51 : vector<8x32xf32>
    %cst_23 = arith.constant 9.99999974E-6 : f32
    %53 = vector.broadcast %cst_23 : f32 to vector<8x1xf32>
    %54 = arith.addf %50, %53 : vector<8x1xf32>
    %55 = math.rsqrt %54 : vector<8x1xf32>
    %56 = vector.broadcast %55 : vector<8x1xf32> to vector<8x32xf32>
    %57 = arith.mulf %52, %56 : vector<8x32xf32>
    %58 = vector.broadcast %4 : vector<1x32xf32> to vector<8x32xf32>
    %59 = arith.mulf %57, %58 : vector<8x32xf32>
    %60 = vector.broadcast %5 : vector<1x32xf32> to vector<8x32xf32>
    %61 = arith.addf %59, %60 : vector<8x32xf32>
    %62 = arith.truncf %61 : vector<8x32xf32> to vector<8x32xbf16>
    %c0_24 = arith.constant 0 : index
    %c0_25 = arith.constant 0 : index
    %63 = vector.load %arg6[%c0_24, %c0_25] : memref<32x32xbf16, #tpu.memory_space<vmem>>, vector<32x32xbf16>
    %cst_26 = arith.constant dense<0.000000e+00> : vector<8x32xf32>
    %64 = tpu.matmul %62, %63, %cst_26 {dimension_numbers = #tpu.dot_dimension_numbers<[1], [0], [0], [1], [0, 0, 1, 1], [], []>} : vector<8x32xbf16>, vector<32x32xbf16>, vector<8x32xf32> -> vector<8x32xf32>
    %c0_27 = arith.constant 0 : index
    %c0_28 = arith.constant 0 : index
    %65 = vector.load %arg7[%c0_27, %c0_28] : memref<1x32xf32, #tpu.memory_space<vmem>>, vector<1x32xf32>
    %66 = vector.broadcast %65 : vector<1x32xf32> to vector<8x32xf32>
    %67 = arith.addf %64, %66 : vector<8x32xf32>
    %cst_29 = arith.constant 0.000000e+00 : f32
    %68 = vector.broadcast %cst_29 : f32 to vector<8x32xf32>
    %69 = arith.maximumf %67, %68 : vector<8x32xf32>
    %cst_30 = arith.constant 0.353553385 : f32
    %70 = vector.broadcast %cst_30 : f32 to vector<8x32xf32>
    %71 = arith.mulf %69, %70 : vector<8x32xf32>
    %72 = arith.truncf %71 : vector<8x32xf32> to vector<8x32xbf16>
    %73 = vector.extract_strided_slice %72 {offsets = [0, 0], sizes = [8, 8], strides = [1, 1]} : vector<8x32xbf16> to vector<8x8xbf16>
    %74 = vector.extract_strided_slice %72 {offsets = [0, 8], sizes = [8, 8], strides = [1, 1]} : vector<8x32xbf16> to vector<8x8xbf16>
    %75 = vector.extract_strided_slice %72 {offsets = [0, 16], sizes = [8, 8], strides = [1, 1]} : vector<8x32xbf16> to vector<8x8xbf16>
    %76 = vector.extract_strided_slice %72 {offsets = [0, 24], sizes = [8, 8], strides = [1, 1]} : vector<8x32xbf16> to vector<8x8xbf16>
    %77 = vector.shape_cast %73 : vector<8x8xbf16> to vector<1x8x8xbf16>
    %78 = vector.shape_cast %74 : vector<8x8xbf16> to vector<1x8x8xbf16>
    %79 = vector.shape_cast %75 : vector<8x8xbf16> to vector<1x8x8xbf16>
    %80 = vector.shape_cast %76 : vector<8x8xbf16> to vector<1x8x8xbf16>
    %81 = tpu.concatenate %77, %78, %79, %80 in 0 : vector<1x8x8xbf16>, vector<1x8x8xbf16>, vector<1x8x8xbf16>, vector<1x8x8xbf16> -> vector<4x8x8xbf16>
    %82 = vector.extract_strided_slice %37 {offsets = [0, 0], sizes = [16, 8], strides = [1, 1]} : vector<16x32xbf16> to vector<16x8xbf16>
    %83 = vector.extract_strided_slice %37 {offsets = [0, 8], sizes = [16, 8], strides = [1, 1]} : vector<16x32xbf16> to vector<16x8xbf16>
    %84 = vector.extract_strided_slice %37 {offsets = [0, 16], sizes = [16, 8], strides = [1, 1]} : vector<16x32xbf16> to vector<16x8xbf16>
    %85 = vector.extract_strided_slice %37 {offsets = [0, 24], sizes = [16, 8], strides = [1, 1]} : vector<16x32xbf16> to vector<16x8xbf16>
    %86 = vector.shape_cast %82 : vector<16x8xbf16> to vector<1x16x8xbf16>
    %87 = vector.shape_cast %83 : vector<16x8xbf16> to vector<1x16x8xbf16>
    %88 = vector.shape_cast %84 : vector<16x8xbf16> to vector<1x16x8xbf16>
    %89 = vector.shape_cast %85 : vector<16x8xbf16> to vector<1x16x8xbf16>
    %90 = tpu.concatenate %86, %87, %88, %89 in 0 : vector<1x16x8xbf16>, vector<1x16x8xbf16>, vector<1x16x8xbf16>, vector<1x16x8xbf16> -> vector<4x16x8xbf16>
    %91 = vector.extract_strided_slice %39 {offsets = [0, 0], sizes = [16, 8], strides = [1, 1]} : vector<16x32xbf16> to vector<16x8xbf16>
    %92 = vector.extract_strided_slice %39 {offsets = [0, 8], sizes = [16, 8], strides = [1, 1]} : vector<16x32xbf16> to vector<16x8xbf16>
    %93 = vector.extract_strided_slice %39 {offsets = [0, 16], sizes = [16, 8], strides = [1, 1]} : vector<16x32xbf16> to vector<16x8xbf16>
    %94 = vector.extract_strided_slice %39 {offsets = [0, 24], sizes = [16, 8], strides = [1, 1]} : vector<16x32xbf16> to vector<16x8xbf16>
    %95 = vector.shape_cast %91 : vector<16x8xbf16> to vector<1x16x8xbf16>
    %96 = vector.shape_cast %92 : vector<16x8xbf16> to vector<1x16x8xbf16>
    %97 = vector.shape_cast %93 : vector<16x8xbf16> to vector<1x16x8xbf16>
    %98 = vector.shape_cast %94 : vector<16x8xbf16> to vector<1x16x8xbf16>
    %99 = tpu.concatenate %95, %96, %97, %98 in 0 : vector<1x16x8xbf16>, vector<1x16x8xbf16>, vector<1x16x8xbf16>, vector<1x16x8xbf16> -> vector<4x16x8xbf16>
    "tpu.trace_start"() <{level = 10 : i32, message = "hqd,hkd->hqk"}> : () -> ()
    %cst_31 = arith.constant dense<0.000000e+00> : vector<4x8x16xf32>
    %100 = tpu.matmul %81, %90, %cst_31 {dimension_numbers = #tpu.dot_dimension_numbers<[2], [2], [1], [1], [0, 0, 0, 1, 1, 1], [0], [0]>} : vector<4x8x8xbf16>, vector<4x16x8xbf16>, vector<4x8x16xf32> -> vector<4x8x16xf32>
    "tpu.trace_stop"() : () -> ()
    %c8_i32 = arith.constant 8 : i32
    %101 = arith.muli %arg1, %c8_i32 : i32
    %102 = tpu.iota {dimensions = array<i32: 0>} : vector<8x16xi32>
    %103 = vector.broadcast %101 : i32 to vector<8x16xi32>
    %104 = arith.addi %103, %102 : vector<8x16xi32>
    %105 = tpu.iota {dimensions = array<i32: 1>} : vector<8x16xi32>
    %106 = arith.cmpi sle, %105, %104 : vector<8x16xi32>
    %107 = arith.extui %106 : vector<8x16xi1> to vector<8x16xi32>
    %108 = arith.sitofp %107 : vector<8x16xi32> to vector<8x16xf32>
    %cst_32 = arith.constant 0.000000e+00 : f32
    %109 = vector.broadcast %cst_32 : f32 to vector<4x8x16xf32>
    %110 = arith.maximumf %100, %109 : vector<4x8x16xf32>
    %111 = vector.shape_cast %108 : vector<8x16xf32> to vector<1x8x16xf32>
    %112 = vector.broadcast %111 : vector<1x8x16xf32> to vector<4x8x16xf32>
    %113 = arith.mulf %110, %112 : vector<4x8x16xf32>
    %114 = arith.truncf %113 : vector<4x8x16xf32> to vector<4x8x16xbf16>
    "tpu.trace_start"() <{level = 10 : i32, message = "hqk,hkd->hqd"}> : () -> ()
    %cst_33 = arith.constant dense<0.000000e+00> : vector<4x8x8xf32>
    %115 = tpu.matmul %114, %99, %cst_33 {dimension_numbers = #tpu.dot_dimension_numbers<[2], [1], [1], [2], [0, 0, 0, 1, 1, 2], [0], [0]>} : vector<4x8x16xbf16>, vector<4x16x8xbf16>, vector<4x8x8xf32> -> vector<4x8x8xf32>
    "tpu.trace_stop"() : () -> ()
    %116 = vector.extract_strided_slice %115 {offsets = [0, 0, 0], sizes = [1, 8, 8], strides = [1, 1, 1]} : vector<4x8x8xf32> to vector<1x8x8xf32>
    %117 = vector.shape_cast %116 : vector<1x8x8xf32> to vector<8x8xf32>
    %118 = vector.extract_strided_slice %115 {offsets = [1, 0, 0], sizes = [1, 8, 8], strides = [1, 1, 1]} : vector<4x8x8xf32> to vector<1x8x8xf32>
    %119 = vector.shape_cast %118 : vector<1x8x8xf32> to vector<8x8xf32>
    %120 = vector.extract_strided_slice %115 {offsets = [2, 0, 0], sizes = [1, 8, 8], strides = [1, 1, 1]} : vector<4x8x8xf32> to vector<1x8x8xf32>
    %121 = vector.shape_cast %120 : vector<1x8x8xf32> to vector<8x8xf32>
    %122 = vector.extract_strided_slice %115 {offsets = [3, 0, 0], sizes = [1, 8, 8], strides = [1, 1, 1]} : vector<4x8x8xf32> to vector<1x8x8xf32>
    %123 = vector.shape_cast %122 : vector<1x8x8xf32> to vector<8x8xf32>
    %124 = tpu.concatenate %117, %119, %121, %123 in 1 : vector<8x8xf32>, vector<8x8xf32>, vector<8x8xf32>, vector<8x8xf32> -> vector<8x32xf32>
    %125 = arith.truncf %124 : vector<8x32xf32> to vector<8x32xbf16>
    %c0_34 = arith.constant 0 : index
    %c0_35 = arith.constant 0 : index
    %126 = vector.load %arg10[%c0_34, %c0_35] : memref<32x32xbf16, #tpu.memory_space<vmem>>, vector<32x32xbf16>
    %cst_36 = arith.constant dense<0.000000e+00> : vector<8x32xf32>
    %127 = tpu.matmul %125, %126, %cst_36 {dimension_numbers = #tpu.dot_dimension_numbers<[1], [0], [0], [1], [0, 0, 1, 1], [], []>} : vector<8x32xbf16>, vector<32x32xbf16>, vector<8x32xf32> -> vector<8x32xf32>
    %c0_37 = arith.constant 0 : index
    %c0_38 = arith.constant 0 : index
    %128 = vector.load %arg11[%c0_37, %c0_38] : memref<1x32xf32, #tpu.memory_space<vmem>>, vector<1x32xf32>
    %129 = vector.broadcast %128 : vector<1x32xf32> to vector<8x32xf32>
    %130 = arith.addf %127, %129 : vector<8x32xf32>
    %131 = arith.addf %1, %130 : vector<8x32xf32>
    %c0_39 = arith.constant 0 : index
    %c0_40 = arith.constant 0 : index
    %132 = vector.load %arg12[%c0_39, %c0_40] : memref<1x32xf32, #tpu.memory_space<vmem>>, vector<1x32xf32>
    %c0_41 = arith.constant 0 : index
    %c0_42 = arith.constant 0 : index
    %133 = vector.load %arg13[%c0_41, %c0_42] : memref<1x32xf32, #tpu.memory_space<vmem>>, vector<1x32xf32>
    %cst_43 = arith.constant dense<0.000000e+00> : vector<8xf32>
    %134 = vector.multi_reduction <add>, %131, %cst_43 [1] : vector<8x32xf32> to vector<8xf32>
    %135 = vector.shape_cast %134 : vector<8xf32> to vector<8x1xf32>
    %cst_44 = arith.constant 3.200000e+01 : f32
    %136 = vector.broadcast %cst_44 : f32 to vector<8x1xf32>
    %137 = arith.divf %135, %136 : vector<8x1xf32>
    %138 = vector.broadcast %137 : vector<8x1xf32> to vector<8x32xf32>
    %139 = arith.subf %131, %138 : vector<8x32xf32>
    %140 = arith.mulf %139, %139 : vector<8x32xf32>
    %cst_45 = arith.constant dense<0.000000e+00> : vector<8xf32>
    %141 = vector.multi_reduction <add>, %140, %cst_45 [1] : vector<8x32xf32> to vector<8xf32>
    %142 = vector.shape_cast %141 : vector<8xf32> to vector<8x1xf32>
    %cst_46 = arith.constant 3.200000e+01 : f32
    %143 = vector.broadcast %cst_46 : f32 to vector<8x1xf32>
    %144 = arith.divf %142, %143 : vector<8x1xf32>
    %145 = vector.broadcast %137 : vector<8x1xf32> to vector<8x32xf32>
    %146 = arith.subf %131, %145 : vector<8x32xf32>
    %cst_47 = arith.constant 9.99999974E-6 : f32
    %147 = vector.broadcast %cst_47 : f32 to vector<8x1xf32>
    %148 = arith.addf %144, %147 : vector<8x1xf32>
    %149 = math.rsqrt %148 : vector<8x1xf32>
    %150 = vector.broadcast %149 : vector<8x1xf32> to vector<8x32xf32>
    %151 = arith.mulf %146, %150 : vector<8x32xf32>
    %152 = vector.broadcast %132 : vector<1x32xf32> to vector<8x32xf32>
    %153 = arith.mulf %151, %152 : vector<8x32xf32>
    %154 = vector.broadcast %133 : vector<1x32xf32> to vector<8x32xf32>
    %155 = arith.addf %153, %154 : vector<8x32xf32>
    %156 = arith.truncf %155 : vector<8x32xf32> to vector<8x32xbf16>
    %c0_48 = arith.constant 0 : index
    %c0_49 = arith.constant 0 : index
    %157 = vector.load %arg14[%c0_48, %c0_49] : memref<32x64xbf16, #tpu.memory_space<vmem>>, vector<32x64xbf16>
    %cst_50 = arith.constant dense<0.000000e+00> : vector<8x64xf32>
    %158 = tpu.matmul %156, %157, %cst_50 {dimension_numbers = #tpu.dot_dimension_numbers<[1], [0], [0], [1], [0, 0, 1, 1], [], []>} : vector<8x32xbf16>, vector<32x64xbf16>, vector<8x64xf32> -> vector<8x64xf32>
    %c0_51 = arith.constant 0 : index
    %c0_52 = arith.constant 0 : index
    %159 = vector.load %arg15[%c0_51, %c0_52] : memref<1x64xf32, #tpu.memory_space<vmem>>, vector<1x64xf32>
    %160 = vector.broadcast %159 : vector<1x64xf32> to vector<8x64xf32>
    %161 = arith.addf %158, %160 : vector<8x64xf32>
    %cst_53 = arith.constant 0.000000e+00 : f32
    %162 = vector.broadcast %cst_53 : f32 to vector<8x64xf32>
    %163 = arith.maximumf %161, %162 : vector<8x64xf32>
    %164 = arith.truncf %163 : vector<8x64xf32> to vector<8x64xbf16>
    %c0_54 = arith.constant 0 : index
    %c0_55 = arith.constant 0 : index
    %165 = vector.load %arg16[%c0_54, %c0_55] : memref<64x32xbf16, #tpu.memory_space<vmem>>, vector<64x32xbf16>
    %cst_56 = arith.constant dense<0.000000e+00> : vector<8x32xf32>
    %166 = tpu.matmul %164, %165, %cst_56 {dimension_numbers = #tpu.dot_dimension_numbers<[1], [0], [0], [1], [0, 0, 1, 1], [], []>} : vector<8x64xbf16>, vector<64x32xbf16>, vector<8x32xf32> -> vector<8x32xf32>
    %c0_57 = arith.constant 0 : index
    %c0_58 = arith.constant 0 : index
    %167 = vector.load %arg17[%c0_57, %c0_58] : memref<1x32xf32, #tpu.memory_space<vmem>>, vector<1x32xf32>
    %168 = vector.broadcast %167 : vector<1x32xf32> to vector<8x32xf32>
    %169 = arith.addf %166, %168 : vector<8x32xf32>
    %170 = arith.addf %131, %169 : vector<8x32xf32>
    %c0_59 = arith.constant 0 : index
    %c0_60 = arith.constant 0 : index
    %c0_61 = arith.constant 0 : index
    %171 = vector.load %arg18[%c0_59, %c0_60, %c0_61] : memref<1x8x32xf32, #tpu.memory_space<vmem>>, vector<1x8x32xf32>
    %172 = vector.shape_cast %171 : vector<1x8x32xf32> to vector<8x32xf32>
    %173 = vector.shape_cast %170 : vector<8x32xf32> to vector<1x8x32xf32>
    tpu.vector_store %arg18[%c0_59, %c0_60, %c0_61], %173 {strides = array<i32>} : memref<1x8x32xf32, #tpu.memory_space<vmem>>, vector<1x8x32xf32>,
    return
  }
  func.func @transform_0(%arg0: i32, %arg1: i32) -> (i32, i32, i32) {
    %c0_i32 = arith.constant 0 : i32
    %c0_i32_0 = arith.constant 0 : i32
    return %arg0, %arg1, %c0_i32 : i32, i32, i32
  }
  func.func @transform_1(%arg0: i32, %arg1: i32) -> (i32, i32, i32) {
    %c0_i32 = arith.constant 0 : i32
    %c0_i32_0 = arith.constant 0 : i32
    %c0_i32_1 = arith.constant 0 : i32
    return %arg0, %c0_i32, %c0_i32_0 : i32, i32, i32
  }
  func.func @transform_2(%arg0: i32, %arg1: i32) -> (i32, i32) {
    %c0_i32 = arith.constant 0 : i32
    %c0_i32_0 = arith.constant 0 : i32
    %c0_i32_1 = arith.constant 0 : i32
    return %c0_i32, %c0_i32_0 : i32, i32
  }
  func.func @transform_3(%arg0: i32, %arg1: i32) -> (i32, i32) {
    %c0_i32 = arith.constant 0 : i32
    %c0_i32_0 = arith.constant 0 : i32
    %c0_i32_1 = arith.constant 0 : i32
    return %c0_i32, %c0_i32_0 : i32, i32
  }
  func.func @transform_4(%arg0: i32, %arg1: i32) -> (i32, i32) {
    %c0_i32 = arith.constant 0 : i32
    %c0_i32_0 = arith.constant 0 : i32
    %c0_i32_1 = arith.constant 0 : i32
    return %c0_i32, %c0_i32_0 : i32, i32
  }
  func.func @transform_5(%arg0: i32, %arg1: i32) -> (i32, i32) {
    %c0_i32 = arith.constant 0 : i32
    %c0_i32_0 = arith.constant 0 : i32
    %c0_i32_1 = arith.constant 0 : i32
    return %c0_i32, %c0_i32_0 : i32, i32
  }
  func.func @transform_6(%arg0: i32, %arg1: i32) -> (i32, i32) {
    %c0_i32 = arith.constant 0 : i32
    %c0_i32_0 = arith.constant 0 : i32
    %c0_i32_1 = arith.constant 0 : i32
    return %c0_i32, %c0_i32_0 : i32, i32
  }
  func.func @transform_7(%arg0: i32, %arg1: i32) -> (i32, i32) {
    %c0_i32 = arith.constant 0 : i32
    %c0_i32_0 = arith.constant 0 : i32
    %c0_i32_1 = arith.constant 0 : i32
    return %c0_i32, %c0_i32_0 : i32, i32
  }
  func.func @transform_8(%arg0: i32, %arg1: i32) -> (i32, i32) {
    %c0_i32 = arith.constant 0 : i32
    %c0_i32_0 = arith.constant 0 : i32
    %c0_i32_1 = arith.constant 0 : i32
    return %c0_i32, %c0_i32_0 : i32, i32
  }
  func.func @transform_9(%arg0: i32, %arg1: i32) -> (i32, i32) {
    %c0_i32 = arith.constant 0 : i32
    %c0_i32_0 = arith.constant 0 : i32
    %c0_i32_1 = arith.constant 0 : i32
    return %c0_i32, %c0_i32_0 : i32, i32
  }
  func.func @transform_10(%arg0: i32, %arg1: i32) -> (i32, i32) {
    %c0_i32 = arith.constant 0 : i32
    %c0_i32_0 = arith.constant 0 : i32
    %c0_i32_1 = arith.constant 0 : i32
    return %c0_i32, %c0_i32_0 : i32, i32
  }
  func.func @transform_11(%arg0: i32, %arg1: i32) -> (i32, i32) {
    %c0_i32 = arith.constant 0 : i32
    %c0_i32_0 = arith.constant 0 : i32
    %c0_i32_1 = arith.constant 0 : i32
    return %c0_i32, %c0_i32_0 : i32, i32
  }
  func.func @transform_12(%arg0: i32, %arg1: i32) -> (i32, i32) {
    %c0_i32 = arith.constant 0 : i32
    %c0_i32_0 = arith.constant 0 : i32
    %c0_i32_1 = arith.constant 0 : i32
    return %c0_i32, %c0_i32_0 : i32, i32
  }
  func.func @transform_13(%arg0: i32, %arg1: i32) -> (i32, i32) {
    %c0_i32 = arith.constant 0 : i32
    %c0_i32_0 = arith.constant 0 : i32
    %c0_i32_1 = arith.constant 0 : i32
    return %c0_i32, %c0_i32_0 : i32, i32
  }
  func.func @transform_14(%arg0: i32, %arg1: i32) -> (i32, i32) {
    %c0_i32 = arith.constant 0 : i32
    %c0_i32_0 = arith.constant 0 : i32
    %c0_i32_1 = arith.constant 0 : i32
    return %c0_i32, %c0_i32_0 : i32, i32
  }
  func.func @transform_15(%arg0: i32, %arg1: i32) -> (i32, i32) {
    %c0_i32 = arith.constant 0 : i32
    %c0_i32_0 = arith.constant 0 : i32
    %c0_i32_1 = arith.constant 0 : i32
    return %c0_i32, %c0_i32_0 : i32, i32
  }
  func.func @transform_16(%arg0: i32, %arg1: i32) -> (i32, i32, i32) {
    %c0_i32 = arith.constant 0 : i32
    %c0_i32_0 = arith.constant 0 : i32
    return %arg0, %arg1, %c0_i32 : i32, i32, i32
  }
}

module attributes {stable_mosaic.version = 11 : i64} {
  func.func @block_kernel(%arg0: i32, %arg1: i32, %arg2: memref<1x8x32xf32, #tpu.memory_space<vmem>>, %arg3: memref<1x16x32xf32, #tpu.memory_space<vmem>>, %arg4: memref<1x32xf32, #tpu.memory_space<vmem>>, %arg5: memref<1x32xf32, #tpu.memory_space<vmem>>, %arg6: memref<32x32xbf16, #tpu.memory_space<vmem>>, %arg7: memref<1x32xf32, #tpu.memory_space<vmem>>, %arg8: memref<32x64xbf16, #tpu.memory_space<vmem>>, %arg9: memref<1x64xf32, #tpu.memory_space<vmem>>, %arg10: memref<32x32xbf16, #tpu.memory_space<vmem>>, %arg11: memref<1x32xf32, #tpu.memory_space<vmem>>, %arg12: memref<1x32xf32, #tpu.memory_space<vmem>>, %arg13: memref<1x32xf32, #tpu.memory_space<vmem>>, %arg14: memref<32x64xbf16, #tpu.memory_space<vmem>>, %arg15: memref<1x64xf32, #tpu.memory_space<vmem>>, %arg16: memref<64x32xbf16, #tpu.memory_space<vmem>>, %arg17: memref<1x32xf32, #tpu.memory_space<vmem>>, %arg18: memref<1x8x32xf32, #tpu.memory_space<vmem>>) attributes {dimension_semantics = [#tpu.dimension_semantics<parallel>, #tpu.dimension_semantics<parallel>], iteration_bounds = array<i64: 2, 2>, scalar_prefetch = 0 : i64, scratch_operands = 0 : i64, tpu.core_type = #tpu.core_type<tc>, window_params = [{transform_indices = @transform_0, window_bounds = array<i64: 1, 8, 32>}, {transform_indices = @transform_1, window_bounds = array<i64: 1, 16, 32>}, {pipeline_mode = #tpu.pipeline_mode<synchronous>, transform_indices = @transform_2, window_bounds = array<i64: 1, 32>}, {pipeline_mode = #tpu.pipeline_mode<synchronous>, transform_indices = @transform_3, window_bounds = array<i64: 1, 32>}, {pipeline_mode = #tpu.pipeline_mode<synchronous>, transform_indices = @transform_4, window_bounds = array<i64: 32, 32>}, {pipeline_mode = #tpu.pipeline_mode<synchronous>, transform_indices = @transform_5, window_bounds = array<i64: 1, 32>}, {pipeline_mode = #tpu.pipeline_mode<synchronous>, transform_indices = @transform_6, window_bounds = array<i64: 32, 64>}, {pipeline_mode = #tpu.pipeline_mode<synchronous>, transform_indices = @transform_7, window_bounds = array<i64: 1, 64>}, {pipeline_mode = #tpu.pipeline_mode<synchronous>, transform_indices = @transform_8, window_bounds = array<i64: 32, 32>}, {pipeline_mode = #tpu.pipeline_mode<synchronous>, transform_indices = @transform_9, window_bounds = array<i64: 1, 32>}, {pipeline_mode = #tpu.pipeline_mode<synchronous>, transform_indices = @transform_10, window_bounds = array<i64: 1, 32>}, {pipeline_mode = #tpu.pipeline_mode<synchronous>, transform_indices = @transform_11, window_bounds = array<i64: 1, 32>}, {pipeline_mode = #tpu.pipeline_mode<synchronous>, transform_indices = @transform_12, window_bounds = array<i64: 32, 64>}, {pipeline_mode = #tpu.pipeline_mode<synchronous>, transform_indices = @transform_13, window_bounds = array<i64: 1, 64>}, {pipeline_mode = #tpu.pipeline_mode<synchronous>, transform_indices = @transform_14, window_bounds = array<i64: 64, 32>}, {pipeline_mode = #tpu.pipeline_mode<synchronous>, transform_indices = @transform_15, window_bounds = array<i64: 1, 32>}, {transform_indices = @transform_16, window_bounds = array<i64: 1, 8, 32>}]} {
    %c0 = arith.constant 0 : index
    %c0_0 = arith.constant 0 : index
    %c0_1 = arith.constant 0 : index
    %0 = vector.load %arg2[%c0, %c0_0, %c0_1] : memref<1x8x32xf32, #tpu.memory_space<vmem>>, vector<1x8x32xf32>
    %1 = vector.shape_cast %0 : vector<1x8x32xf32> to vector<8x32xf32>
    %c0_2 = arith.constant 0 : index
    %c0_3 = arith.constant 0 : index
    %c0_4 = arith.constant 0 : index
    %2 = vector.load %arg3[%c0_2, %c0_3, %c0_4] : memref<1x16x32xf32, #tpu.memory_space<vmem>>, vector<1x16x32xf32>
    %3 = vector.shape_cast %2 : vector<1x16x32xf32> to vector<16x32xf32>
    %c0_5 = arith.constant 0 : index
    %c0_6 = arith.constant 0 : index
    %4 = vector.load %arg4[%c0_5, %c0_6] : memref<1x32xf32, #tpu.memory_space<vmem>>, vector<1x32xf32>
    %c0_7 = arith.constant 0 : index
    %c0_8 = arith.constant 0 : index
    %5 = vector.load %arg5[%c0_7, %c0_8] : memref<1x32xf32, #tpu.memory_space<vmem>>, vector<1x32xf32>
    %cst = arith.constant dense<0.000000e+00> : vector<16xf32>
    %6 = vector.multi_reduction <add>, %3, %cst [1] : vector<16x32xf32> to vector<16xf32>
    %7 = vector.shape_cast %6 : vector<16xf32> to vector<16x1xf32>
    %cst_9 = arith.constant 3.200000e+01 : f32
    %8 = vector.broadcast %cst_9 : f32 to vector<16x1xf32>
    %9 = arith.divf %7, %8 : vector<16x1xf32>
    %10 = vector.broadcast %9 : vector<16x1xf32> to vector<16x32xf32>
    %11 = arith.subf %3, %10 : vector<16x32xf32>
    %12 = arith.mulf %11, %11 : vector<16x32xf32>
    %cst_10 = arith.constant dense<0.000000e+00> : vector<16xf32>
    %13 = vector.multi_reduction <add>, %12, %cst_10 [1] : vector<16x32xf32> to vector<16xf32>
    %14 = vector.shape_cast %13 : vector<16xf32> to vector<16x1xf32>
    %cst_11 = arith.constant 3.200000e+01 : f32
    %15 = vector.broadcast %cst_11 : f32 to vector<16x1xf32>
    %16 = arith.divf %14, %15 : vector<16x1xf32>
    %17 = vector.broadcast %9 : vector<16x1xf32> to vector<16x32xf32>
    %18 = arith.subf %3, %17 : vector<16x32xf32>
    %cst_12 = arith.constant 9.99999974E-6 : f32
    %19 = vector.broadcast %cst_12 : f32 to vector<16x1xf32>
    %20 = arith.addf %16, %19 : vector<16x1xf32>
    %21 = math.rsqrt %20 : vector<16x1xf32>
    %22 = vector.broadcast %21 : vector<16x1xf32> to vector<16x32xf32>
    %23 = arith.mulf %18, %22 : vector<16x32xf32>
    %24 = vector.broadcast %4 : vector<1x32xf32> to vector<16x32xf32>
    %25 = arith.mulf %23, %24 : vector<16x32xf32>
    %26 = vector.broadcast %5 : vector<1x32xf32> to vector<16x32xf32>
    %27 = arith.addf %25, %26 : vector<16x32xf32>
    %28 = arith.truncf %27 : vector<16x32xf32> to vector<16x32xbf16>
    %c0_13 = arith.constant 0 : index
    %c0_14 = arith.constant 0 : index
    %29 = vector.load %arg8[%c0_13, %c0_14] : memref<32x64xbf16, #tpu.memory_space<vmem>>, vector<32x64xbf16>
    %cst_15 = arith.constant dense<0.000000e+00> : vector<16x64xf32>
    %30 = tpu.matmul %28, %29, %cst_15 {dimension_numbers = #tpu.dot_dimension_numbers<[1], [0], [0], [1], [0, 0, 1, 1], [], []>} : vector<16x32xbf16>, vector<32x64xbf16>, vector<16x64xf32> -> vector<16x64xf32>
    %c0_16 = arith.constant 0 : index
    %c0_17 = arith.constant 0 : index
    %31 = vector.load %arg9[%c0_16, %c0_17] : memref<1x64xf32, #tpu.memory_space<vmem>>, vector<1x64xf32>
    %32 = vector.broadcast %31 : vector<1x64xf32> to vector<16x64xf32>
    %33 = arith.addf %30, %32 : vector<16x64xf32>
    %cst_18 = arith.constant 0.000000e+00 : f32
    %34 = vector.broadcast %cst_18 : f32 to vector<16x64xf32>
    %35 = arith.maximumf %33, %34 : vector<16x64xf32>
    %36 = vector.extract_strided_slice %35 {offsets = [0, 0], sizes = [16, 32], strides = [1, 1]} : vector<16x64xf32> to vector<16x32xf32>
    %37 = arith.truncf %36 : vector<16x32xf32> to vector<16x32xbf16>
    %38 = vector.extract_strided_slice %35 {offsets = [0, 32], sizes = [16, 32], strides = [1, 1]} : vector<16x64xf32> to vector<16x32xf32>
    %39 = arith.truncf %38 : vector<16x32xf32> to vector<16x32xbf16>
    %cst_19 = arith.constant dense<0.000000e+00> : vector<8xf32>
    %40 = vector.multi_reduction <add>, %1, %cst_19 [1] : vector<8x32xf32> to vector<8xf32>
    %41 = vector.shape_cast %40 : vector<8xf32> to vector<8x1xf32>
    %cst_20 = arith.constant 3.200000e+01 : f32
    %42 = vector.broadcast %cst_20 : f32 to vector<8x1xf32>
    %43 = arith.divf %41, %42 : vector<8x1xf32>
    %44 = vector.broadcast %43 : vector<8x1xf32> to vector<8x32xf32>
    %45 = arith.subf %1, %44 : vector<8x32xf32>
    %46 = arith.mulf %45, %45 : vector<8x32xf32>
    %cst_21 = arith.constant dense<0.000000e+00> : vector<8xf32>
    %47 = vector.multi_reduction <add>, %46, %cst_21 [1] : vector<8x32xf32> to vector<8xf32>
    %48 = vector.shape_cast %47 : vector<8xf32> to vector<8x1xf32>
    %cst_22 = arith.constant 3.200000e+01 : f32
    %49 = vector.broadcast %cst_22 : f32 to vector<8x1xf32>
    %50 = arith.divf %48, %49 : vector<8x1xf32>
    %51 = vector.broadcast %43 : vector<8x1xf32> to vector<8x32xf32>
    %52 = arith.subf %1, %51 : vector<8x32xf32>
    %cst_23 = arith.constant 9.99999974E-6 : f32
    %53 = vector.broadcast %cst_23 : f32 to vector<8x1xf32>
    %54 = arith.addf %50, %53 : vector<8x1xf32>
    %55 = math.rsqrt %54 : vector<8x1xf32>
    %56 = vector.broadcast %55 : vector<8x1xf32> to vector<8x32xf32>
    %57 = arith.mulf %52, %56 : vector<8x32xf32>
    %58 = vector.broadcast %4 : vector<1x32xf32> to vector<8x32xf32>
    %59 = arith.mulf %57, %58 : vector<8x32xf32>
    %60 = vector.broadcast %5 : vector<1x32xf32> to vector<8x32xf32>
    %61 = arith.addf %59, %60 : vector<8x32xf32>
    %62 = arith.truncf %61 : vector<8x32xf32> to vector<8x32xbf16>
    %c0_24 = arith.constant 0 : index
    %c0_25 = arith.constant 0 : index
    %63 = vector.load %arg6[%c0_24, %c0_25] : memref<32x32xbf16, #tpu.memory_space<vmem>>, vector<32x32xbf16>
    %cst_26 = arith.constant dense<0.000000e+00> : vector<8x32xf32>
    %64 = tpu.matmul %62, %63, %cst_26 {dimension_numbers = #tpu.dot_dimension_numbers<[1], [0], [0], [1], [0, 0, 1, 1], [], []>} : vector<8x32xbf16>, vector<32x32xbf16>, vector<8x32xf32> -> vector<8x32xf32>
    %c0_27 = arith.constant 0 : index
    %c0_28 = arith.constant 0 : index
    %65 = vector.load %arg7[%c0_27, %c0_28] : memref<1x32xf32, #tpu.memory_space<vmem>>, vector<1x32xf32>
    %66 = vector.broadcast %65 : vector<1x32xf32> to vector<8x32xf32>
    %67 = arith.addf %64, %66 : vector<8x32xf32>
    %cst_29 = arith.constant 0.000000e+00 : f32
    %68 = vector.broadcast %cst_29 : f32 to vector<8x32xf32>
    %69 = arith.maximumf %67, %68 : vector<8x32xf32>
    %cst_30 = arith.constant 0.353553385 : f32
    %70 = vector.broadcast %cst_30 : f32 to vector<8x32xf32>
    %71 = arith.mulf %69, %70 : vector<8x32xf32>
    %72 = arith.truncf %71 : vector<8x32xf32> to vector<8x32xbf16>
    %73 = vector.extract_strided_slice %72 {offsets = [0, 0], sizes = [8, 8], strides = [1, 1]} : vector<8x32xbf16> to vector<8x8xbf16>
    %74 = vector.extract_strided_slice %72 {offsets = [0, 8], sizes = [8, 8], strides = [1, 1]} : vector<8x32xbf16> to vector<8x8xbf16>
    %75 = vector.extract_strided_slice %72 {offsets = [0, 16], sizes = [8, 8], strides = [1, 1]} : vector<8x32xbf16> to vector<8x8xbf16>
    %76 = vector.extract_strided_slice %72 {offsets = [0, 24], sizes = [8, 8], strides = [1, 1]} : vector<8x32xbf16> to vector<8x8xbf16>
    %77 = vector.shape_cast %73 : vector<8x8xbf16> to vector<1x8x8xbf16>
    %78 = vector.shape_cast %74 : vector<8x8xbf16> to vector<1x8x8xbf16>
    %79 = vector.shape_cast %75 : vector<8x8xbf16> to vector<1x8x8xbf16>
    %80 = vector.shape_cast %76 : vector<8x8xbf16> to vector<1x8x8xbf16>
    %81 = tpu.concatenate %77, %78, %79, %80 in 0 : vector<1x8x8xbf16>, vector<1x8x8xbf16>, vector<1x8x8xbf16>, vector<1x8x8xbf16> -> vector<4x8x8xbf16>
    %82 = vector.extract_strided_slice %37 {offsets = [0, 0], sizes = [16, 8], strides = [1, 1]} : vector<16x32xbf16> to vector<16x8xbf16>
    %83 = vector.extract_strided_slice %37 {offsets = [0, 8], sizes = [16, 8], strides = [1, 1]} : vector<16x32xbf16> to vector<16x8xbf16>
    %84 = vector.extract_strided_slice %37 {offsets = [0, 16], sizes = [16, 8], strides = [1, 1]} : vector<16x32xbf16> to vector<16x8xbf16>
    %85 = vector.extract_strided_slice %37 {offsets = [0, 24], sizes = [16, 8], strides = [1, 1]} : vector<16x32xbf16> to vector<16x8xbf16>
    %86 = vector.shape_cast %82 : vector<16x8xbf16> to vector<1x16x8xbf16>
    %87 = vector.shape_cast %83 : vector<16x8xbf16> to vector<1x16x8xbf16>
    %88 = vector.shape_cast %84 : vector<16x8xbf16> to vector<1x16x8xbf16>
    %89 = vector.shape_cast %85 : vector<16x8xbf16> to vector<1x16x8xbf16>
    %90 = tpu.concatenate %86, %87, %88, %89 in 0 : vector<1x16x8xbf16>, vector<1x16x8xbf16>, vector<1x16x8xbf16>, vector<1x16x8xbf16> -> vector<4x16x8xbf16>
    %91 = vector.extract_strided_slice %39 {offsets = [0, 0], sizes = [16, 8], strides = [1, 1]} : vector<16x32xbf16> to vector<16x8xbf16>
    %92 = vector.extract_strided_slice %39 {offsets = [0, 8], sizes = [16, 8], strides = [1, 1]} : vector<16x32xbf16> to vector<16x8xbf16>
    %93 = vector.extract_strided_slice %39 {offsets = [0, 16], sizes = [16, 8], strides = [1, 1]} : vector<16x32xbf16> to vector<16x8xbf16>
    %94 = vector.extract_strided_slice %39 {offsets = [0, 24], sizes = [16, 8], strides = [1, 1]} : vector<16x32xbf16> to vector<16x8xbf16>
    %95 = vector.shape_cast %91 : vector<16x8xbf16> to vector<1x16x8xbf16>
    %96 = vector.shape_cast %92 : vector<16x8xbf16> to vector<1x16x8xbf16>
    %97 = vector.shape_cast %93 : vector<16x8xbf16> to vector<1x16x8xbf16>
    %98 = vector.shape_cast %94 : vector<16x8xbf16> to vector<1x16x8xbf16>
    %99 = tpu.concatenate %95, %96, %97, %98 in 0 : vector<1x16x8xbf16>, vector<1x16x8xbf16>, vector<1x16x8xbf16>, vector<1x16x8xbf16> -> vector<4x16x8xbf16>
    "tpu.trace_start"() <{level = 10 : i32, message = "hqd,hkd->hqk"}> : () -> ()
    %cst_31 = arith.constant dense<0.000000e+00> : vector<4x8x16xf32>
    %100 = tpu.matmul %81, %90, %cst_31 {dimension_numbers = #tpu.dot_dimension_numbers<[2], [2], [1], [1], [0, 0, 0, 1, 1, 1], [0], [0]>} : vector<4x8x8xbf16>, vector<4x16x8xbf16>, vector<4x8x16xf32> -> vector<4x8x16xf32>
    "tpu.trace_stop"() : () -> ()
    %c8_i32 = arith.constant 8 : i32
    %101 = arith.muli %arg1, %c8_i32 : i32
    %102 = tpu.iota {dimensions = array<i32: 0>} : vector<8x16xi32>
    %103 = vector.broadcast %101 : i32 to vector<8x16xi32>
    %104 = arith.addi %103, %102 : vector<8x16xi32>
    %105 = tpu.iota {dimensions = array<i32: 1>} : vector<8x16xi32>
    %106 = arith.cmpi sle, %105, %104 : vector<8x16xi32>
    %107 = arith.extui %106 : vector<8x16xi1> to vector<8x16xi32>
    %108 = arith.sitofp %107 : vector<8x16xi32> to vector<8x16xf32>
    %cst_32 = arith.constant 0.000000e+00 : f32
    %109 = vector.broadcast %cst_32 : f32 to vector<4x8x16xf32>
    %110 = arith.maximumf %100, %109 : vector<4x8x16xf32>
    %111 = vector.shape_cast %108 : vector<8x16xf32> to vector<1x8x16xf32>
    %112 = vector.broadcast %111 : vector<1x8x16xf32> to vector<4x8x16xf32>
    %113 = arith.mulf %110, %112 : vector<4x8x16xf32>
    %114 = arith.truncf %113 : vector<4x8x16xf32> to vector<4x8x16xbf16>
    "tpu.trace_start"() <{level = 10 : i32, message = "hqk,hkd->hqd"}> : () -> ()
    %cst_33 = arith.constant dense<0.000000e+00> : vector<4x8x8xf32>
    %115 = tpu.matmul %114, %99, %cst_33 {dimension_numbers = #tpu.dot_dimension_numbers<[2], [1], [1], [2], [0, 0, 0, 1, 1, 2], [0], [0]>} : vector<4x8x16xbf16>, vector<4x16x8xbf16>, vector<4x8x8xf32> -> vector<4x8x8xf32>
    "tpu.trace_stop"() : () -> ()
    %116 = vector.extract_strided_slice %115 {offsets = [0, 0, 0], sizes = [1, 8, 8], strides = [1, 1, 1]} : vector<4x8x8xf32> to vector<1x8x8xf32>
    %117 = vector.shape_cast %116 : vector<1x8x8xf32> to vector<8x8xf32>
    %118 = vector.extract_strided_slice %115 {offsets = [1, 0, 0], sizes = [1, 8, 8], strides = [1, 1, 1]} : vector<4x8x8xf32> to vector<1x8x8xf32>
    %119 = vector.shape_cast %118 : vector<1x8x8xf32> to vector<8x8xf32>
    %120 = vector.extract_strided_slice %115 {offsets = [2, 0, 0], sizes = [1, 8, 8], strides = [1, 1, 1]} : vector<4x8x8xf32> to vector<1x8x8xf32>
    %121 = vector.shape_cast %120 : vector<1x8x8xf32> to vector<8x8xf32>
    %122 = vector.extract_strided_slice %115 {offsets = [3, 0, 0], sizes = [1, 8, 8], strides = [1, 1, 1]} : vector<4x8x8xf32> to vector<1x8x8xf32>
    %123 = vector.shape_cast %122 : vector<1x8x8xf32> to vector<8x8xf32>
    %124 = tpu.concatenate %117, %119, %121, %123 in 1 : vector<8x8xf32>, vector<8x8xf32>, vector<8x8xf32>, vector<8x8xf32> -> vector<8x32xf32>
    %125 = arith.truncf %124 : vector<8x32xf32> to vector<8x32xbf16>
    %c0_34 = arith.constant 0 : index
    %c0_35 = arith.constant 0 : index
    %126 = vector.load %arg10[%c0_34, %c0_35] : memref<32x32xbf16, #tpu.memory_space<vmem>>, vector<32x32xbf16>
    %cst_36 = arith.constant dense<0.000000e+00> : vector<8x32xf32>
    %127 = tpu.matmul %125, %126, %cst_36 {dimension_numbers = #tpu.dot_dimension_numbers<[1], [0], [0], [1], [0, 0, 1, 1], [], []>} : vector<8x32xbf16>, vector<32x32xbf16>, vector<8x32xf32> -> vector<8x32xf32>
    %c0_37 = arith.constant 0 : index
    %c0_38 = arith.constant 0 : index
    %128 = vector.load %arg11[%c0_37, %c0_38] : memref<1x32xf32, #tpu.memory_space<vmem>>, vector<1x32xf32>
    %129 = vector.broadcast %128 : vector<1x32xf32> to vector<8x32xf32>
    %130 = arith.addf %127, %129 : vector<8x32xf32>
    %131 = arith.addf %1, %130 : vector<8x32xf32>
    %c0_39 = arith.constant 0 : index
    %c0_40 = arith.constant 0 : index
    %132 = vector.load %arg12[%c0_39, %c0_40] : memref<1x32xf32, #tpu.memory_space<vmem>>, vector<1x32xf32>
    %c0_41 = arith.constant 0 : index
    %c0_42 = arith.constant 0 : index
    %133 = vector.load %arg13[%c0_41, %c0_42] : memref<1x32xf32, #tpu.memory_space<vmem>>, vector<1x32xf32>
    %cst_43 = arith.constant dense<0.000000e+00> : vector<8xf32>
    %134 = vector.multi_reduction <add>, %131, %cst_43 [1] : vector<8x32xf32> to vector<8xf32>
    %135 = vector.shape_cast %134 : vector<8xf32> to vector<8x1xf32>
    %cst_44 = arith.constant 3.200000e+01 : f32
    %136 = vector.broadcast %cst_44 : f32 to vector<8x1xf32>
    %137 = arith.divf %135, %136 : vector<8x1xf32>
    %138 = vector.broadcast %137 : vector<8x1xf32> to vector<8x32xf32>
    %139 = arith.subf %131, %138 : vector<8x32xf32>
    %140 = arith.mulf %139, %139 : vector<8x32xf32>
    %cst_45 = arith.constant dense<0.000000e+00> : vector<8xf32>
    %141 = vector.multi_reduction <add>, %140, %cst_45 [1] : vector<8x32xf32> to vector<8xf32>
    %142 = vector.shape_cast %141 : vector<8xf32> to vector<8x1xf32>
    %cst_46 = arith.constant 3.200000e+01 : f32
    %143 = vector.broadcast %cst_46 : f32 to vector<8x1xf32>
    %144 = arith.divf %142, %143 : vector<8x1xf32>
    %145 = vector.broadcast %137 : vector<8x1xf32> to vector<8x32xf32>
    %146 = arith.subf %131, %145 : vector<8x32xf32>
    %cst_47 = arith.constant 9.99999974E-6 : f32
    %147 = vector.broadcast %cst_47 : f32 to vector<8x1xf32>
    %148 = arith.addf %144, %147 : vector<8x1xf32>
    %149 = math.rsqrt %148 : vector<8x1xf32>
    %150 = vector.broadcast %149 : vector<8x1xf32> to vector<8x32xf32>
    %151 = arith.mulf %146, %150 : vector<8x32xf32>
    %152 = vector.broadcast %132 : vector<1x32xf32> to vector<8x32xf32>
    %153 = arith.mulf %151, %152 : vector<8x32xf32>
    %154 = vector.broadcast %133 : vector<1x32xf32> to vector<8x32xf32>
    %155 = arith.addf %153, %154 : vector<8x32xf32>
    %156 = arith.truncf %155 : vector<8x32xf32> to vector<8x32xbf16>
    %c0_48 = arith.constant 0 : index
    %c0_49 = arith.constant 0 : index
    %157 = vector.load %arg14[%c0_48, %c0_49] : memref<32x64xbf16, #tpu.memory_space<vmem>>, vector<32x64xbf16>
    %cst_50 = arith.constant dense<0.000000e+00> : vector<8x64xf32>
    %158 = tpu.matmul %156, %157, %cst_50 {dimension_numbers = #tpu.dot_dimension_numbers<[1], [0], [0], [1], [0, 0, 1, 1], [], []>} : vector<8x32xbf16>, vector<32x64xbf16>, vector<8x64xf32> -> vector<8x64xf32>
    %c0_51 = arith.constant 0 : index
    %c0_52 = arith.constant 0 : index
    %159 = vector.load %arg15[%c0_51, %c0_52] : memref<1x64xf32, #tpu.memory_space<vmem>>, vector<1x64xf32>
    %160 = vector.broadcast %159 : vector<1x64xf32> to vector<8x64xf32>
    %161 = arith.addf %158, %160 : vector<8x64xf32>
    %cst_53 = arith.constant 0.000000e+00 : f32
    %162 = vector.broadcast %cst_53 : f32 to vector<8x64xf32>
    %163 = arith.maximumf %161, %162 : vector<8x64xf32>
    %164 = arith.truncf %163 : vector<8x64xf32> to vector<8x64xbf16>
    %c0_54 = arith.constant 0 : index
    %c0_55 = arith.constant 0 : index
    %165 = vector.load %arg16[%c0_54, %c0_55] : memref<64x32xbf16, #tpu.memory_space<vmem>>, vector<64x32xbf16>
    %cst_56 = arith.constant dense<0.000000e+00> : vector<8x32xf32>
    %166 = tpu.matmul %164, %165, %cst_56 {dimension_numbers = #tpu.dot_dimension_numbers<[1], [0], [0], [1], [0, 0, 1, 1], [], []>} : vector<8x64xbf16>, vector<64x32xbf16>, vector<8x32xf32> -> vector<8x32xf32>
    %c0_57 = arith.constant 0 : index
    %c0_58 = arith.constant 0 : index
    %167 = vector.load %arg17[%c0_57, %c0_58] : memref<1x32xf32, #tpu.memory_space<vmem>>, vector<1x32xf32>
    %168 = vector.broadcast %167 : vector<1x32xf32> to vector<8x32xf32>
    %169 = arith.addf %166, %168 : vector<8x32xf32>
    %170 = arith.addf %131, %169 : vector<8x32xf32>
    %c0_59 = arith.constant 0 : index
    %c0_60 = arith.constant 0 : index
    %c0_61 = arith.constant 0 : index
    %171 = vector.load %arg18[%c0_59, %c0_60, %c0_61] : memref<1x8x32xf32, #tpu.memory_space<vmem>>, vector<1x8x32xf32>
    %172 = vector.shape_cast %171 : vector<1x8x32xf32> to vector<8x32xf32>
    %173 = vector.shape_cast %170 : vector<8x32xf32> to vector<1x8x32xf32>
    tpu.vector_store %arg18[%c0_59, %c0_60, %c0_61], %173 {strides = array<i32>} : memref<1x8x32xf32, #tpu.memory_space<vmem>>, vector<1x8x32xf32>,
    return
  }
  func.func @transform_0(%arg0: i32, %arg1: i32) -> (i32, i32, i32) {
    %c0_i32 = arith.constant 0 : i32
    %c0_i32_0 = arith.constant 0 : i32
    return %arg0, %arg1, %c0_i32 : i32, i32, i32
  }
  func.func @transform_1(%arg0: i32, %arg1: i32) -> (i32, i32, i32) {
    %c0_i32 = arith.constant 0 : i32
    %c0_i32_0 = arith.constant 0 : i32
    %c0_i32_1 = arith.constant 0 : i32
    return %arg0, %c0_i32, %c0_i32_0 : i32, i32, i32
  }
  func.func @transform_2(%arg0: i32, %arg1: i32) -> (i32, i32) {
    %c0_i32 = arith.constant 0 : i32
    %c0_i32_0 = arith.constant 0 : i32
    %c0_i32_1 = arith.constant 0 : i32
    return %c0_i32, %c0_i32_0 : i32, i32
  }
  func.func @transform_3(%arg0: i32, %arg1: i32) -> (i32, i32) {
    %c0_i32 = arith.constant 0 : i32
    %c0_i32_0 = arith.constant 0 : i32
    %c0_i32_1 = arith.constant 0 : i32
    return %c0_i32, %c0_i32_0 : i32, i32
  }
  func.func @transform_4(%arg0: i32, %arg1: i32) -> (i32, i32) {
    %c0_i32 = arith.constant 0 : i32
    %c0_i32_0 = arith.constant 0 : i32
    %c0_i32_1 = arith.constant 0 : i32
    return %c0_i32, %c0_i32_0 : i32, i32
  }
  func.func @transform_5(%arg0: i32, %arg1: i32) -> (i32, i32) {
    %c0_i32 = arith.constant 0 : i32
    %c0_i32_0 = arith.constant 0 : i32
    %c0_i32_1 = arith.constant 0 : i32
    return %c0_i32, %c0_i32_0 : i32, i32
  }
  func.func @transform_6(%arg0: i32, %arg1: i32) -> (i32, i32) {
    %c0_i32 = arith.constant 0 : i32
    %c0_i32_0 = arith.constant 0 : i32
    %c0_i32_1 = arith.constant 0 : i32
    return %c0_i32, %c0_i32_0 : i32, i32
  }
  func.func @transform_7(%arg0: i32, %arg1: i32) -> (i32, i32) {
    %c0_i32 = arith.constant 0 : i32
    %c0_i32_0 = arith.constant 0 : i32
    %c0_i32_1 = arith.constant 0 : i32
    return %c0_i32, %c0_i32_0 : i32, i32
  }
  func.func @transform_8(%arg0: i32, %arg1: i32) -> (i32, i32) {
    %c0_i32 = arith.constant 0 : i32
    %c0_i32_0 = arith.constant 0 : i32
    %c0_i32_1 = arith.constant 0 : i32
    return %c0_i32, %c0_i32_0 : i32, i32
  }
  func.func @transform_9(%arg0: i32, %arg1: i32) -> (i32, i32) {
    %c0_i32 = arith.constant 0 : i32
    %c0_i32_0 = arith.constant 0 : i32
    %c0_i32_1 = arith.constant 0 : i32
    return %c0_i32, %c0_i32_0 : i32, i32
  }
  func.func @transform_10(%arg0: i32, %arg1: i32) -> (i32, i32) {
    %c0_i32 = arith.constant 0 : i32
    %c0_i32_0 = arith.constant 0 : i32
    %c0_i32_1 = arith.constant 0 : i32
    return %c0_i32, %c0_i32_0 : i32, i32
  }
  func.func @transform_11(%arg0: i32, %arg1: i32) -> (i32, i32) {
    %c0_i32 = arith.constant 0 : i32
    %c0_i32_0 = arith.constant 0 : i32
    %c0_i32_1 = arith.constant 0 : i32
    return %c0_i32, %c0_i32_0 : i32, i32
  }
  func.func @transform_12(%arg0: i32, %arg1: i32) -> (i32, i32) {
    %c0_i32 = arith.constant 0 : i32
    %c0_i32_0 = arith.constant 0 : i32
    %c0_i32_1 = arith.constant 0 : i32
    return %c0_i32, %c0_i32_0 : i32, i32
  }
  func.func @transform_13(%arg0: i32, %arg1: i32) -> (i32, i32) {
    %c0_i32 = arith.constant 0 : i32
    %c0_i32_0 = arith.constant 0 : i32
    %c0_i32_1 = arith.constant 0 : i32
    return %c0_i32, %c0_i32_0 : i32, i32
  }
  func.func @transform_14(%arg0: i32, %arg1: i32) -> (i32, i32) {
    %c0_i32 = arith.constant 0 : i32
    %c0_i32_0 = arith.constant 0 : i32
    %c0_i32_1 = arith.constant 0 : i32
    return %c0_i32, %c0_i32_0 : i32, i32
  }
  func.func @transform_15(%arg0: i32, %arg1: i32) -> (i32, i32) {
    %c0_i32 = arith.constant 0 : i32
    %c0_i32_0 = arith.constant 0 : i32
    %c0_i32_1 = arith.constant 0 : i32
    return %c0_i32, %c0_i32_0 : i32, i32
  }
  func.func @transform_16(%arg0: i32, %arg1: i32) -> (i32, i32, i32) {
    %c0_i32 = arith.constant 0 : i32
    %c0_i32_0 = arith.constant 0 : i32
    return %arg0, %arg1, %c0_i32 : i32, i32, i32
  }
}

</mosaic_0001>

<llo_original>
// kernel: block_forward.1
$region0: #{block_forward.1}
  #allocation0 [shape = 'u32[]', space=smem, size = 0x4, offset = 0x4, fixed_abs, tag = 'smem constant byte address 0x4 - core index']
  #allocation1 [shape = 'u32[144,128]{1,0:T(1,128)}', space=vmem, size = 0x12000, scoped, tag = 'internal scratch']
  %s0 = inlined_call_operand.vmem [shape: f32[2,16,32], index: 0, kind: input, shape index: {}, may-alias: {0,1}]
  %s1 = inlined_call_operand.vmem [shape: f32[2,16,32], index: 1, kind: input, shape index: {}, may-alias: {0,1}]
  %s2 = inlined_call_operand.vmem [shape: f32[1,32], index: 2, kind: input, shape index: {}]
  %s3 = inlined_call_operand.vmem [shape: f32[1,32], index: 3, kind: input, shape index: {}]
  %s4 = inlined_call_operand.vmem [shape: bf16[32,32], index: 4, kind: input, shape index: {}]
  %s5 = inlined_call_operand.vmem [shape: f32[1,32], index: 5, kind: input, shape index: {}]
  %s6 = inlined_call_operand.vmem [shape: bf16[32,64], index: 6, kind: input, shape index: {}]
  %s7 = inlined_call_operand.vmem [shape: f32[1,64], index: 7, kind: input, shape index: {}]
  %s8 = inlined_call_operand.vmem [shape: bf16[32,32], index: 8, kind: input, shape index: {}]
  %s9 = inlined_call_operand.vmem [shape: f32[1,32], index: 9, kind: input, shape index: {}]
  %s10 = inlined_call_operand.vmem [shape: f32[1,32], index: 10, kind: input, shape index: {}]
  %s11 = inlined_call_operand.vmem [shape: f32[1,32], index: 11, kind: input, shape index: {}]
  %s12 = inlined_call_operand.vmem [shape: bf16[32,64], index: 12, kind: input, shape index: {}]
  %s13 = inlined_call_operand.vmem [shape: f32[1,64], index: 13, kind: input, shape index: {}]
  %s14 = inlined_call_operand.vmem [shape: bf16[64,32], index: 14, kind: input, shape index: {}]
  %s15 = inlined_call_operand.vmem [shape: f32[1,32], index: 15, kind: input, shape index: {}]
  %s16 = inlined_call_operand.hbm [shape: f32[2,16,32], index: 16, kind: output, shape index: {}]
  %s17 = sld [smem:[#allocation0]]
  $region97: #{block_forward.1} parent=0
    _
  %s19 = ssub.s32 1, %s17
  %s20 = scalar_select 0, %s19, %s17
  $region1: #{block_forward.1} parent=0
    #allocation2 [shape = 'u8[8192]{0}', space=vmem, size = 0x2000, scoped, tag = 'output window, operand 0']
    #allocation3 [shape = 's32[2]{0}', space=sflag, size = 0x8, scoped, tag = 'scoped memory for block_forward.1']
    %21 = vsyncpa [#allocation3], 0
    %s22 = scalar_lea.sflag [#allocation3], 1
    %23 = vsyncpa %s22, 0
    loop: start=0, step=1, limit=6
    $region2: #{block_forward.1} parent=1 // loop_pre_header
      _
    $region3: #{block_forward.1} parent=1 // loop_header
      %s25 = sphi 0, %s29
      %p26 = scmp.ge.s32.totalorder %s25, 6
      %s32 = sphi 0, %s44
      %s33 = sphi 0, %s40
      %s34 = sphi 0, %s32
      %s35 = sphi 0, %s33
      %s36 = sphi 0, %s34
      %s37 = sphi 0, %s35
      %s49 = sphi 0, %s51
      %s52 = sphi 0, %s49
      %s53 = sphi 0, %s52
      %s69 = sphi 0, %s53
      %s75 = sphi 0, %s77
      %s78 = sphi 0, %s75
      %s79 = sphi 0, %s78
      %s95 = sphi 0, %s79
      %s99 = sphi 0, %s99
      %s101 = sphi 0, %s99
      %s102 = sphi 0, %s101
      %s116 = sphi 0, %s102
      %s120 = sphi 0, %s120
      %s122 = sphi 0, %s120
      %s123 = sphi 0, %s122
      %s137 = sphi 0, %s123
      %s141 = sphi 0, %s141
      %s143 = sphi 0, %s141
      %s144 = sphi 0, %s143
      %s158 = sphi 0, %s144
      %s162 = sphi 0, %s162
      %s164 = sphi 0, %s162
      %s165 = sphi 0, %s164
      %s179 = sphi 0, %s165
      %s183 = sphi 0, %s183
      %s185 = sphi 0, %s183
      %s186 = sphi 0, %s185
      %s200 = sphi 0, %s186
      %s204 = sphi 0, %s204
      %s206 = sphi 0, %s204
      %s207 = sphi 0, %s206
      %s221 = sphi 0, %s207
      %s225 = sphi 0, %s225
      %s227 = sphi 0, %s225
      %s228 = sphi 0, %s227
      %s242 = sphi 0, %s228
      %s246 = sphi 0, %s246
      %s248 = sphi 0, %s246
      %s249 = sphi 0, %s248
      %s263 = sphi 0, %s249
      %s267 = sphi 0, %s267
      %s269 = sphi 0, %s267
      %s270 = sphi 0, %s269
      %s284 = sphi 0, %s270
      %s288 = sphi 0, %s288
      %s290 = sphi 0, %s288
      %s291 = sphi 0, %s290
      %s305 = sphi 0, %s291
      %s309 = sphi 0, %s309
      %s311 = sphi 0, %s309
      %s312 = sphi 0, %s311
      %s326 = sphi 0, %s312
      %s330 = sphi 0, %s330
      %s332 = sphi 0, %s330
      %s333 = sphi 0, %s332
      %s347 = sphi 0, %s333
      %s351 = sphi 0, %s351
      %s353 = sphi 0, %s351
      %s354 = sphi 0, %s353
      %s368 = sphi 0, %s354
      %s372 = sphi 0, %s372
      %s374 = sphi 0, %s372
      %s375 = sphi 0, %s374
      %s389 = sphi 0, %s375
      %s397 = sphi 0, %s399
      %s400 = sphi 0, %s397
      %s401 = sphi 0, %s400
      %s417 = sphi 0, %s401
    $region4: #{block_forward.1} parent=1 // loop_header_branch
      %28 = sbr.rel (%p26) target = $region8
    $region5: #{block_forward.1} parent=1 // loop_body
      %s30 = ssub.s32 %s25, 1
      %s31 = ssub.s32 %s25, 2
      %s38 = sadd.s32 1, %s33
      %p39 = scmp.ge.s32.totalorder %s38, 2
      %s40 = scalar_select %p39, 0, %s38
      %s41 = sadd.s32 1, %s32
      %s42 = scalar_select %p39, %s41, %s32
      %p43 = scmp.ge.s32.totalorder %s42, 2
      %s44 = scalar_select %p43, 0, %s42
      %s45 = ssub.s32 %s32, %s44
      %s46 = ssub.s32 %s33, %s40
      %s47 = sor.u32 %s45, %s46
      %p48 = scmp.eq.s32.totalorder %s47, 0
      %s50 = sadd.s32 %s49, 1
      %s51 = scalar_select %p48, %s49, %s50
      %p54 = pneg %p48
      %p55 = scmp.eq.s32.totalorder %s25, 3
      %p56 = por %p54, %p55
      %p57 = scmp.ne.s32.totalorder %s49, %s52
      %p58 = scmp.eq.s32.totalorder %s25, 0
      %p59 = por %p57, %p58
      %p60 = scmp.ne.s32.totalorder %s49, %s52
      %p61 = scmp.eq.s32.totalorder %s30, 3
      %p62 = por %p60, %p61
      %p63 = scmp.ne.s32.totalorder %s52, %s53
      %p64 = scmp.eq.s32.totalorder %s30, 0
      %p65 = por %p63, %p64
      %p66 = scmp.ne.s32.totalorder %s52, %s53
      %p67 = scmp.eq.s32.totalorder %s31, 3
      %p68 = por %p66, %p67
      %p70 = scmp.ne.s32.totalorder %s53, %s69
      %p71 = scmp.eq.s32.totalorder %s31, 0
      %p72 = por %p70, %p71
      %s73 = ssub.s32 %s32, %s44
      %p74 = scmp.eq.s32.totalorder %s73, 0
      %s76 = sadd.s32 %s75, 1
      %s77 = scalar_select %p74, %s75, %s76
      %p80 = pneg %p74
      %p81 = scmp.eq.s32.totalorder %s25, 3
      %p82 = por %p80, %p81
      %p83 = scmp.ne.s32.totalorder %s75, %s78
      %p84 = scmp.eq.s32.totalorder %s25, 0
      %p85 = por %p83, %p84
      %p86 = scmp.ne.s32.totalorder %s75, %s78
      %p87 = scmp.eq.s32.totalorder %s30, 3
      %p88 = por %p86, %p87
      %p89 = scmp.ne.s32.totalorder %s78, %s79
      %p90 = scmp.eq.s32.totalorder %s30, 0
      %p91 = por %p89, %p90
      %p92 = scmp.ne.s32.totalorder %s78, %s79
      %p93 = scmp.eq.s32.totalorder %s31, 3
      %p94 = por %p92, %p93
      %p96 = scmp.ne.s32.totalorder %s79, %s95
      %p97 = scmp.eq.s32.totalorder %s31, 0
      %p98 = por %p96, %p97
      %s100 = sadd.s32 %s99, 1
      %p103 = scmp.eq.s32.totalorder %s25, 3
      %p104 = scmp.ne.s32.totalorder %s99, %s101
      %p105 = scmp.eq.s32.totalorder %s25, 0
      %p106 = por %p104, %p105
      %p107 = scmp.ne.s32.totalorder %s99, %s101
      %p108 = scmp.eq.s32.totalorder %s30, 3
      %p109 = por %p107, %p108
      %p110 = scmp.ne.s32.totalorder %s101, %s102
      %p111 = scmp.eq.s32.totalorder %s30, 0
      %p112 = por %p110, %p111
      %p113 = scmp.ne.s32.totalorder %s101, %s102
      %p114 = scmp.eq.s32.totalorder %s31, 3
      %p115 = por %p113, %p114
      %p117 = scmp.ne.s32.totalorder %s102, %s116
      %p118 = scmp.eq.s32.totalorder %s31, 0
      %p119 = por %p117, %p118
      %s121 = sadd.s32 %s120, 1
      %p124 = scmp.eq.s32.totalorder %s25, 3
      %p125 = scmp.ne.s32.totalorder %s120, %s122
      %p126 = scmp.eq.s32.totalorder %s25, 0
      %p127 = por %p125, %p126
      %p128 = scmp.ne.s32.totalorder %s120, %s122
      %p129 = scmp.eq.s32.totalorder %s30, 3
      %p130 = por %p128, %p129
      %p131 = scmp.ne.s32.totalorder %s122, %s123
      %p132 = scmp.eq.s32.totalorder %s30, 0
      %p133 = por %p131, %p132
      %p134 = scmp.ne.s32.totalorder %s122, %s123
      %p135 = scmp.eq.s32.totalorder %s31, 3
      %p136 = por %p134, %p135
      %p138 = scmp.ne.s32.totalorder %s123, %s137
      %p139 = scmp.eq.s32.totalorder %s31, 0
      %p140 = por %p138, %p139
      %s142 = sadd.s32 %s141, 1
      %p145 = scmp.eq.s32.totalorder %s25, 3
      %p146 = scmp.ne.s32.totalorder %s141, %s143
      %p147 = scmp.eq.s32.totalorder %s25, 0
      %p148 = por %p146, %p147
      %p149 = scmp.ne.s32.totalorder %s141, %s143
      %p150 = scmp.eq.s32.totalorder %s30, 3
      %p151 = por %p149, %p150
      %p152 = scmp.ne.s32.totalorder %s143, %s144
      %p153 = scmp.eq.s32.totalorder %s30, 0
      %p154 = por %p152, %p153
      %p155 = scmp.ne.s32.totalorder %s143, %s144
      %p156 = scmp.eq.s32.totalorder %s31, 3
      %p157 = por %p155, %p156
      %p159 = scmp.ne.s32.totalorder %s144, %s158
      %p160 = scmp.eq.s32.totalorder %s31, 0
      %p161 = por %p159, %p160
      %s163 = sadd.s32 %s162, 1
      %p166 = scmp.eq.s32.totalorder %s25, 3
      %p167 = scmp.ne.s32.totalorder %s162, %s164
      %p168 = scmp.eq.s32.totalorder %s25, 0
      %p169 = por %p167, %p168
      %p170 = scmp.ne.s32.totalorder %s162, %s164
      %p171 = scmp.eq.s32.totalorder %s30, 3
      %p172 = por %p170, %p171
      %p173 = scmp.ne.s32.totalorder %s164, %s165
      %p174 = scmp.eq.s32.totalorder %s30, 0
      %p175 = por %p173, %p174
      %p176 = scmp.ne.s32.totalorder %s164, %s165
      %p177 = scmp.eq.s32.totalorder %s31, 3
      %p178 = por %p176, %p177
      %p180 = scmp.ne.s32.totalorder %s165, %s179
      %p181 = scmp.eq.s32.totalorder %s31, 0
      %p182 = por %p180, %p181
      %s184 = sadd.s32 %s183, 1
      %p187 = scmp.eq.s32.totalorder %s25, 3
      %p188 = scmp.ne.s32.totalorder %s183, %s185
      %p189 = scmp.eq.s32.totalorder %s25, 0
      %p190 = por %p188, %p189
      %p191 = scmp.ne.s32.totalorder %s183, %s185
      %p192 = scmp.eq.s32.totalorder %s30, 3
      %p193 = por %p191, %p192
      %p194 = scmp.ne.s32.totalorder %s185, %s186
      %p195 = scmp.eq.s32.totalorder %s30, 0
      %p196 = por %p194, %p195
      %p197 = scmp.ne.s32.totalorder %s185, %s186
      %p198 = scmp.eq.s32.totalorder %s31, 3
      %p199 = por %p197, %p198
      %p201 = scmp.ne.s32.totalorder %s186, %s200
      %p202 = scmp.eq.s32.totalorder %s31, 0
      %p203 = por %p201, %p202
      %s205 = sadd.s32 %s204, 1
      %p208 = scmp.eq.s32.totalorder %s25, 3
      %p209 = scmp.ne.s32.totalorder %s204, %s206
      %p210 = scmp.eq.s32.totalorder %s25, 0
      %p211 = por %p209, %p210
      %p212 = scmp.ne.s32.totalorder %s204, %s206
      %p213 = scmp.eq.s32.totalorder %s30, 3
      %p214 = por %p212, %p213
      %p215 = scmp.ne.s32.totalorder %s206, %s207
      %p216 = scmp.eq.s32.totalorder %s30, 0
      %p217 = por %p215, %p216
      %p218 = scmp.ne.s32.totalorder %s206, %s207
      %p219 = scmp.eq.s32.totalorder %s31, 3
      %p220 = por %p218, %p219
      %p222 = scmp.ne.s32.totalorder %s207, %s221
      %p223 = scmp.eq.s32.totalorder %s31, 0
      %p224 = por %p222, %p223
      %s226 = sadd.s32 %s225, 1
      %p229 = scmp.eq.s32.totalorder %s25, 3
      %p230 = scmp.ne.s32.totalorder %s225, %s227
      %p231 = scmp.eq.s32.totalorder %s25, 0
      %p232 = por %p230, %p231
      %p233 = scmp.ne.s32.totalorder %s225, %s227
      %p234 = scmp.eq.s32.totalorder %s30, 3
      %p235 = por %p233, %p234
      %p236 = scmp.ne.s32.totalorder %s227, %s228
      %p237 = scmp.eq.s32.totalorder %s30, 0
      %p238 = por %p236, %p237
      %p239 = scmp.ne.s32.totalorder %s227, %s228
      %p240 = scmp.eq.s32.totalorder %s31, 3
      %p241 = por %p239, %p240
      %p243 = scmp.ne.s32.totalorder %s228, %s242
      %p244 = scmp.eq.s32.totalorder %s31, 0
      %p245 = por %p243, %p244
      %s247 = sadd.s32 %s246, 1
      %p250 = scmp.eq.s32.totalorder %s25, 3
      %p251 = scmp.ne.s32.totalorder %s246, %s248
      %p252 = scmp.eq.s32.totalorder %s25, 0
      %p253 = por %p251, %p252
      %p254 = scmp.ne.s32.totalorder %s246, %s248
      %p255 = scmp.eq.s32.totalorder %s30, 3
      %p256 = por %p254, %p255
      %p257 = scmp.ne.s32.totalorder %s248, %s249
      %p258 = scmp.eq.s32.totalorder %s30, 0
      %p259 = por %p257, %p258
      %p260 = scmp.ne.s32.totalorder %s248, %s249
      %p261 = scmp.eq.s32.totalorder %s31, 3
      %p262 = por %p260, %p261
      %p264 = scmp.ne.s32.totalorder %s249, %s263
      %p265 = scmp.eq.s32.totalorder %s31, 0
      %p266 = por %p264, %p265
      %s268 = sadd.s32 %s267, 1
      %p271 = scmp.eq.s32.totalorder %s25, 3
      %p272 = scmp.ne.s32.totalorder %s267, %s269
      %p273 = scmp.eq.s32.totalorder %s25, 0
      %p274 = por %p272, %p273
      %p275 = scmp.ne.s32.totalorder %s267, %s269
      %p276 = scmp.eq.s32.totalorder %s30, 3
      %p277 = por %p275, %p276
      %p278 = scmp.ne.s32.totalorder %s269, %s270
      %p279 = scmp.eq.s32.totalorder %s30, 0
      %p280 = por %p278, %p279
      %p281 = scmp.ne.s32.totalorder %s269, %s270
      %p282 = scmp.eq.s32.totalorder %s31, 3
      %p283 = por %p281, %p282
      %p285 = scmp.ne.s32.totalorder %s270, %s284
      %p286 = scmp.eq.s32.totalorder %s31, 0
      %p287 = por %p285, %p286
      %s289 = sadd.s32 %s288, 1
      %p292 = scmp.eq.s32.totalorder %s25, 3
      %p293 = scmp.ne.s32.totalorder %s288, %s290
      %p294 = scmp.eq.s32.totalorder %s25, 0
      %p295 = por %p293, %p294
      %p296 = scmp.ne.s32.totalorder %s288, %s290
      %p297 = scmp.eq.s32.totalorder %s30, 3
      %p298 = por %p296, %p297
      %p299 = scmp.ne.s32.totalorder %s290, %s291
      %p300 = scmp.eq.s32.totalorder %s30, 0
      %p301 = por %p299, %p300
      %p302 = scmp.ne.s32.totalorder %s290, %s291
      %p303 = scmp.eq.s32.totalorder %s31, 3
      %p304 = por %p302, %p303
      %p306 = scmp.ne.s32.totalorder %s291, %s305
      %p307 = scmp.eq.s32.totalorder %s31, 0
      %p308 = por %p306, %p307
      %s310 = sadd.s32 %s309, 1
      %p313 = scmp.eq.s32.totalorder %s25, 3
      %p314 = scmp.ne.s32.totalorder %s309, %s311
      %p315 = scmp.eq.s32.totalorder %s25, 0
      %p316 = por %p314, %p315
      %p317 = scmp.ne.s32.totalorder %s309, %s311
      %p318 = scmp.eq.s32.totalorder %s30, 3
      %p319 = por %p317, %p318
      %p320 = scmp.ne.s32.totalorder %s311, %s312
      %p321 = scmp.eq.s32.totalorder %s30, 0
      %p322 = por %p320, %p321
      %p323 = scmp.ne.s32.totalorder %s311, %s312
      %p324 = scmp.eq.s32.totalorder %s31, 3
      %p325 = por %p323, %p324
      %p327 = scmp.ne.s32.totalorder %s312, %s326
      %p328 = scmp.eq.s32.totalorder %s31, 0
      %p329 = por %p327, %p328
      %s331 = sadd.s32 %s330, 1
      %p334 = scmp.eq.s32.totalorder %s25, 3
      %p335 = scmp.ne.s32.totalorder %s330, %s332
      %p336 = scmp.eq.s32.totalorder %s25, 0
      %p337 = por %p335, %p336
      %p338 = scmp.ne.s32.totalorder %s330, %s332
      %p339 = scmp.eq.s32.totalorder %s30, 3
      %p340 = por %p338, %p339
      %p341 = scmp.ne.s32.totalorder %s332, %s333
      %p342 = scmp.eq.s32.totalorder %s30, 0
      %p343 = por %p341, %p342
      %p344 = scmp.ne.s32.totalorder %s332, %s333
      %p345 = scmp.eq.s32.totalorder %s31, 3
      %p346 = por %p344, %p345
      %p348 = scmp.ne.s32.totalorder %s333, %s347
      %p349 = scmp.eq.s32.totalorder %s31, 0
      %p350 = por %p348, %p349
      %s352 = sadd.s32 %s351, 1
      %p355 = scmp.eq.s32.totalorder %s25, 3
      %p356 = scmp.ne.s32.totalorder %s351, %s353
      %p357 = scmp.eq.s32.totalorder %s25, 0
      %p358 = por %p356, %p357
      %p359 = scmp.ne.s32.totalorder %s351, %s353
      %p360 = scmp.eq.s32.totalorder %s30, 3
      %p361 = por %p359, %p360
      %p362 = scmp.ne.s32.totalorder %s353, %s354
      %p363 = scmp.eq.s32.totalorder %s30, 0
      %p364 = por %p362, %p363
      %p365 = scmp.ne.s32.totalorder %s353, %s354
      %p366 = scmp.eq.s32.totalorder %s31, 3
      %p367 = por %p365, %p366
      %p369 = scmp.ne.s32.totalorder %s354, %s368
      %p370 = scmp.eq.s32.totalorder %s31, 0
      %p371 = por %p369, %p370
      %s373 = sadd.s32 %s372, 1
      %p376 = scmp.eq.s32.totalorder %s25, 3
      %p377 = scmp.ne.s32.totalorder %s372, %s374
      %p378 = scmp.eq.s32.totalorder %s25, 0
      %p379 = por %p377, %p378
      %p380 = scmp.ne.s32.totalorder %s372, %s374
      %p381 = scmp.eq.s32.totalorder %s30, 3
      %p382 = por %p380, %p381
      %p383 = scmp.ne.s32.totalorder %s374, %s375
      %p384 = scmp.eq.s32.totalorder %s30, 0
      %p385 = por %p383, %p384
      %p386 = scmp.ne.s32.totalorder %s374, %s375
      %p387 = scmp.eq.s32.totalorder %s31, 3
      %p388 = por %p386, %p387
      %p390 = scmp.ne.s32.totalorder %s375, %s389
      %p391 = scmp.eq.s32.totalorder %s31, 0
      %p392 = por %p390, %p391
      %s393 = ssub.s32 %s32, %s44
      %s394 = ssub.s32 %s33, %s40
      %s395 = sor.u32 %s393, %s394
      %p396 = scmp.eq.s32.totalorder %s395, 0
      %s398 = sadd.s32 %s397, 1
      %s399 = scalar_select %p396, %s397, %s398
      %p402 = pneg %p396
      %p403 = scmp.eq.s32.totalorder %s25, 3
      %p404 = por %p402, %p403
      %p405 = scmp.ne.s32.totalorder %s397, %s400
      %p406 = scmp.eq.s32.totalorder %s25, 0
      %p407 = por %p405, %p406
      %p408 = scmp.ne.s32.totalorder %s397, %s400
      %p409 = scmp.eq.s32.totalorder %s30, 3
      %p410 = por %p408, %p409
      %p411 = scmp.ne.s32.totalorder %s400, %s401
      %p412 = scmp.eq.s32.totalorder %s30, 0
      %p413 = por %p411, %p412
      %p414 = scmp.ne.s32.totalorder %s400, %s401
      %p415 = scmp.eq.s32.totalorder %s31, 3
      %p416 = por %p414, %p415
      %p418 = scmp.ne.s32.totalorder %s401, %s417
      %p419 = scmp.eq.s32.totalorder %s31, 0
      %p420 = por %p418, %p419
      %p421 = scmp.le.s32.totalorder 1, %s25
      %p422 = scmp.lt.s32.totalorder %s25, 5
      %p423 = pnand %p421, %p422
      %p424 = pneg %p423
      // Predicated region
      $region9: #{block_forward.1} parent=5 // pred_check
        _
      $region10: #{block_forward.1} parent=5 // pred_check_branch
        %426 = sbr.rel (%p423) target = $region12
      $region11: #{block_forward.1} parent=5 // pred_region
        %s427 = ssub.s32 %s25, 1
        // Predicated region
        $region13: #{block_forward.1} parent=11 // pred_check
          %p428 = pneg %p112
        $region14: #{block_forward.1} parent=11 // pred_check_branch
          %430 = sbr.rel (%p428) target = $region16
        $region15: #{block_forward.1} parent=11 // pred_region
          _
        $region16: #{block_forward.1} parent=11 // pred_fallthru
          _
        // Predicated region
        $region17: #{block_forward.1} parent=11 // pred_check
          %p431 = pneg %p133
        $region18: #{block_forward.1} parent=11 // pred_check_branch
          %433 = sbr.rel (%p431) target = $region20
        $region19: #{block_forward.1} parent=11 // pred_region
          _
        $region20: #{block_forward.1} parent=11 // pred_fallthru
          _
        // Predicated region
        $region21: #{block_forward.1} parent=11 // pred_check
          %p434 = pneg %p154
        $region22: #{block_forward.1} parent=11 // pred_check_branch
          %436 = sbr.rel (%p434) target = $region24
        $region23: #{block_forward.1} parent=11 // pred_region
          _
        $region24: #{block_forward.1} parent=11 // pred_fallthru
          _
        // Predicated region
        $region25: #{block_forward.1} parent=11 // pred_check
          %p437 = pneg %p175
        $region26: #{block_forward.1} parent=11 // pred_check_branch
          %439 = sbr.rel (%p437) target = $region28
        $region27: #{block_forward.1} parent=11 // pred_region
          _
        $region28: #{block_forward.1} parent=11 // pred_fallthru
          _
        // Predicated region
        $region29: #{block_forward.1} parent=11 // pred_check
          %p440 = pneg %p196
        $region30: #{block_forward.1} parent=11 // pred_check_branch
          %442 = sbr.rel (%p440) target = $region32
        $region31: #{block_forward.1} parent=11 // pred_region
          _
        $region32: #{block_forward.1} parent=11 // pred_fallthru
          _
        // Predicated region
        $region33: #{block_forward.1} parent=11 // pred_check
          %p443 = pneg %p217
        $region34: #{block_forward.1} parent=11 // pred_check_branch
          %445 = sbr.rel (%p443) target = $region36
        $region35: #{block_forward.1} parent=11 // pred_region
          _
        $region36: #{block_forward.1} parent=11 // pred_fallthru
          _
        // Predicated region
        $region37: #{block_forward.1} parent=11 // pred_check
          %p446 = pneg %p238
        $region38: #{block_forward.1} parent=11 // pred_check_branch
          %448 = sbr.rel (%p446) target = $region40
        $region39: #{block_forward.1} parent=11 // pred_region
          _
        $region40: #{block_forward.1} parent=11 // pred_fallthru
          _
        // Predicated region
        $region41: #{block_forward.1} parent=11 // pred_check
          %p449 = pneg %p259
        $region42: #{block_forward.1} parent=11 // pred_check_branch
          %451 = sbr.rel (%p449) target = $region44
        $region43: #{block_forward.1} parent=11 // pred_region
          _
        $region44: #{block_forward.1} parent=11 // pred_fallthru
          _
        // Predicated region
        $region45: #{block_forward.1} parent=11 // pred_check
          %p452 = pneg %p280
        $region46: #{block_forward.1} parent=11 // pred_check_branch
          %454 = sbr.rel (%p452) target = $region48
        $region47: #{block_forward.1} parent=11 // pred_region
          _
        $region48: #{block_forward.1} parent=11 // pred_fallthru
          _
        // Predicated region
        $region49: #{block_forward.1} parent=11 // pred_check
          %p455 = pneg %p301
        $region50: #{block_forward.1} parent=11 // pred_check_branch
          %457 = sbr.rel (%p455) target = $region52
        $region51: #{block_forward.1} parent=11 // pred_region
          _
        $region52: #{block_forward.1} parent=11 // pred_fallthru
          _
        // Predicated region
        $region53: #{block_forward.1} parent=11 // pred_check
          %p458 = pneg %p322
        $region54: #{block_forward.1} parent=11 // pred_check_branch
          %460 = sbr.rel (%p458) target = $region56
        $region55: #{block_forward.1} parent=11 // pred_region
          _
        $region56: #{block_forward.1} parent=11 // pred_fallthru
          _
        // Predicated region
        $region57: #{block_forward.1} parent=11 // pred_check
          %p461 = pneg %p343
        $region58: #{block_forward.1} parent=11 // pred_check_branch
          %463 = sbr.rel (%p461) target = $region60
        $region59: #{block_forward.1} parent=11 // pred_region
          _
        $region60: #{block_forward.1} parent=11 // pred_fallthru
          _
        // Predicated region
        $region61: #{block_forward.1} parent=11 // pred_check
          %p464 = pneg %p364
        $region62: #{block_forward.1} parent=11 // pred_check_branch
          %466 = sbr.rel (%p464) target = $region64
        $region63: #{block_forward.1} parent=11 // pred_region
          _
        $region64: #{block_forward.1} parent=11 // pred_fallthru
          _
        // Predicated region
        $region65: #{block_forward.1} parent=11 // pred_check
          %p467 = pneg %p385
        $region66: #{block_forward.1} parent=11 // pred_check_branch
          %469 = sbr.rel (%p467) target = $region68
        $region67: #{block_forward.1} parent=11 // pred_region
          _
        $region68: #{block_forward.1} parent=11 // pred_fallthru
          _
      $region12: #{block_forward.1} parent=5 // pred_fallthru
        _
      %p470 = scmp.lt.s32.totalorder %s25, 4
      // Predicated region
      $region69: #{block_forward.1} parent=5 // pred_check
        %p471 = pneg %p470
      $region70: #{block_forward.1} parent=5 // pred_check_branch
        %473 = sbr.rel (%p471) target = $region72
      $region71: #{block_forward.1} parent=5 // pred_region
        // Predicated region
        $region73: #{block_forward.1} parent=71 // pred_check
          %p474 = pneg %p59
        $region74: #{block_forward.1} parent=71 // pred_check_branch
          %476 = sbr.rel (%p474) target = $region76
        $region75: #{block_forward.1} parent=71 // pred_region
          %p477 = scmp.lt.s32.totalorder %s32, 1
          %s478 = scalar_select %p477, %s32, 1
          %p479 = scmp.lt.s32.totalorder %s33, 1
          %s480 = scalar_select %p479, %s33, 1
          %s481 = smul.addr %s478, 2
          %s482 = sadd.s32 %s480, %s481
          %s483 = smul.addr %s482, 8
          %s484 = scalar_lea.vmem %s0, %s483
        $region76: #{block_forward.1} parent=71 // pred_fallthru
          _
        // Predicated region
        $region77: #{block_forward.1} parent=71 // pred_check
          %p485 = pneg %p85
        $region78: #{block_forward.1} parent=71 // pred_check_branch
          %487 = sbr.rel (%p485) target = $region80
        $region79: #{block_forward.1} parent=71 // pred_region
          %p488 = scmp.lt.s32.totalorder %s32, 1
          %s489 = scalar_select %p488, %s32, 1
          %s490 = smul.addr %s489, 2
          %s491 = smul.addr %s490, 8
          %s492 = scalar_lea.vmem %s1, %s491
        $region80: #{block_forward.1} parent=71 // pred_fallthru
          _
      $region72: #{block_forward.1} parent=5 // pred_fallthru
        _
      %p493 = scmp.le.s32.totalorder 1, %s25
      %p494 = scmp.lt.s32.totalorder %s25, 5
      %p495 = pnand %p493, %p494
      %p496 = pneg %p495
      // Predicated region
      $region81: #{block_forward.1} parent=5 // pred_check
        _
      $region82: #{block_forward.1} parent=5 // pred_check_branch
        %498 = sbr.rel (%p495) target = $region84
      $region83: #{block_forward.1} parent=5 // pred_region
        %s499 = ssub.s32 %s25, 1
        %p500 = scmp.lt.s32.totalorder %s34, 1
        %s501 = scalar_select %p500, %s34, 1
        %p502 = scmp.lt.s32.totalorder %s35, 1
        %s503 = scalar_select %p502, %s35, 1
        %s504 = smul.addr %s501, 2
        %s505 = sadd.s32 %s503, %s504
        %s506 = smul.addr %s505, 8
        %s507 = scalar_lea.vmem %s0, %s506
        %p508 = pneg %p65
        %p509 = pneg %p62
        %p510 = scmp.lt.s32.totalorder %s34, 1
        %s511 = scalar_select %p510, %s34, 1
        %s512 = smul.addr %s511, 2
        %s513 = smul.addr %s512, 8
        %s514 = scalar_lea.vmem %s1, %s513
        %p515 = pneg %p91
        %p516 = pneg %p88
        %p517 = pneg %p112
        %p518 = pneg %p109
        %p519 = pneg %p133
        %p520 = pneg %p130
        %p521 = pneg %p154
        %p522 = pneg %p151
        %p523 = pneg %p175
        %p524 = pneg %p172
        %p525 = pneg %p196
        %p526 = pneg %p193
        %p527 = pneg %p217
        %p528 = pneg %p214
        %p529 = pneg %p238
        %p530 = pneg %p235
        %p531 = pneg %p259
        %p532 = pneg %p256
        %p533 = pneg %p280
        %p534 = pneg %p277
        %p535 = pneg %p301
        %p536 = pneg %p298
        %p537 = pneg %p322
        %p538 = pneg %p319
        %p539 = pneg %p343
        %p540 = pneg %p340
        %p541 = pneg %p364
        %p542 = pneg %p361
        %p543 = pneg %p385
        %p544 = pneg %p382
        %p545 = pneg %p413
        %p546 = pneg %p410
        %s547 = sand.u32 %s400, 1
        %s548 = scalar_lea.sflag [#allocation3], %s547
        %s549 = sand.u32 %s400, 1
        %s550 = smul.addr %s549, 8
        %s551 = scalar_lea.vmem [#allocation2], %s550
        %p552 = scmp.lt.s32.totalorder %s34, 1
        %s553 = scalar_select %p552, %s34, 1
        %p554 = scmp.lt.s32.totalorder %s35, 1
        %s555 = scalar_select %p554, %s35, 1
        %s556 = smul.addr %s553, 2
        %s557 = sadd.s32 %s555, %s556
        %s558 = smul.addr %s557, 8
        %s559 = scalar_lea.vmem %s0, %s558
        %p560 = scmp.lt.s32.totalorder %s34, 1
        %s561 = scalar_select %p560, %s34, 1
        %s562 = smul.addr %s561, 2
        %s563 = smul.addr %s562, 8
        %s564 = scalar_lea.vmem %s1, %s563
        %v566 = vld [vmem:[%s559] sm:$0xff]
        %v567 = vld [vmem:[%s564] sm:$0xff]
        %v568 = vld [vmem:[%s564 + $0x8] sm:$0xff]
        %v569 = vld [vmem:[%s2] sm:$0x1]
        %v570 = vld [vmem:[%s3] sm:$0x1]
        %vm571 = vcmask 261120
        %v572 = vsel %vm571, %v567, 0.0
        %573 = vadd.xlane.f32.xlu0 %v572
        %v574 = vpop.xlane.xlu0 %573
        %v575 = vsel %vm571, %v568, 0.0
        %576 = vadd.xlane.f32.xlu0 %v575
        %v577 = vpop.xlane.xlu0 %576
        %v578 = vrcp.pop 32.0
        %v579 = vmul.f32 %v574, %v578
        %v580 = vmul.f32 %v577, %v578
        %v581 = vsub.f32 %v567, %v579
        %v582 = vsub.f32 %v568, %v580
        %v583 = vmul.f32 %v581, %v581
        %v584 = vmul.f32 %v582, %v582
        %v585 = vsel %vm571, %v583, 0.0
        %586 = vadd.xlane.f32.xlu0 %v585
        %v587 = vpop.xlane.xlu0 %586
        %v588 = vsel %vm571, %v584, 0.0
        %589 = vadd.xlane.f32.xlu0 %v588
        %v590 = vpop.xlane.xlu0 %589
        %v591 = vmul.f32 %v587, %v578
        %v592 = vmul.f32 %v590, %v578
        %v593 = vadd.f32 %v591, 1e-05
        %v594 = vadd.f32 %v592, 1e-05
        %v595 = vrsqrt.pop %v593
        %v596 = vrsqrt.pop %v594
        %v597 = vmul.f32 %v581, %v595
        %v598 = vmul.f32 %v582, %v596
        %v600 = vlaneseq
        %v601 = vshrl.u32 %v600, 7
        %v602 = vsub.s32 0, %v601
        %v603 = vrot.slane %v569, %v602
        %v605 = vmul.f32 %v597, %v603
        %v606 = vmul.f32 %v598, %v603
        %v608 = vlaneseq
        %v609 = vshrl.u32 %v608, 7
        %v610 = vsub.s32 0, %v609
        %v611 = vrot.slane %v570, %v610
        %v613 = vadd.f32 %v605, %v611
        %v614 = vadd.f32 %v606, %v611
        %v615 = vpack.c.bf16 %v614, %v613
        %v616 = vld [vmem:[%s6] sm:$0xf]
        %v617 = vld [vmem:[%s6 + $0x4] sm:$0xf]
        %v618 = vld [vmem:[%s6 + $0x8] sm:$0xf]
        %v619 = vld [vmem:[%s6 + $0xc] sm:$0xf]
        %v620 = vld [vmem:[%s7] sm:$0x1]
        %v622 = vlaneseq
        %v623 = vshrl.u32 %v622, 7
        %v624 = vsub.s32 0, %v623
        %v625 = vrot.slane %v620, %v624
        %v631 = vunpack.c.l.b16 %v616
        %v632 = vunpack.c.l.b16 %v617
        %v633 = vunpack.c.l.b16 %v618
        %v634 = vunpack.c.l.b16 %v619
        %v635 = vpack.c.b16 %v632, %v631
        %v636 = vpack.c.b16 %v634, %v633
        %v640 = vsel %vm571, %v615, 0
        %642 = vmatprep.subr.bf16.mxu0 0
        %643 = vmatpush1.bf16.msra.mxu0 0
        %644 = vmatprep.subr.bf16.mxu0 0
        %645 = vmatpush1.bf16.msra.mxu0 0
        %646 = vmatprep.subr.bf16.mxu0 0
        %647 = vmatpush1.bf16.msra.mxu0 0
        %648 = vmatprep.subr.bf16.mxu0 0
        %649 = vmatpush1.bf16.msra.mxu0 0
        %650 = vmatprep.subr.bf16.mxu0 0
        %651 = vmatpush1.bf16.msra.mxu0 0
        %652 = vmatprep.subr.bf16.mxu0 0
        %653 = vmatpush1.bf16.msra.mxu0 0
        %654 = vmatprep.subr.bf16.mxu0 0
        %655 = vmatpush1.bf16.msra.mxu0 %v636
        %656 = vmatprep.subr.bf16.mxu0 0
        %657 = vmatpush1.bf16.msra.mxu0 %v635
        %658 = vmatprep.subr.bf16.mxu0 0
        %659 = vmatpush2.bf16.msra.mxu0 0
        %660 = vmatprep.subr.bf16.mxu0 0
        %661 = vmatpush2.bf16.msra.mxu0 0
        %662 = vmatprep.subr.bf16.mxu0 0
        %663 = vmatpush2.bf16.msra.mxu0 0
        %664 = vmatprep.subr.bf16.mxu0 0
        %665 = vmatpush2.bf16.msra.mxu0 0
        %666 = vmatprep.subr.bf16.mxu0 0
        %667 = vmatpush2.bf16.msra.mxu0 0
        %668 = vmatprep.subr.bf16.mxu0 0
        %669 = vmatpush2.bf16.msra.mxu0 0
        %670 = vmatprep.subr.bf16.mxu0 0
        %671 = vmatpush2.bf16.msra.mxu0 0
        %672 = vmatprep.subr.bf16.mxu0 0
        %673 = vmatpush2.bf16.msra.mxu0 0
        %674 = vmatprep.mubr.bf16.mxu0 0
        %675 = vmatmul.mubr.bf16.gmra.mxu0 %v640
        %v676 = vpop.f32.mrf.mxu0
        %v677 = vadd.f32 %v625, %v676
        %v678 = vpop.f32.mrf.mxu0
        %v679 = vpop.f32.mrf.mxu0
        %v680 = vadd.f32 %v625, %v679
        %v681 = vpop.f32.mrf.mxu0
        %682 = vdwg.mxu0
        %v683 = vmax.f32 %v677, 0.0
        %v684 = vmax.f32 %v680, 0.0
        %v685 = vpack.c.bf16 %v684, %v683
        %v686 = vsel %vm571, %v566, 0.0
        %687 = vadd.xlane.f32.xlu0 %v686
        %v688 = vpop.xlane.xlu0 %687
        %v689 = vmul.f32 %v688, %v578
        %v690 = vsub.f32 %v566, %v689
        %v691 = vmul.f32 %v690, %v690
        %v692 = vsel %vm571, %v691, 0.0
        %693 = vadd.xlane.f32.xlu0 %v692
        %v694 = vpop.xlane.xlu0 %693
        %v695 = vmul.f32 %v694, %v578
        %v696 = vadd.f32 %v695, 1e-05
        %v697 = vrsqrt.pop %v696
        %v698 = vmul.f32 %v690, %v697
        %v699 = vmul.f32 %v698, %v603
        %v700 = vadd.f32 %v699, %v611
        %v701 = vpack.c.bf16 %v700, %v700
        %v702 = vld [vmem:[%s4] sm:$0xf]
        %v703 = vld [vmem:[%s4 + $0x4] sm:$0xf]
        %v704 = vld [vmem:[%s4 + $0x8] sm:$0xf]
        %v705 = vld [vmem:[%s4 + $0xc] sm:$0xf]
        %v706 = vld [vmem:[%s5] sm:$0x1]
        %v708 = vlaneseq
        %v709 = vshrl.u32 %v708, 7
        %v710 = vsub.s32 0, %v709
        %v711 = vrot.slane %v706, %v710
        %v717 = vunpack.c.l.b16 %v702
        %v718 = vunpack.c.l.b16 %v703
        %v719 = vunpack.c.l.b16 %v704
        %v720 = vunpack.c.l.b16 %v705
        %v721 = vpack.c.b16 %v718, %v717
        %v722 = vpack.c.b16 %v720, %v719
        %v726 = vsel %vm571, %v701, 0
        %728 = vmatprep.subr.bf16.mxu0 0
        %729 = vmatpush1.bf16.msra.mxu0 0
        %730 = vmatprep.subr.bf16.mxu0 0
        %731 = vmatpush1.bf16.msra.mxu0 0
        %732 = vmatprep.subr.bf16.mxu0 0
        %733 = vmatpush1.bf16.msra.mxu0 0
        %734 = vmatprep.subr.bf16.mxu0 0
        %735 = vmatpush1.bf16.msra.mxu0 0
        %736 = vmatprep.subr.bf16.mxu0 0
        %737 = vmatpush1.bf16.msra.mxu0 0
        %738 = vmatprep.subr.bf16.mxu0 0
        %739 = vmatpush1.bf16.msra.mxu0 0
        %740 = vmatprep.subr.bf16.mxu0 0
        %741 = vmatpush1.bf16.msra.mxu0 %v722
        %742 = vmatprep.subr.bf16.mxu0 0
        %743 = vmatpush1.bf16.msra.mxu0 %v721
        %744 = vmatprep.subr.bf16.mxu0 0
        %745 = vmatpush2.bf16.msra.mxu0 0
        %746 = vmatprep.subr.bf16.mxu0 0
        %747 = vmatpush2.bf16.msra.mxu0 0
        %748 = vmatprep.subr.bf16.mxu0 0
        %749 = vmatpush2.bf16.msra.mxu0 0
        %750 = vmatprep.subr.bf16.mxu0 0
        %751 = vmatpush2.bf16.msra.mxu0 0
        %752 = vmatprep.subr.bf16.mxu0 0
        %753 = vmatpush2.bf16.msra.mxu0 0
        %754 = vmatprep.subr.bf16.mxu0 0
        %755 = vmatpush2.bf16.msra.mxu0 0
        %756 = vmatprep.subr.bf16.mxu0 0
        %757 = vmatpush2.bf16.msra.mxu0 0
        %758 = vmatprep.subr.bf16.mxu0 0
        %759 = vmatpush2.bf16.msra.mxu0 0
        %760 = vmatprep.mubr.bf16.mxu0 0
        %761 = vmatmul.mubr.bf16.gmra.mxu0 %v726
        %v762 = vpop.f32.mrf.mxu0
        %v763 = vadd.f32 %v711, %v762
        %v764 = vpop.f32.mrf.mxu0
        %v765 = vpop.f32.mrf.mxu0
        %v766 = vpop.f32.mrf.mxu0
        %767 = vdwg.mxu0
        %v768 = vmax.f32 %v763, 0.0
        %v769 = vmul.f32 %v768, 0.35355338
        %v770 = vpack.c.bf16 %v769, %v769
        %772 = vrot.lane.b32.xlu0 %v770, 120
        %v773 = vpop.permute.xlu0 %772
        %774 = vrot.lane.b32.xlu0 %v770, 112
        %v775 = vpop.permute.xlu0 %774
        %776 = vrot.lane.b32.xlu0 %v770, 104
        %v777 = vpop.permute.xlu0 %776
        %779 = vrot.lane.b32.xlu0 %v685, 120
        %v780 = vpop.permute.xlu0 %779
        %781 = vrot.lane.b32.xlu0 %v685, 112
        %v782 = vpop.permute.xlu0 %781
        %783 = vrot.lane.b32.xlu0 %v685, 104
        %v784 = vpop.permute.xlu0 %783
        %vm785 = vcmask 64512
        %v787 = vsel %vm785, %v770, 0
        %v790 = vsel %vm785, %v685, 0
        %792 = vmatprep.subr.bf16.mxu0 0
        %793 = vmatpush1.bf16.xpose.msra.mxu0 0
        %794 = vmatprep.subr.bf16.mxu0 0
        %795 = vmatpush1.bf16.xpose.msra.mxu0 0
        %796 = vmatprep.subr.bf16.mxu0 0
        %797 = vmatpush1.bf16.xpose.msra.mxu0 0
        %798 = vmatprep.subr.bf16.mxu0 0
        %799 = vmatpush1.bf16.xpose.msra.mxu0 0
        %800 = vmatprep.subr.bf16.mxu0 0
        %801 = vmatpush1.bf16.xpose.msra.mxu0 0
        %802 = vmatprep.subr.bf16.mxu0 0
        %803 = vmatpush1.bf16.xpose.msra.mxu0 0
        %804 = vmatprep.subr.bf16.mxu0 0
        %805 = vmatpush1.bf16.xpose.msra.mxu0 0
        %806 = vmatprep.subr.bf16.mxu0 0
        %807 = vmatpush1.bf16.xpose.msra.mxu0 %v790
        %808 = vmatprep.subr.bf16.mxu0 0
        %809 = vmatpush2.bf16.xpose.msra.mxu0 0
        %810 = vmatprep.subr.bf16.mxu0 0
        %811 = vmatpush2.bf16.xpose.msra.mxu0 0
        %812 = vmatprep.subr.bf16.mxu0 0
        %813 = vmatpush2.bf16.xpose.msra.mxu0 0
        %814 = vmatprep.subr.bf16.mxu0 0
        %815 = vmatpush2.bf16.xpose.msra.mxu0 0
        %816 = vmatprep.subr.bf16.mxu0 0
        %817 = vmatpush2.bf16.xpose.msra.mxu0 0
        %818 = vmatprep.subr.bf16.mxu0 0
        %819 = vmatpush2.bf16.xpose.msra.mxu0 0
        %820 = vmatprep.subr.bf16.mxu0 0
        %821 = vmatpush2.bf16.xpose.msra.mxu0 0
        %822 = vmatprep.subr.bf16.mxu0 0
        %823 = vmatpush2.bf16.xpose.msra.mxu0 0
        %824 = vmatprep.mubr.bf16.mxu0 0
        %825 = vmatmul.mubr.bf16.gmra.mxu0 %v787
        %v826 = vpop.f32.mrf.mxu0
        %v827 = vadd.f32 0.0, %v826
        %v828 = vpop.f32.mrf.mxu0
        %v829 = vpop.f32.mrf.mxu0
        %v830 = vpop.f32.mrf.mxu0
        %831 = vdwg.mxu0
        %v833 = vsel %vm785, %v773, 0
        %v836 = vsel %vm785, %v780, 0
        %838 = vmatprep.subr.bf16.mxu0 0
        %839 = vmatpush1.bf16.xpose.msra.mxu0 0
        %840 = vmatprep.subr.bf16.mxu0 0
        %841 = vmatpush1.bf16.xpose.msra.mxu0 0
        %842 = vmatprep.subr.bf16.mxu0 0
        %843 = vmatpush1.bf16.xpose.msra.mxu0 0
        %844 = vmatprep.subr.bf16.mxu0 0
        %845 = vmatpush1.bf16.xpose.msra.mxu0 0
        %846 = vmatprep.subr.bf16.mxu0 0
        %847 = vmatpush1.bf16.xpose.msra.mxu0 0
        %848 = vmatprep.subr.bf16.mxu0 0
        %849 = vmatpush1.bf16.xpose.msra.mxu0 0
        %850 = vmatprep.subr.bf16.mxu0 0
        %851 = vmatpush1.bf16.xpose.msra.mxu0 0
        %852 = vmatprep.subr.bf16.mxu0 0
        %853 = vmatpush1.bf16.xpose.msra.mxu0 %v836
        %854 = vmatprep.subr.bf16.mxu0 0
        %855 = vmatpush2.bf16.xpose.msra.mxu0 0
        %856 = vmatprep.subr.bf16.mxu0 0
        %857 = vmatpush2.bf16.xpose.msra.mxu0 0
        %858 = vmatprep.subr.bf16.mxu0 0
        %859 = vmatpush2.bf16.xpose.msra.mxu0 0
        %860 = vmatprep.subr.bf16.mxu0 0
        %861 = vmatpush2.bf16.xpose.msra.mxu0 0
        %862 = vmatprep.subr.bf16.mxu0 0
        %863 = vmatpush2.bf16.xpose.msra.mxu0 0
        %864 = vmatprep.subr.bf16.mxu0 0
        %865 = vmatpush2.bf16.xpose.msra.mxu0 0
        %866 = vmatprep.subr.bf16.mxu0 0
        %867 = vmatpush2.bf16.xpose.msra.mxu0 0
        %868 = vmatprep.subr.bf16.mxu0 0
        %869 = vmatpush2.bf16.xpose.msra.mxu0 0
        %870 = vmatprep.mubr.bf16.mxu0 0
        %871 = vmatmul.mubr.bf16.gmra.mxu0 %v833
        %v872 = vpop.f32.mrf.mxu0
        %v873 = vadd.f32 0.0, %v872
        %v874 = vpop.f32.mrf.mxu0
        %v875 = vpop.f32.mrf.mxu0
        %v876 = vpop.f32.mrf.mxu0
        %877 = vdwg.mxu0
        %v879 = vsel %vm785, %v775, 0
        %v882 = vsel %vm785, %v782, 0
        %884 = vmatprep.subr.bf16.mxu0 0
        %885 = vmatpush1.bf16.xpose.msra.mxu0 0
        %886 = vmatprep.subr.bf16.mxu0 0
        %887 = vmatpush1.bf16.xpose.msra.mxu0 0
        %888 = vmatprep.subr.bf16.mxu0 0
        %889 = vmatpush1.bf16.xpose.msra.mxu0 0
        %890 = vmatprep.subr.bf16.mxu0 0
        %891 = vmatpush1.bf16.xpose.msra.mxu0 0
        %892 = vmatprep.subr.bf16.mxu0 0
        %893 = vmatpush1.bf16.xpose.msra.mxu0 0
        %894 = vmatprep.subr.bf16.mxu0 0
        %895 = vmatpush1.bf16.xpose.msra.mxu0 0
        %896 = vmatprep.subr.bf16.mxu0 0
        %897 = vmatpush1.bf16.xpose.msra.mxu0 0
        %898 = vmatprep.subr.bf16.mxu0 0
        %899 = vmatpush1.bf16.xpose.msra.mxu0 %v882
        %900 = vmatprep.subr.bf16.mxu0 0
        %901 = vmatpush2.bf16.xpose.msra.mxu0 0
        %902 = vmatprep.subr.bf16.mxu0 0
        %903 = vmatpush2.bf16.xpose.msra.mxu0 0
        %904 = vmatprep.subr.bf16.mxu0 0
        %905 = vmatpush2.bf16.xpose.msra.mxu0 0
        %906 = vmatprep.subr.bf16.mxu0 0
        %907 = vmatpush2.bf16.xpose.msra.mxu0 0
        %908 = vmatprep.subr.bf16.mxu0 0
        %909 = vmatpush2.bf16.xpose.msra.mxu0 0
        %910 = vmatprep.subr.bf16.mxu0 0
        %911 = vmatpush2.bf16.xpose.msra.mxu0 0
        %912 = vmatprep.subr.bf16.mxu0 0
        %913 = vmatpush2.bf16.xpose.msra.mxu0 0
        %914 = vmatprep.subr.bf16.mxu0 0
        %915 = vmatpush2.bf16.xpose.msra.mxu0 0
        %916 = vmatprep.mubr.bf16.mxu0 0
        %917 = vmatmul.mubr.bf16.gmra.mxu0 %v879
        %v918 = vpop.f32.mrf.mxu0
        %v919 = vadd.f32 0.0, %v918
        %v920 = vpop.f32.mrf.mxu0
        %v921 = vpop.f32.mrf.mxu0
        %v922 = vpop.f32.mrf.mxu0
        %923 = vdwg.mxu0
        %v925 = vsel %vm785, %v777, 0
        %v928 = vsel %vm785, %v784, 0
        %930 = vmatprep.subr.bf16.mxu0 0
        %931 = vmatpush1.bf16.xpose.msra.mxu0 0
        %932 = vmatprep.subr.bf16.mxu0 0
        %933 = vmatpush1.bf16.xpose.msra.mxu0 0
        %934 = vmatprep.subr.bf16.mxu0 0
        %935 = vmatpush1.bf16.xpose.msra.mxu0 0
        %936 = vmatprep.subr.bf16.mxu0 0
        %937 = vmatpush1.bf16.xpose.msra.mxu0 0
        %938 = vmatprep.subr.bf16.mxu0 0
        %939 = vmatpush1.bf16.xpose.msra.mxu0 0
        %940 = vmatprep.subr.bf16.mxu0 0
        %941 = vmatpush1.bf16.xpose.msra.mxu0 0
        %942 = vmatprep.subr.bf16.mxu0 0
        %943 = vmatpush1.bf16.xpose.msra.mxu0 0
        %944 = vmatprep.subr.bf16.mxu0 0
        %945 = vmatpush1.bf16.xpose.msra.mxu0 %v928
        %946 = vmatprep.subr.bf16.mxu0 0
        %947 = vmatpush2.bf16.xpose.msra.mxu0 0
        %948 = vmatprep.subr.bf16.mxu0 0
        %949 = vmatpush2.bf16.xpose.msra.mxu0 0
        %950 = vmatprep.subr.bf16.mxu0 0
        %951 = vmatpush2.bf16.xpose.msra.mxu0 0
        %952 = vmatprep.subr.bf16.mxu0 0
        %953 = vmatpush2.bf16.xpose.msra.mxu0 0
        %954 = vmatprep.subr.bf16.mxu0 0
        %955 = vmatpush2.bf16.xpose.msra.mxu0 0
        %956 = vmatprep.subr.bf16.mxu0 0
        %957 = vmatpush2.bf16.xpose.msra.mxu0 0
        %958 = vmatprep.subr.bf16.mxu0 0
        %959 = vmatpush2.bf16.xpose.msra.mxu0 0
        %960 = vmatprep.subr.bf16.mxu0 0
        %961 = vmatpush2.bf16.xpose.msra.mxu0 0
        %962 = vmatprep.mubr.bf16.mxu0 0
        %963 = vmatmul.mubr.bf16.gmra.mxu0 %v925
        %v964 = vpop.f32.mrf.mxu0
        %v965 = vadd.f32 0.0, %v964
        %v966 = vpop.f32.mrf.mxu0
        %v967 = vpop.f32.mrf.mxu0
        %v968 = vpop.f32.mrf.mxu0
        %969 = vdwg.mxu0
        %s970 = smul.u32 %s35, 8
        %v971 = vlaneseq
        %v972 = vshrl.u32 %v971, 7
        %v973 = vstv %s970
        %v974 = vadd.s32 %v973, %v972
        %v975 = vlaneseq
        %v976 = vand.u32 %v975, 127
        %vm977 = vcmp.le.s32.totalorder %v976, %v974
        %v978 = vsel %vm977, 1, 0
        %v979 = vcvt.s32.f32 %v978
        %v980 = vmax.f32 %v827, 0.0
        %v981 = vmax.f32 %v873, 0.0
        %v982 = vmax.f32 %v919, 0.0
        %v983 = vmax.f32 %v965, 0.0
        %v984 = vmul.f32 %v980, %v979
        %v985 = vmul.f32 %v981, %v979
        %v986 = vmul.f32 %v982, %v979
        %v987 = vmul.f32 %v983, %v979
        %v988 = vpack.c.bf16 %v984, %v984
        %v989 = vpack.c.bf16 %v985, %v985
        %v990 = vpack.c.bf16 %v986, %v986
        %v991 = vpack.c.bf16 %v987, %v987
        %992 = vrot.lane.b32.xlu0 %v685, 96
        %v993 = vpop.permute.xlu0 %992
        %vm995 = vcmask 130048
        %v997 = vsel %vm995, %v988, 0
        %999 = vmatprep.subr.bf16.mxu0 0
        %1000 = vmatpush1.bf16.msra.mxu0 0
        %1001 = vmatprep.subr.bf16.mxu0 0
        %1002 = vmatpush1.bf16.msra.mxu0 0
        %1003 = vmatprep.subr.bf16.mxu0 0
        %1004 = vmatpush1.bf16.msra.mxu0 0
        %1005 = vmatprep.subr.bf16.mxu0 0
        %1006 = vmatpush1.bf16.msra.mxu0 0
        %1007 = vmatprep.subr.bf16.mxu0 0
        %1008 = vmatpush1.bf16.msra.mxu0 0
        %1009 = vmatprep.subr.bf16.mxu0 0
        %1010 = vmatpush1.bf16.msra.mxu0 0
        %1011 = vmatprep.subr.bf16.mxu0 0
        %1012 = vmatpush1.bf16.msra.mxu0 0
        %1013 = vmatprep.subr.bf16.mxu0 0
        %1014 = vmatpush1.bf16.msra.mxu0 %v993
        %1015 = vmatprep.subr.bf16.mxu0 0
        %1016 = vmatpush2.bf16.msra.mxu0 0
        %1017 = vmatprep.subr.bf16.mxu0 0
        %1018 = vmatpush2.bf16.msra.mxu0 0
        %1019 = vmatprep.subr.bf16.mxu0 0
        %1020 = vmatpush2.bf16.msra.mxu0 0
        %1021 = vmatprep.subr.bf16.mxu0 0
        %1022 = vmatpush2.bf16.msra.mxu0 0
        %1023 = vmatprep.subr.bf16.mxu0 0
        %1024 = vmatpush2.bf16.msra.mxu0 0
        %1025 = vmatprep.subr.bf16.mxu0 0
        %1026 = vmatpush2.bf16.msra.mxu0 0
        %1027 = vmatprep.subr.bf16.mxu0 0
        %1028 = vmatpush2.bf16.msra.mxu0 0
        %1029 = vmatprep.subr.bf16.mxu0 0
        %1030 = vmatpush2.bf16.msra.mxu0 0
        %1031 = vmatprep.mubr.bf16.mxu0 0
        %1032 = vmatmul.mubr.bf16.gmra.mxu0 %v997
        %v1033 = vpop.f32.mrf.mxu0
        %v1034 = vadd.f32 0.0, %v1033
        %v1035 = vpop.f32.mrf.mxu0
        %v1036 = vpop.f32.mrf.mxu0
        %v1037 = vpop.f32.mrf.mxu0
        %1038 = vdwg.mxu0
        %1039 = vrot.lane.b32.xlu0 %v780, 96
        %v1040 = vpop.permute.xlu0 %1039
        %v1043 = vsel %vm995, %v989, 0
        %1045 = vmatprep.subr.bf16.mxu0 0
        %1046 = vmatpush1.bf16.msra.mxu0 0
        %1047 = vmatprep.subr.bf16.mxu0 0
        %1048 = vmatpush1.bf16.msra.mxu0 0
        %1049 = vmatprep.subr.bf16.mxu0 0
        %1050 = vmatpush1.bf16.msra.mxu0 0
        %1051 = vmatprep.subr.bf16.mxu0 0
        %1052 = vmatpush1.bf16.msra.mxu0 0
        %1053 = vmatprep.subr.bf16.mxu0 0
        %1054 = vmatpush1.bf16.msra.mxu0 0
        %1055 = vmatprep.subr.bf16.mxu0 0
        %1056 = vmatpush1.bf16.msra.mxu0 0
        %1057 = vmatprep.subr.bf16.mxu0 0
        %1058 = vmatpush1.bf16.msra.mxu0 0
        %1059 = vmatprep.subr.bf16.mxu0 0
        %1060 = vmatpush1.bf16.msra.mxu0 %v1040
        %1061 = vmatprep.subr.bf16.mxu0 0
        %1062 = vmatpush2.bf16.msra.mxu0 0
        %1063 = vmatprep.subr.bf16.mxu0 0
        %1064 = vmatpush2.bf16.msra.mxu0 0
        %1065 = vmatprep.subr.bf16.mxu0 0
        %1066 = vmatpush2.bf16.msra.mxu0 0
        %1067 = vmatprep.subr.bf16.mxu0 0
        %1068 = vmatpush2.bf16.msra.mxu0 0
        %1069 = vmatprep.subr.bf16.mxu0 0
        %1070 = vmatpush2.bf16.msra.mxu0 0
        %1071 = vmatprep.subr.bf16.mxu0 0
        %1072 = vmatpush2.bf16.msra.mxu0 0
        %1073 = vmatprep.subr.bf16.mxu0 0
        %1074 = vmatpush2.bf16.msra.mxu0 0
        %1075 = vmatprep.subr.bf16.mxu0 0
        %1076 = vmatpush2.bf16.msra.mxu0 0
        %1077 = vmatprep.mubr.bf16.mxu0 0
        %1078 = vmatmul.mubr.bf16.gmra.mxu0 %v1043
        %v1079 = vpop.f32.mrf.mxu0
        %v1080 = vadd.f32 0.0, %v1079
        %v1081 = vpop.f32.mrf.mxu0
        %v1082 = vpop.f32.mrf.mxu0
        %v1083 = vpop.f32.mrf.mxu0
        %1084 = vdwg.mxu0
        %1085 = vrot.lane.b32.xlu0 %v782, 96
        %v1086 = vpop.permute.xlu0 %1085
        %v1089 = vsel %vm995, %v990, 0
        %1091 = vmatprep.subr.bf16.mxu0 0
        %1092 = vmatpush1.bf16.msra.mxu0 0
        %1093 = vmatprep.subr.bf16.mxu0 0
        %1094 = vmatpush1.bf16.msra.mxu0 0
        %1095 = vmatprep.subr.bf16.mxu0 0
        %1096 = vmatpush1.bf16.msra.mxu0 0
        %1097 = vmatprep.subr.bf16.mxu0 0
        %1098 = vmatpush1.bf16.msra.mxu0 0
        %1099 = vmatprep.subr.bf16.mxu0 0
        %1100 = vmatpush1.bf16.msra.mxu0 0
        %1101 = vmatprep.subr.bf16.mxu0 0
        %1102 = vmatpush1.bf16.msra.mxu0 0
        %1103 = vmatprep.subr.bf16.mxu0 0
        %1104 = vmatpush1.bf16.msra.mxu0 0
        %1105 = vmatprep.subr.bf16.mxu0 0
        %1106 = vmatpush1.bf16.msra.mxu0 %v1086
        %1107 = vmatprep.subr.bf16.mxu0 0
        %1108 = vmatpush2.bf16.msra.mxu0 0
        %1109 = vmatprep.subr.bf16.mxu0 0
        %1110 = vmatpush2.bf16.msra.mxu0 0
        %1111 = vmatprep.subr.bf16.mxu0 0
        %1112 = vmatpush2.bf16.msra.mxu0 0
        %1113 = vmatprep.subr.bf16.mxu0 0
        %1114 = vmatpush2.bf16.msra.mxu0 0
        %1115 = vmatprep.subr.bf16.mxu0 0
        %1116 = vmatpush2.bf16.msra.mxu0 0
        %1117 = vmatprep.subr.bf16.mxu0 0
        %1118 = vmatpush2.bf16.msra.mxu0 0
        %1119 = vmatprep.subr.bf16.mxu0 0
        %1120 = vmatpush2.bf16.msra.mxu0 0
        %1121 = vmatprep.subr.bf16.mxu0 0
        %1122 = vmatpush2.bf16.msra.mxu0 0
        %1123 = vmatprep.mubr.bf16.mxu0 0
        %1124 = vmatmul.mubr.bf16.gmra.mxu0 %v1089
        %v1125 = vpop.f32.mrf.mxu0
        %v1126 = vadd.f32 0.0, %v1125
        %v1127 = vpop.f32.mrf.mxu0
        %v1128 = vpop.f32.mrf.mxu0
        %v1129 = vpop.f32.mrf.mxu0
        %1130 = vdwg.mxu0
        %1131 = vrot.lane.b32.xlu0 %v784, 96
        %v1132 = vpop.permute.xlu0 %1131
        %v1135 = vsel %vm995, %v991, 0
        %1137 = vmatprep.subr.bf16.mxu0 0
        %1138 = vmatpush1.bf16.msra.mxu0 0
        %1139 = vmatprep.subr.bf16.mxu0 0
        %1140 = vmatpush1.bf16.msra.mxu0 0
        %1141 = vmatprep.subr.bf16.mxu0 0
        %1142 = vmatpush1.bf16.msra.mxu0 0
        %1143 = vmatprep.subr.bf16.mxu0 0
        %1144 = vmatpush1.bf16.msra.mxu0 0
        %1145 = vmatprep.subr.bf16.mxu0 0
        %1146 = vmatpush1.bf16.msra.mxu0 0
        %1147 = vmatprep.subr.bf16.mxu0 0
        %1148 = vmatpush1.bf16.msra.mxu0 0
        %1149 = vmatprep.subr.bf16.mxu0 0
        %1150 = vmatpush1.bf16.msra.mxu0 0
        %1151 = vmatprep.subr.bf16.mxu0 0
        %1152 = vmatpush1.bf16.msra.mxu0 %v1132
        %1153 = vmatprep.subr.bf16.mxu0 0
        %1154 = vmatpush2.bf16.msra.mxu0 0
        %1155 = vmatprep.subr.bf16.mxu0 0
        %1156 = vmatpush2.bf16.msra.mxu0 0
        %1157 = vmatprep.subr.bf16.mxu0 0
        %1158 = vmatpush2.bf16.msra.mxu0 0
        %1159 = vmatprep.subr.bf16.mxu0 0
        %1160 = vmatpush2.bf16.msra.mxu0 0
        %1161 = vmatprep.subr.bf16.mxu0 0
        %1162 = vmatpush2.bf16.msra.mxu0 0
        %1163 = vmatprep.subr.bf16.mxu0 0
        %1164 = vmatpush2.bf16.msra.mxu0 0
        %1165 = vmatprep.subr.bf16.mxu0 0
        %1166 = vmatpush2.bf16.msra.mxu0 0
        %1167 = vmatprep.subr.bf16.mxu0 0
        %1168 = vmatpush2.bf16.msra.mxu0 0
        %1169 = vmatprep.mubr.bf16.mxu0 0
        %1170 = vmatmul.mubr.bf16.gmra.mxu0 %v1135
        %v1171 = vpop.f32.mrf.mxu0
        %v1172 = vadd.f32 0.0, %v1171
        %v1173 = vpop.f32.mrf.mxu0
        %v1174 = vpop.f32.mrf.mxu0
        %v1175 = vpop.f32.mrf.mxu0
        %1176 = vdwg.mxu0
        %1178 = vrot.lane.b32.xlu0 %v1080, 8
        %v1179 = vpop.permute.xlu0 %1178
        %1182 = vrot.lane.b32.xlu0 %v1126, 16
        %v1183 = vpop.permute.xlu0 %1182
        %1186 = vrot.lane.b32.xlu0 %v1172, 24
        %v1187 = vpop.permute.xlu0 %1186
        %v1189 = vsel %vm785, %v1034, %v1179
        %v1190 = vsel %vm995, %v1189, %v1183
        %vm1191 = vcmask 195584
        %v1192 = vsel %vm1191, %v1190, %v1187
        %v1193 = vpack.c.bf16 %v1192, %v1192
        %v1194 = vld [vmem:[%s8] sm:$0xf]
        %v1195 = vld [vmem:[%s8 + $0x4] sm:$0xf]
        %v1196 = vld [vmem:[%s8 + $0x8] sm:$0xf]
        %v1197 = vld [vmem:[%s8 + $0xc] sm:$0xf]
        %v1198 = vld [vmem:[%s9] sm:$0x1]
        %v1200 = vlaneseq
        %v1201 = vshrl.u32 %v1200, 7
        %v1202 = vsub.s32 0, %v1201
        %v1203 = vrot.slane %v1198, %v1202
        %v1209 = vunpack.c.l.b16 %v1194
        %v1210 = vunpack.c.l.b16 %v1195
        %v1211 = vunpack.c.l.b16 %v1196
        %v1212 = vunpack.c.l.b16 %v1197
        %v1213 = vpack.c.b16 %v1210, %v1209
        %v1214 = vpack.c.b16 %v1212, %v1211
        %v1218 = vsel %vm571, %v1193, 0
        %1220 = vmatprep.subr.bf16.mxu0 0
        %1221 = vmatpush1.bf16.msra.mxu0 0
        %1222 = vmatprep.subr.bf16.mxu0 0
        %1223 = vmatpush1.bf16.msra.mxu0 0
        %1224 = vmatprep.subr.bf16.mxu0 0
        %1225 = vmatpush1.bf16.msra.mxu0 0
        %1226 = vmatprep.subr.bf16.mxu0 0
        %1227 = vmatpush1.bf16.msra.mxu0 0
        %1228 = vmatprep.subr.bf16.mxu0 0
        %1229 = vmatpush1.bf16.msra.mxu0 0
        %1230 = vmatprep.subr.bf16.mxu0 0
        %1231 = vmatpush1.bf16.msra.mxu0 0
        %1232 = vmatprep.subr.bf16.mxu0 0
        %1233 = vmatpush1.bf16.msra.mxu0 %v1214
        %1234 = vmatprep.subr.bf16.mxu0 0
        %1235 = vmatpush1.bf16.msra.mxu0 %v1213
        %1236 = vmatprep.subr.bf16.mxu0 0
        %1237 = vmatpush2.bf16.msra.mxu0 0
        %1238 = vmatprep.subr.bf16.mxu0 0
        %1239 = vmatpush2.bf16.msra.mxu0 0
        %1240 = vmatprep.subr.bf16.mxu0 0
        %1241 = vmatpush2.bf16.msra.mxu0 0
        %1242 = vmatprep.subr.bf16.mxu0 0
        %1243 = vmatpush2.bf16.msra.mxu0 0
        %1244 = vmatprep.subr.bf16.mxu0 0
        %1245 = vmatpush2.bf16.msra.mxu0 0
        %1246 = vmatprep.subr.bf16.mxu0 0
        %1247 = vmatpush2.bf16.msra.mxu0 0
        %1248 = vmatprep.subr.bf16.mxu0 0
        %1249 = vmatpush2.bf16.msra.mxu0 0
        %1250 = vmatprep.subr.bf16.mxu0 0
        %1251 = vmatpush2.bf16.msra.mxu0 0
        %1252 = vmatprep.mubr.bf16.mxu0 0
        %1253 = vmatmul.mubr.bf16.gmra.mxu0 %v1218
        %v1254 = vpop.f32.mrf.mxu0
        %v1255 = vadd.f32 %v1203, %v1254
        %v1256 = vpop.f32.mrf.mxu0
        %v1257 = vpop.f32.mrf.mxu0
        %v1258 = vpop.f32.mrf.mxu0
        %1259 = vdwg.mxu0
        %v1260 = vadd.f32 %v566, %v1255
        %v1261 = vld [vmem:[%s10] sm:$0x1]
        %v1262 = vld [vmem:[%s11] sm:$0x1]
        %v1263 = vsel %vm571, %v1260, 0.0
        %1264 = vadd.xlane.f32.xlu0 %v1263
        %v1265 = vpop.xlane.xlu0 %1264
        %v1266 = vmul.f32 %v1265, %v578
        %v1267 = vsub.f32 %v1260, %v1266
        %v1268 = vmul.f32 %v1267, %v1267
        %v1269 = vsel %vm571, %v1268, 0.0
        %1270 = vadd.xlane.f32.xlu0 %v1269
        %v1271 = vpop.xlane.xlu0 %1270
        %v1272 = vmul.f32 %v1271, %v578
        %v1273 = vadd.f32 %v1272, 1e-05
        %v1274 = vrsqrt.pop %v1273
        %v1275 = vmul.f32 %v1267, %v1274
        %v1277 = vlaneseq
        %v1278 = vshrl.u32 %v1277, 7
        %v1279 = vsub.s32 0, %v1278
        %v1280 = vrot.slane %v1261, %v1279
        %v1282 = vmul.f32 %v1275, %v1280
        %v1284 = vlaneseq
        %v1285 = vshrl.u32 %v1284, 7
        %v1286 = vsub.s32 0, %v1285
        %v1287 = vrot.slane %v1262, %v1286
        %v1289 = vadd.f32 %v1282, %v1287
        %v1290 = vpack.c.bf16 %v1289, %v1289
        %v1291 = vld [vmem:[%s12] sm:$0xf]
        %v1292 = vld [vmem:[%s12 + $0x4] sm:$0xf]
        %v1293 = vld [vmem:[%s12 + $0x8] sm:$0xf]
        %v1294 = vld [vmem:[%s12 + $0xc] sm:$0xf]
        %v1295 = vld [vmem:[%s13] sm:$0x1]
        %v1297 = vlaneseq
        %v1298 = vshrl.u32 %v1297, 7
        %v1299 = vsub.s32 0, %v1298
        %v1300 = vrot.slane %v1295, %v1299
        %v1306 = vunpack.c.l.b16 %v1291
        %v1307 = vunpack.c.l.b16 %v1292
        %v1308 = vunpack.c.l.b16 %v1293
        %v1309 = vunpack.c.l.b16 %v1294
        %v1310 = vpack.c.b16 %v1307, %v1306
        %v1311 = vpack.c.b16 %v1309, %v1308
        %v1315 = vsel %vm571, %v1290, 0
        %1317 = vmatprep.subr.bf16.mxu0 0
        %1318 = vmatpush1.bf16.msra.mxu0 0
        %1319 = vmatprep.subr.bf16.mxu0 0
        %1320 = vmatpush1.bf16.msra.mxu0 0
        %1321 = vmatprep.subr.bf16.mxu0 0
        %1322 = vmatpush1.bf16.msra.mxu0 0
        %1323 = vmatprep.subr.bf16.mxu0 0
        %1324 = vmatpush1.bf16.msra.mxu0 0
        %1325 = vmatprep.subr.bf16.mxu0 0
        %1326 = vmatpush1.bf16.msra.mxu0 0
        %1327 = vmatprep.subr.bf16.mxu0 0
        %1328 = vmatpush1.bf16.msra.mxu0 0
        %1329 = vmatprep.subr.bf16.mxu0 0
        %1330 = vmatpush1.bf16.msra.mxu0 %v1311
        %1331 = vmatprep.subr.bf16.mxu0 0
        %1332 = vmatpush1.bf16.msra.mxu0 %v1310
        %1333 = vmatprep.subr.bf16.mxu0 0
        %1334 = vmatpush2.bf16.msra.mxu0 0
        %1335 = vmatprep.subr.bf16.mxu0 0
        %1336 = vmatpush2.bf16.msra.mxu0 0
        %1337 = vmatprep.subr.bf16.mxu0 0
        %1338 = vmatpush2.bf16.msra.mxu0 0
        %1339 = vmatprep.subr.bf16.mxu0 0
        %1340 = vmatpush2.bf16.msra.mxu0 0
        %1341 = vmatprep.subr.bf16.mxu0 0
        %1342 = vmatpush2.bf16.msra.mxu0 0
        %1343 = vmatprep.subr.bf16.mxu0 0
        %1344 = vmatpush2.bf16.msra.mxu0 0
        %1345 = vmatprep.subr.bf16.mxu0 0
        %1346 = vmatpush2.bf16.msra.mxu0 0
        %1347 = vmatprep.subr.bf16.mxu0 0
        %1348 = vmatpush2.bf16.msra.mxu0 0
        %1349 = vmatprep.mubr.bf16.mxu0 0
        %1350 = vmatmul.mubr.bf16.gmra.mxu0 %v1315
        %v1351 = vpop.f32.mrf.mxu0
        %v1352 = vadd.f32 %v1300, %v1351
        %v1353 = vpop.f32.mrf.mxu0
        %v1354 = vpop.f32.mrf.mxu0
        %v1355 = vpop.f32.mrf.mxu0
        %1356 = vdwg.mxu0
        %v1357 = vmax.f32 %v1352, 0.0
        %v1358 = vpack.c.bf16 %v1357, %v1357
        %v1359 = vld [vmem:[%s14] sm:$0xf]
        %v1360 = vld [vmem:[%s14 + $0x4] sm:$0xf]
        %v1361 = vld [vmem:[%s14 + $0x8] sm:$0xf]
        %v1362 = vld [vmem:[%s14 + $0xc] sm:$0xf]
        %v1363 = vld [vmem:[%s14 + $0x10] sm:$0xf]
        %v1364 = vld [vmem:[%s14 + $0x14] sm:$0xf]
        %v1365 = vld [vmem:[%s14 + $0x18] sm:$0xf]
        %v1366 = vld [vmem:[%s14 + $0x1c] sm:$0xf]
        %v1367 = vld [vmem:[%s15] sm:$0x1]
        %v1369 = vlaneseq
        %v1370 = vshrl.u32 %v1369, 7
        %v1371 = vsub.s32 0, %v1370
        %v1372 = vrot.slane %v1367, %v1371
        %v1382 = vunpack.c.l.b16 %v1359
        %v1383 = vunpack.c.l.b16 %v1360
        %v1384 = vunpack.c.l.b16 %v1361
        %v1385 = vunpack.c.l.b16 %v1362
        %v1386 = vunpack.c.l.b16 %v1363
        %v1387 = vunpack.c.l.b16 %v1364
        %v1388 = vunpack.c.l.b16 %v1365
        %v1389 = vunpack.c.l.b16 %v1366
        %v1390 = vpack.c.b16 %v1383, %v1382
        %v1391 = vpack.c.b16 %v1385, %v1384
        %v1392 = vpack.c.b16 %v1387, %v1386
        %v1393 = vpack.c.b16 %v1389, %v1388
        %vm1398 = vcmask 523264
        %v1400 = vsel %vm1398, %v1358, 0
        %1402 = vmatprep.subr.bf16.mxu0 0
        %1403 = vmatpush1.bf16.msra.mxu0 0
        %1404 = vmatprep.subr.bf16.mxu0 0
        %1405 = vmatpush1.bf16.msra.mxu0 0
        %1406 = vmatprep.subr.bf16.mxu0 0
        %1407 = vmatpush1.bf16.msra.mxu0 0
        %1408 = vmatprep.subr.bf16.mxu0 0
        %1409 = vmatpush1.bf16.msra.mxu0 0
        %1410 = vmatprep.subr.bf16.mxu0 0
        %1411 = vmatpush1.bf16.msra.mxu0 %v1393
        %1412 = vmatprep.subr.bf16.mxu0 0
        %1413 = vmatpush1.bf16.msra.mxu0 %v1392
        %1414 = vmatprep.subr.bf16.mxu0 0
        %1415 = vmatpush1.bf16.msra.mxu0 %v1391
        %1416 = vmatprep.subr.bf16.mxu0 0
        %1417 = vmatpush1.bf16.msra.mxu0 %v1390
        %1418 = vmatprep.subr.bf16.mxu0 0
        %1419 = vmatpush2.bf16.msra.mxu0 0
        %1420 = vmatprep.subr.bf16.mxu0 0
        %1421 = vmatpush2.bf16.msra.mxu0 0
        %1422 = vmatprep.subr.bf16.mxu0 0
        %1423 = vmatpush2.bf16.msra.mxu0 0
        %1424 = vmatprep.subr.bf16.mxu0 0
        %1425 = vmatpush2.bf16.msra.mxu0 0
        %1426 = vmatprep.subr.bf16.mxu0 0
        %1427 = vmatpush2.bf16.msra.mxu0 0
        %1428 = vmatprep.subr.bf16.mxu0 0
        %1429 = vmatpush2.bf16.msra.mxu0 0
        %1430 = vmatprep.subr.bf16.mxu0 0
        %1431 = vmatpush2.bf16.msra.mxu0 0
        %1432 = vmatprep.subr.bf16.mxu0 0
        %1433 = vmatpush2.bf16.msra.mxu0 0
        %1434 = vmatprep.mubr.bf16.mxu0 0
        %1435 = vmatmul.mubr.bf16.gmra.mxu0 %v1400
        %v1436 = vpop.f32.mrf.mxu0
        %v1437 = vadd.f32 %v1372, %v1436
        %v1438 = vpop.f32.mrf.mxu0
        %v1439 = vpop.f32.mrf.mxu0
        %v1440 = vpop.f32.mrf.mxu0
        %1441 = vdwg.mxu0
        %v1442 = vadd.f32 %v1260, %v1437
        %1443 = vst.msk [vmem:[%s551] sm:$0xff] %vm571, %v1442
        %s1444 = sand.u32 %s400, 1
        %s1445 = scalar_lea.sflag [#allocation3], %s1444
        %s1446 = sand.u32 %s400, 1
        %s1447 = smul.addr %s1446, 8
        %s1448 = scalar_lea.vmem [#allocation2], %s1447
        // Predicated region
        $region85: #{block_forward.1} parent=83 // pred_check
          %p1449 = pneg %p410
        $region86: #{block_forward.1} parent=83 // pred_check_branch
          %1451 = sbr.rel (%p1449) target = $region88
        $region87: #{block_forward.1} parent=83 // pred_region
          %s1453 = ssub.s32 128, 128
          %1454 = vsyncadd %s1445, %s1453
          %s1455 = smul.addr %s34, 2
          %s1456 = sadd.s32 %s35, %s1455
          %s1457 = smul.addr %s1456, 128
          %s1458 = scalar_lea.hbm %s16, %s1457
          %s1460 = sshll.u32 %s1448, 4
          %s1461 = int_to_ptr.vmem [resolvable:$true] %s1460
          %1463 = dma.vmem_to_hbm [thread:$0]  %s1461, 128, %s1458, %s1445
        $region88: #{block_forward.1} parent=83 // pred_fallthru
          _
      $region84: #{block_forward.1} parent=5 // pred_fallthru
        _
      %p1464 = scmp.le.s32.totalorder 2, %s25
      // Predicated region
      $region89: #{block_forward.1} parent=5 // pred_check
        %p1465 = pneg %p1464
      $region90: #{block_forward.1} parent=5 // pred_check_branch
        %1467 = sbr.rel (%p1465) target = $region92
      $region91: #{block_forward.1} parent=5 // pred_region
        %s1468 = ssub.s32 %s25, 2
        // Predicated region
        $region93: #{block_forward.1} parent=91 // pred_check
          %p1469 = pneg %p416
        $region94: #{block_forward.1} parent=91 // pred_check_branch
          %1471 = sbr.rel (%p1469) target = $region96
        $region95: #{block_forward.1} parent=91 // pred_region
          %s1472 = sand.u32 %s401, 1
          %s1473 = scalar_lea.sflag [#allocation3], %s1472
          %s1474 = sand.u32 %s401, 1
          %s1475 = smul.addr %s1474, 8
          %s1476 = scalar_lea.vmem [#allocation2], %s1475
          %1477 = dma.done %s1473, 128
        $region96: #{block_forward.1} parent=91 // pred_fallthru
          _
      $region92: #{block_forward.1} parent=5 // pred_fallthru
        _
    $region6: #{block_forward.1} parent=1 // loop_footer
      %s29 = sadd.s32 1, %s25
    $region7: #{block_forward.1} parent=1 // loop_footer_branch
      %24 = sbr.rel target = $region3
    $region8: #{block_forward.1} parent=1 // loop_exit
      _
    %1478 = vsyncpa [#allocation3], 1
    %s1479 = scalar_lea.sflag [#allocation3], 1
    %1480 = vsyncpa %s1479, 1

// kernel: block_forward.1
$region0: #{block_forward.1}
  #allocation0 [shape = 'u32[]', space=smem, size = 0x4, offset = 0x4, fixed_abs, tag = 'smem constant byte address 0x4 - core index']
  #allocation1 [shape = 'u32[144,128]{1,0:T(1,128)}', space=vmem, size = 0x12000, scoped, tag = 'internal scratch']
  %s0 = inlined_call_operand.vmem [shape: f32[2,16,32], index: 0, kind: input, shape index: {}, may-alias: {0,1}]
  %s1 = inlined_call_operand.vmem [shape: f32[2,16,32], index: 1, kind: input, shape index: {}, may-alias: {0,1}]
  %s2 = inlined_call_operand.vmem [shape: f32[1,32], index: 2, kind: input, shape index: {}]
  %s3 = inlined_call_operand.vmem [shape: f32[1,32], index: 3, kind: input, shape index: {}]
  %s4 = inlined_call_operand.vmem [shape: bf16[32,32], index: 4, kind: input, shape index: {}]
  %s5 = inlined_call_operand.vmem [shape: f32[1,32], index: 5, kind: input, shape index: {}]
  %s6 = inlined_call_operand.vmem [shape: bf16[32,64], index: 6, kind: input, shape index: {}]
  %s7 = inlined_call_operand.vmem [shape: f32[1,64], index: 7, kind: input, shape index: {}]
  %s8 = inlined_call_operand.vmem [shape: bf16[32,32], index: 8, kind: input, shape index: {}]
  %s9 = inlined_call_operand.vmem [shape: f32[1,32], index: 9, kind: input, shape index: {}]
  %s10 = inlined_call_operand.vmem [shape: f32[1,32], index: 10, kind: input, shape index: {}]
  %s11 = inlined_call_operand.vmem [shape: f32[1,32], index: 11, kind: input, shape index: {}]
  %s12 = inlined_call_operand.vmem [shape: bf16[32,64], index: 12, kind: input, shape index: {}]
  %s13 = inlined_call_operand.vmem [shape: f32[1,64], index: 13, kind: input, shape index: {}]
  %s14 = inlined_call_operand.vmem [shape: bf16[64,32], index: 14, kind: input, shape index: {}]
  %s15 = inlined_call_operand.vmem [shape: f32[1,32], index: 15, kind: input, shape index: {}]
  %s16 = inlined_call_operand.hbm [shape: f32[2,16,32], index: 16, kind: output, shape index: {}]
  %s17 = sld [smem:[#allocation0]]
  $region97: #{block_forward.1} parent=0
    _
  %s19 = ssub.s32 1, %s17
  %s20 = scalar_select 0, %s19, %s17
  $region1: #{block_forward.1} parent=0
    #allocation2 [shape = 'u8[8192]{0}', space=vmem, size = 0x2000, scoped, tag = 'output window, operand 0']
    #allocation3 [shape = 's32[2]{0}', space=sflag, size = 0x8, scoped, tag = 'scoped memory for block_forward.1']
    %21 = vsyncpa [#allocation3], 0
    %s22 = scalar_lea.sflag [#allocation3], 1
    %23 = vsyncpa %s22, 0
    loop: start=0, step=1, limit=6
    $region2: #{block_forward.1} parent=1 // loop_pre_header
      _
    $region3: #{block_forward.1} parent=1 // loop_header
      %s25 = sphi 0, %s29
      %p26 = scmp.ge.s32.totalorder %s25, 6
      %s32 = sphi 0, %s44
      %s33 = sphi 0, %s40
      %s34 = sphi 0, %s32
      %s35 = sphi 0, %s33
      %s36 = sphi 0, %s34
      %s37 = sphi 0, %s35
      %s49 = sphi 0, %s51
      %s52 = sphi 0, %s49
      %s53 = sphi 0, %s52
      %s69 = sphi 0, %s53
      %s75 = sphi 0, %s77
      %s78 = sphi 0, %s75
      %s79 = sphi 0, %s78
      %s95 = sphi 0, %s79
      %s99 = sphi 0, %s99
      %s101 = sphi 0, %s99
      %s102 = sphi 0, %s101
      %s116 = sphi 0, %s102
      %s120 = sphi 0, %s120
      %s122 = sphi 0, %s120
      %s123 = sphi 0, %s122
      %s137 = sphi 0, %s123
      %s141 = sphi 0, %s141
      %s143 = sphi 0, %s141
      %s144 = sphi 0, %s143
      %s158 = sphi 0, %s144
      %s162 = sphi 0, %s162
      %s164 = sphi 0, %s162
      %s165 = sphi 0, %s164
      %s179 = sphi 0, %s165
      %s183 = sphi 0, %s183
      %s185 = sphi 0, %s183
      %s186 = sphi 0, %s185
      %s200 = sphi 0, %s186
      %s204 = sphi 0, %s204
      %s206 = sphi 0, %s204
      %s207 = sphi 0, %s206
      %s221 = sphi 0, %s207
      %s225 = sphi 0, %s225
      %s227 = sphi 0, %s225
      %s228 = sphi 0, %s227
      %s242 = sphi 0, %s228
      %s246 = sphi 0, %s246
      %s248 = sphi 0, %s246
      %s249 = sphi 0, %s248
      %s263 = sphi 0, %s249
      %s267 = sphi 0, %s267
      %s269 = sphi 0, %s267
      %s270 = sphi 0, %s269
      %s284 = sphi 0, %s270
      %s288 = sphi 0, %s288
      %s290 = sphi 0, %s288
      %s291 = sphi 0, %s290
      %s305 = sphi 0, %s291
      %s309 = sphi 0, %s309
      %s311 = sphi 0, %s309
      %s312 = sphi 0, %s311
      %s326 = sphi 0, %s312
      %s330 = sphi 0, %s330
      %s332 = sphi 0, %s330
      %s333 = sphi 0, %s332
      %s347 = sphi 0, %s333
      %s351 = sphi 0, %s351
      %s353 = sphi 0, %s351
      %s354 = sphi 0, %s353
      %s368 = sphi 0, %s354
      %s372 = sphi 0, %s372
      %s374 = sphi 0, %s372
      %s375 = sphi 0, %s374
      %s389 = sphi 0, %s375
      %s397 = sphi 0, %s399
      %s400 = sphi 0, %s397
      %s401 = sphi 0, %s400
      %s417 = sphi 0, %s401
    $region4: #{block_forward.1} parent=1 // loop_header_branch
      %28 = sbr.rel (%p26) target = $region8
    $region5: #{block_forward.1} parent=1 // loop_body
      %s30 = ssub.s32 %s25, 1
      %s31 = ssub.s32 %s25, 2
      %s38 = sadd.s32 1, %s33
      %p39 = scmp.ge.s32.totalorder %s38, 2
      %s40 = scalar_select %p39, 0, %s38
      %s41 = sadd.s32 1, %s32
      %s42 = scalar_select %p39, %s41, %s32
      %p43 = scmp.ge.s32.totalorder %s42, 2
      %s44 = scalar_select %p43, 0, %s42
      %s45 = ssub.s32 %s32, %s44
      %s46 = ssub.s32 %s33, %s40
      %s47 = sor.u32 %s45, %s46
      %p48 = scmp.eq.s32.totalorder %s47, 0
      %s50 = sadd.s32 %s49, 1
      %s51 = scalar_select %p48, %s49, %s50
      %p54 = pneg %p48
      %p55 = scmp.eq.s32.totalorder %s25, 3
      %p56 = por %p54, %p55
      %p57 = scmp.ne.s32.totalorder %s49, %s52
      %p58 = scmp.eq.s32.totalorder %s25, 0
      %p59 = por %p57, %p58
      %p60 = scmp.ne.s32.totalorder %s49, %s52
      %p61 = scmp.eq.s32.totalorder %s30, 3
      %p62 = por %p60, %p61
      %p63 = scmp.ne.s32.totalorder %s52, %s53
      %p64 = scmp.eq.s32.totalorder %s30, 0
      %p65 = por %p63, %p64
      %p66 = scmp.ne.s32.totalorder %s52, %s53
      %p67 = scmp.eq.s32.totalorder %s31, 3
      %p68 = por %p66, %p67
      %p70 = scmp.ne.s32.totalorder %s53, %s69
      %p71 = scmp.eq.s32.totalorder %s31, 0
      %p72 = por %p70, %p71
      %s73 = ssub.s32 %s32, %s44
      %p74 = scmp.eq.s32.totalorder %s73, 0
      %s76 = sadd.s32 %s75, 1
      %s77 = scalar_select %p74, %s75, %s76
      %p80 = pneg %p74
      %p81 = scmp.eq.s32.totalorder %s25, 3
      %p82 = por %p80, %p81
      %p83 = scmp.ne.s32.totalorder %s75, %s78
      %p84 = scmp.eq.s32.totalorder %s25, 0
      %p85 = por %p83, %p84
      %p86 = scmp.ne.s32.totalorder %s75, %s78
      %p87 = scmp.eq.s32.totalorder %s30, 3
      %p88 = por %p86, %p87
      %p89 = scmp.ne.s32.totalorder %s78, %s79
      %p90 = scmp.eq.s32.totalorder %s30, 0
      %p91 = por %p89, %p90
      %p92 = scmp.ne.s32.totalorder %s78, %s79
      %p93 = scmp.eq.s32.totalorder %s31, 3
      %p94 = por %p92, %p93
      %p96 = scmp.ne.s32.totalorder %s79, %s95
      %p97 = scmp.eq.s32.totalorder %s31, 0
      %p98 = por %p96, %p97
      %s100 = sadd.s32 %s99, 1
      %p103 = scmp.eq.s32.totalorder %s25, 3
      %p104 = scmp.ne.s32.totalorder %s99, %s101
      %p105 = scmp.eq.s32.totalorder %s25, 0
      %p106 = por %p104, %p105
      %p107 = scmp.ne.s32.totalorder %s99, %s101
      %p108 = scmp.eq.s32.totalorder %s30, 3
      %p109 = por %p107, %p108
      %p110 = scmp.ne.s32.totalorder %s101, %s102
      %p111 = scmp.eq.s32.totalorder %s30, 0
      %p112 = por %p110, %p111
      %p113 = scmp.ne.s32.totalorder %s101, %s102
      %p114 = scmp.eq.s32.totalorder %s31, 3
      %p115 = por %p113, %p114
      %p117 = scmp.ne.s32.totalorder %s102, %s116
      %p118 = scmp.eq.s32.totalorder %s31, 0
      %p119 = por %p117, %p118
      %s121 = sadd.s32 %s120, 1
      %p124 = scmp.eq.s32.totalorder %s25, 3
      %p125 = scmp.ne.s32.totalorder %s120, %s122
      %p126 = scmp.eq.s32.totalorder %s25, 0
      %p127 = por %p125, %p126
      %p128 = scmp.ne.s32.totalorder %s120, %s122
      %p129 = scmp.eq.s32.totalorder %s30, 3
      %p130 = por %p128, %p129
      %p131 = scmp.ne.s32.totalorder %s122, %s123
      %p132 = scmp.eq.s32.totalorder %s30, 0
      %p133 = por %p131, %p132
      %p134 = scmp.ne.s32.totalorder %s122, %s123
      %p135 = scmp.eq.s32.totalorder %s31, 3
      %p136 = por %p134, %p135
      %p138 = scmp.ne.s32.totalorder %s123, %s137
      %p139 = scmp.eq.s32.totalorder %s31, 0
      %p140 = por %p138, %p139
      %s142 = sadd.s32 %s141, 1
      %p145 = scmp.eq.s32.totalorder %s25, 3
      %p146 = scmp.ne.s32.totalorder %s141, %s143
      %p147 = scmp.eq.s32.totalorder %s25, 0
      %p148 = por %p146, %p147
      %p149 = scmp.ne.s32.totalorder %s141, %s143
      %p150 = scmp.eq.s32.totalorder %s30, 3
      %p151 = por %p149, %p150
      %p152 = scmp.ne.s32.totalorder %s143, %s144
      %p153 = scmp.eq.s32.totalorder %s30, 0
      %p154 = por %p152, %p153
      %p155 = scmp.ne.s32.totalorder %s143, %s144
      %p156 = scmp.eq.s32.totalorder %s31, 3
      %p157 = por %p155, %p156
      %p159 = scmp.ne.s32.totalorder %s144, %s158
      %p160 = scmp.eq.s32.totalorder %s31, 0
      %p161 = por %p159, %p160
      %s163 = sadd.s32 %s162, 1
      %p166 = scmp.eq.s32.totalorder %s25, 3
      %p167 = scmp.ne.s32.totalorder %s162, %s164
      %p168 = scmp.eq.s32.totalorder %s25, 0
      %p169 = por %p167, %p168
      %p170 = scmp.ne.s32.totalorder %s162, %s164
      %p171 = scmp.eq.s32.totalorder %s30, 3
      %p172 = por %p170, %p171
      %p173 = scmp.ne.s32.totalorder %s164, %s165
      %p174 = scmp.eq.s32.totalorder %s30, 0
      %p175 = por %p173, %p174
      %p176 = scmp.ne.s32.totalorder %s164, %s165
      %p177 = scmp.eq.s32.totalorder %s31, 3
      %p178 = por %p176, %p177
      %p180 = scmp.ne.s32.totalorder %s165, %s179
      %p181 = scmp.eq.s32.totalorder %s31, 0
      %p182 = por %p180, %p181
      %s184 = sadd.s32 %s183, 1
      %p187 = scmp.eq.s32.totalorder %s25, 3
      %p188 = scmp.ne.s32.totalorder %s183, %s185
      %p189 = scmp.eq.s32.totalorder %s25, 0
      %p190 = por %p188, %p189
      %p191 = scmp.ne.s32.totalorder %s183, %s185
      %p192 = scmp.eq.s32.totalorder %s30, 3
      %p193 = por %p191, %p192
      %p194 = scmp.ne.s32.totalorder %s185, %s186
      %p195 = scmp.eq.s32.totalorder %s30, 0
      %p196 = por %p194, %p195
      %p197 = scmp.ne.s32.totalorder %s185, %s186
      %p198 = scmp.eq.s32.totalorder %s31, 3
      %p199 = por %p197, %p198
      %p201 = scmp.ne.s32.totalorder %s186, %s200
      %p202 = scmp.eq.s32.totalorder %s31, 0
      %p203 = por %p201, %p202
      %s205 = sadd.s32 %s204, 1
      %p208 = scmp.eq.s32.totalorder %s25, 3
      %p209 = scmp.ne.s32.totalorder %s204, %s206
      %p210 = scmp.eq.s32.totalorder %s25, 0
      %p211 = por %p209, %p210
      %p212 = scmp.ne.s32.totalorder %s204, %s206
      %p213 = scmp.eq.s32.totalorder %s30, 3
      %p214 = por %p212, %p213
      %p215 = scmp.ne.s32.totalorder %s206, %s207
      %p216 = scmp.eq.s32.totalorder %s30, 0
      %p217 = por %p215, %p216
      %p218 = scmp.ne.s32.totalorder %s206, %s207
      %p219 = scmp.eq.s32.totalorder %s31, 3
      %p220 = por %p218, %p219
      %p222 = scmp.ne.s32.totalorder %s207, %s221
      %p223 = scmp.eq.s32.totalorder %s31, 0
      %p224 = por %p222, %p223
      %s226 = sadd.s32 %s225, 1
      %p229 = scmp.eq.s32.totalorder %s25, 3
      %p230 = scmp.ne.s32.totalorder %s225, %s227
      %p231 = scmp.eq.s32.totalorder %s25, 0
      %p232 = por %p230, %p231
      %p233 = scmp.ne.s32.totalorder %s225, %s227
      %p234 = scmp.eq.s32.totalorder %s30, 3
      %p235 = por %p233, %p234
      %p236 = scmp.ne.s32.totalorder %s227, %s228
      %p237 = scmp.eq.s32.totalorder %s30, 0
      %p238 = por %p236, %p237
      %p239 = scmp.ne.s32.totalorder %s227, %s228
      %p240 = scmp.eq.s32.totalorder %s31, 3
      %p241 = por %p239, %p240
      %p243 = scmp.ne.s32.totalorder %s228, %s242
      %p244 = scmp.eq.s32.totalorder %s31, 0
      %p245 = por %p243, %p244
      %s247 = sadd.s32 %s246, 1
      %p250 = scmp.eq.s32.totalorder %s25, 3
      %p251 = scmp.ne.s32.totalorder %s246, %s248
      %p252 = scmp.eq.s32.totalorder %s25, 0
      %p253 = por %p251, %p252
      %p254 = scmp.ne.s32.totalorder %s246, %s248
      %p255 = scmp.eq.s32.totalorder %s30, 3
      %p256 = por %p254, %p255
      %p257 = scmp.ne.s32.totalorder %s248, %s249
      %p258 = scmp.eq.s32.totalorder %s30, 0
      %p259 = por %p257, %p258
      %p260 = scmp.ne.s32.totalorder %s248, %s249
      %p261 = scmp.eq.s32.totalorder %s31, 3
      %p262 = por %p260, %p261
      %p264 = scmp.ne.s32.totalorder %s249, %s263
      %p265 = scmp.eq.s32.totalorder %s31, 0
      %p266 = por %p264, %p265
      %s268 = sadd.s32 %s267, 1
      %p271 = scmp.eq.s32.totalorder %s25, 3
      %p272 = scmp.ne.s32.totalorder %s267, %s269
      %p273 = scmp.eq.s32.totalorder %s25, 0
      %p274 = por %p272, %p273
      %p275 = scmp.ne.s32.totalorder %s267, %s269
      %p276 = scmp.eq.s32.totalorder %s30, 3
      %p277 = por %p275, %p276
      %p278 = scmp.ne.s32.totalorder %s269, %s270
      %p279 = scmp.eq.s32.totalorder %s30, 0
      %p280 = por %p278, %p279
      %p281 = scmp.ne.s32.totalorder %s269, %s270
      %p282 = scmp.eq.s32.totalorder %s31, 3
      %p283 = por %p281, %p282
      %p285 = scmp.ne.s32.totalorder %s270, %s284
      %p286 = scmp.eq.s32.totalorder %s31, 0
      %p287 = por %p285, %p286
      %s289 = sadd.s32 %s288, 1
      %p292 = scmp.eq.s32.totalorder %s25, 3
      %p293 = scmp.ne.s32.totalorder %s288, %s290
      %p294 = scmp.eq.s32.totalorder %s25, 0
      %p295 = por %p293, %p294
      %p296 = scmp.ne.s32.totalorder %s288, %s290
      %p297 = scmp.eq.s32.totalorder %s30, 3
      %p298 = por %p296, %p297
      %p299 = scmp.ne.s32.totalorder %s290, %s291
      %p300 = scmp.eq.s32.totalorder %s30, 0
      %p301 = por %p299, %p300
      %p302 = scmp.ne.s32.totalorder %s290, %s291
      %p303 = scmp.eq.s32.totalorder %s31, 3
      %p304 = por %p302, %p303
      %p306 = scmp.ne.s32.totalorder %s291, %s305
      %p307 = scmp.eq.s32.totalorder %s31, 0
      %p308 = por %p306, %p307
      %s310 = sadd.s32 %s309, 1
      %p313 = scmp.eq.s32.totalorder %s25, 3
      %p314 = scmp.ne.s32.totalorder %s309, %s311
      %p315 = scmp.eq.s32.totalorder %s25, 0
      %p316 = por %p314, %p315
      %p317 = scmp.ne.s32.totalorder %s309, %s311
      %p318 = scmp.eq.s32.totalorder %s30, 3
      %p319 = por %p317, %p318
      %p320 = scmp.ne.s32.totalorder %s311, %s312
      %p321 = scmp.eq.s32.totalorder %s30, 0
      %p322 = por %p320, %p321
      %p323 = scmp.ne.s32.totalorder %s311, %s312
      %p324 = scmp.eq.s32.totalorder %s31, 3
      %p325 = por %p323, %p324
      %p327 = scmp.ne.s32.totalorder %s312, %s326
      %p328 = scmp.eq.s32.totalorder %s31, 0
      %p329 = por %p327, %p328
      %s331 = sadd.s32 %s330, 1
      %p334 = scmp.eq.s32.totalorder %s25, 3
      %p335 = scmp.ne.s32.totalorder %s330, %s332
      %p336 = scmp.eq.s32.totalorder %s25, 0
      %p337 = por %p335, %p336
      %p338 = scmp.ne.s32.totalorder %s330, %s332
      %p339 = scmp.eq.s32.totalorder %s30, 3
      %p340 = por %p338, %p339
      %p341 = scmp.ne.s32.totalorder %s332, %s333
      %p342 = scmp.eq.s32.totalorder %s30, 0
      %p343 = por %p341, %p342
      %p344 = scmp.ne.s32.totalorder %s332, %s333
      %p345 = scmp.eq.s32.totalorder %s31, 3
      %p346 = por %p344, %p345
      %p348 = scmp.ne.s32.totalorder %s333, %s347
      %p349 = scmp.eq.s32.totalorder %s31, 0
      %p350 = por %p348, %p349
      %s352 = sadd.s32 %s351, 1
      %p355 = scmp.eq.s32.totalorder %s25, 3
      %p356 = scmp.ne.s32.totalorder %s351, %s353
      %p357 = scmp.eq.s32.totalorder %s25, 0
      %p358 = por %p356, %p357
      %p359 = scmp.ne.s32.totalorder %s351, %s353
      %p360 = scmp.eq.s32.totalorder %s30, 3
      %p361 = por %p359, %p360
      %p362 = scmp.ne.s32.totalorder %s353, %s354
      %p363 = scmp.eq.s32.totalorder %s30, 0
      %p364 = por %p362, %p363
      %p365 = scmp.ne.s32.totalorder %s353, %s354
      %p366 = scmp.eq.s32.totalorder %s31, 3
      %p367 = por %p365, %p366
      %p369 = scmp.ne.s32.totalorder %s354, %s368
      %p370 = scmp.eq.s32.totalorder %s31, 0
      %p371 = por %p369, %p370
      %s373 = sadd.s32 %s372, 1
      %p376 = scmp.eq.s32.totalorder %s25, 3
      %p377 = scmp.ne.s32.totalorder %s372, %s374
      %p378 = scmp.eq.s32.totalorder %s25, 0
      %p379 = por %p377, %p378
      %p380 = scmp.ne.s32.totalorder %s372, %s374
      %p381 = scmp.eq.s32.totalorder %s30, 3
      %p382 = por %p380, %p381
      %p383 = scmp.ne.s32.totalorder %s374, %s375
      %p384 = scmp.eq.s32.totalorder %s30, 0
      %p385 = por %p383, %p384
      %p386 = scmp.ne.s32.totalorder %s374, %s375
      %p387 = scmp.eq.s32.totalorder %s31, 3
      %p388 = por %p386, %p387
      %p390 = scmp.ne.s32.totalorder %s375, %s389
      %p391 = scmp.eq.s32.totalorder %s31, 0
      %p392 = por %p390, %p391
      %s393 = ssub.s32 %s32, %s44
      %s394 = ssub.s32 %s33, %s40
      %s395 = sor.u32 %s393, %s394
      %p396 = scmp.eq.s32.totalorder %s395, 0
      %s398 = sadd.s32 %s397, 1
      %s399 = scalar_select %p396, %s397, %s398
      %p402 = pneg %p396
      %p403 = scmp.eq.s32.totalorder %s25, 3
      %p404 = por %p402, %p403
      %p405 = scmp.ne.s32.totalorder %s397, %s400
      %p406 = scmp.eq.s32.totalorder %s25, 0
      %p407 = por %p405, %p406
      %p408 = scmp.ne.s32.totalorder %s397, %s400
      %p409 = scmp.eq.s32.totalorder %s30, 3
      %p410 = por %p408, %p409
      %p411 = scmp.ne.s32.totalorder %s400, %s401
      %p412 = scmp.eq.s32.totalorder %s30, 0
      %p413 = por %p411, %p412
      %p414 = scmp.ne.s32.totalorder %s400, %s401
      %p415 = scmp.eq.s32.totalorder %s31, 3
      %p416 = por %p414, %p415
      %p418 = scmp.ne.s32.totalorder %s401, %s417
      %p419 = scmp.eq.s32.totalorder %s31, 0
      %p420 = por %p418, %p419
      %p421 = scmp.le.s32.totalorder 1, %s25
      %p422 = scmp.lt.s32.totalorder %s25, 5
      %p423 = pnand %p421, %p422
      %p424 = pneg %p423
      // Predicated region
      $region9: #{block_forward.1} parent=5 // pred_check
        _
      $region10: #{block_forward.1} parent=5 // pred_check_branch
        %426 = sbr.rel (%p423) target = $region12
      $region11: #{block_forward.1} parent=5 // pred_region
        %s427 = ssub.s32 %s25, 1
        // Predicated region
        $region13: #{block_forward.1} parent=11 // pred_check
          %p428 = pneg %p112
        $region14: #{block_forward.1} parent=11 // pred_check_branch
          %430 = sbr.rel (%p428) target = $region16
        $region15: #{block_forward.1} parent=11 // pred_region
          _
        $region16: #{block_forward.1} parent=11 // pred_fallthru
          _
        // Predicated region
        $region17: #{block_forward.1} parent=11 // pred_check
          %p431 = pneg %p133
        $region18: #{block_forward.1} parent=11 // pred_check_branch
          %433 = sbr.rel (%p431) target = $region20
        $region19: #{block_forward.1} parent=11 // pred_region
          _
        $region20: #{block_forward.1} parent=11 // pred_fallthru
          _
        // Predicated region
        $region21: #{block_forward.1} parent=11 // pred_check
          %p434 = pneg %p154
        $region22: #{block_forward.1} parent=11 // pred_check_branch
          %436 = sbr.rel (%p434) target = $region24
        $region23: #{block_forward.1} parent=11 // pred_region
          _
        $region24: #{block_forward.1} parent=11 // pred_fallthru
          _
        // Predicated region
        $region25: #{block_forward.1} parent=11 // pred_check
          %p437 = pneg %p175
        $region26: #{block_forward.1} parent=11 // pred_check_branch
          %439 = sbr.rel (%p437) target = $region28
        $region27: #{block_forward.1} parent=11 // pred_region
          _
        $region28: #{block_forward.1} parent=11 // pred_fallthru
          _
        // Predicated region
        $region29: #{block_forward.1} parent=11 // pred_check
          %p440 = pneg %p196
        $region30: #{block_forward.1} parent=11 // pred_check_branch
          %442 = sbr.rel (%p440) target = $region32
        $region31: #{block_forward.1} parent=11 // pred_region
          _
        $region32: #{block_forward.1} parent=11 // pred_fallthru
          _
        // Predicated region
        $region33: #{block_forward.1} parent=11 // pred_check
          %p443 = pneg %p217
        $region34: #{block_forward.1} parent=11 // pred_check_branch
          %445 = sbr.rel (%p443) target = $region36
        $region35: #{block_forward.1} parent=11 // pred_region
          _
        $region36: #{block_forward.1} parent=11 // pred_fallthru
          _
        // Predicated region
        $region37: #{block_forward.1} parent=11 // pred_check
          %p446 = pneg %p238
        $region38: #{block_forward.1} parent=11 // pred_check_branch
          %448 = sbr.rel (%p446) target = $region40
        $region39: #{block_forward.1} parent=11 // pred_region
          _
        $region40: #{block_forward.1} parent=11 // pred_fallthru
          _
        // Predicated region
        $region41: #{block_forward.1} parent=11 // pred_check
          %p449 = pneg %p259
        $region42: #{block_forward.1} parent=11 // pred_check_branch
          %451 = sbr.rel (%p449) target = $region44
        $region43: #{block_forward.1} parent=11 // pred_region
          _
        $region44: #{block_forward.1} parent=11 // pred_fallthru
          _
        // Predicated region
        $region45: #{block_forward.1} parent=11 // pred_check
          %p452 = pneg %p280
        $region46: #{block_forward.1} parent=11 // pred_check_branch
          %454 = sbr.rel (%p452) target = $region48
        $region47: #{block_forward.1} parent=11 // pred_region
          _
        $region48: #{block_forward.1} parent=11 // pred_fallthru
          _
        // Predicated region
        $region49: #{block_forward.1} parent=11 // pred_check
          %p455 = pneg %p301
        $region50: #{block_forward.1} parent=11 // pred_check_branch
          %457 = sbr.rel (%p455) target = $region52
        $region51: #{block_forward.1} parent=11 // pred_region
          _
        $region52: #{block_forward.1} parent=11 // pred_fallthru
          _
        // Predicated region
        $region53: #{block_forward.1} parent=11 // pred_check
          %p458 = pneg %p322
        $region54: #{block_forward.1} parent=11 // pred_check_branch
          %460 = sbr.rel (%p458) target = $region56
        $region55: #{block_forward.1} parent=11 // pred_region
          _
        $region56: #{block_forward.1} parent=11 // pred_fallthru
          _
        // Predicated region
        $region57: #{block_forward.1} parent=11 // pred_check
          %p461 = pneg %p343
        $region58: #{block_forward.1} parent=11 // pred_check_branch
          %463 = sbr.rel (%p461) target = $region60
        $region59: #{block_forward.1} parent=11 // pred_region
          _
        $region60: #{block_forward.1} parent=11 // pred_fallthru
          _
        // Predicated region
        $region61: #{block_forward.1} parent=11 // pred_check
          %p464 = pneg %p364
        $region62: #{block_forward.1} parent=11 // pred_check_branch
          %466 = sbr.rel (%p464) target = $region64
        $region63: #{block_forward.1} parent=11 // pred_region
          _
        $region64: #{block_forward.1} parent=11 // pred_fallthru
          _
        // Predicated region
        $region65: #{block_forward.1} parent=11 // pred_check
          %p467 = pneg %p385
        $region66: #{block_forward.1} parent=11 // pred_check_branch
          %469 = sbr.rel (%p467) target = $region68
        $region67: #{block_forward.1} parent=11 // pred_region
          _
        $region68: #{block_forward.1} parent=11 // pred_fallthru
          _
      $region12: #{block_forward.1} parent=5 // pred_fallthru
        _
      %p470 = scmp.lt.s32.totalorder %s25, 4
      // Predicated region
      $region69: #{block_forward.1} parent=5 // pred_check
        %p471 = pneg %p470
      $region70: #{block_forward.1} parent=5 // pred_check_branch
        %473 = sbr.rel (%p471) target = $region72
      $region71: #{block_forward.1} parent=5 // pred_region
        // Predicated region
        $region73: #{block_forward.1} parent=71 // pred_check
          %p474 = pneg %p59
        $region74: #{block_forward.1} parent=71 // pred_check_branch
          %476 = sbr.rel (%p474) target = $region76
        $region75: #{block_forward.1} parent=71 // pred_region
          %p477 = scmp.lt.s32.totalorder %s32, 1
          %s478 = scalar_select %p477, %s32, 1
          %p479 = scmp.lt.s32.totalorder %s33, 1
          %s480 = scalar_select %p479, %s33, 1
          %s481 = smul.addr %s478, 2
          %s482 = sadd.s32 %s480, %s481
          %s483 = smul.addr %s482, 8
          %s484 = scalar_lea.vmem %s0, %s483
        $region76: #{block_forward.1} parent=71 // pred_fallthru
          _
        // Predicated region
        $region77: #{block_forward.1} parent=71 // pred_check
          %p485 = pneg %p85
        $region78: #{block_forward.1} parent=71 // pred_check_branch
          %487 = sbr.rel (%p485) target = $region80
        $region79: #{block_forward.1} parent=71 // pred_region
          %p488 = scmp.lt.s32.totalorder %s32, 1
          %s489 = scalar_select %p488, %s32, 1
          %s490 = smul.addr %s489, 2
          %s491 = smul.addr %s490, 8
          %s492 = scalar_lea.vmem %s1, %s491
        $region80: #{block_forward.1} parent=71 // pred_fallthru
          _
      $region72: #{block_forward.1} parent=5 // pred_fallthru
        _
      %p493 = scmp.le.s32.totalorder 1, %s25
      %p494 = scmp.lt.s32.totalorder %s25, 5
      %p495 = pnand %p493, %p494
      %p496 = pneg %p495
      // Predicated region
      $region81: #{block_forward.1} parent=5 // pred_check
        _
      $region82: #{block_forward.1} parent=5 // pred_check_branch
        %498 = sbr.rel (%p495) target = $region84
      $region83: #{block_forward.1} parent=5 // pred_region
        %s499 = ssub.s32 %s25, 1
        %p500 = scmp.lt.s32.totalorder %s34, 1
        %s501 = scalar_select %p500, %s34, 1
        %p502 = scmp.lt.s32.totalorder %s35, 1
        %s503 = scalar_select %p502, %s35, 1
        %s504 = smul.addr %s501, 2
        %s505 = sadd.s32 %s503, %s504
        %s506 = smul.addr %s505, 8
        %s507 = scalar_lea.vmem %s0, %s506
        %p508 = pneg %p65
        %p509 = pneg %p62
        %p510 = scmp.lt.s32.totalorder %s34, 1
        %s511 = scalar_select %p510, %s34, 1
        %s512 = smul.addr %s511, 2
        %s513 = smul.addr %s512, 8
        %s514 = scalar_lea.vmem %s1, %s513
        %p515 = pneg %p91
        %p516 = pneg %p88
        %p517 = pneg %p112
        %p518 = pneg %p109
        %p519 = pneg %p133
        %p520 = pneg %p130
        %p521 = pneg %p154
        %p522 = pneg %p151
        %p523 = pneg %p175
        %p524 = pneg %p172
        %p525 = pneg %p196
        %p526 = pneg %p193
        %p527 = pneg %p217
        %p528 = pneg %p214
        %p529 = pneg %p238
        %p530 = pneg %p235
        %p531 = pneg %p259
        %p532 = pneg %p256
        %p533 = pneg %p280
        %p534 = pneg %p277
        %p535 = pneg %p301
        %p536 = pneg %p298
        %p537 = pneg %p322
        %p538 = pneg %p319
        %p539 = pneg %p343
        %p540 = pneg %p340
        %p541 = pneg %p364
        %p542 = pneg %p361
        %p543 = pneg %p385
        %p544 = pneg %p382
        %p545 = pneg %p413
        %p546 = pneg %p410
        %s547 = sand.u32 %s400, 1
        %s548 = scalar_lea.sflag [#allocation3], %s547
        %s549 = sand.u32 %s400, 1
        %s550 = smul.addr %s549, 8
        %s551 = scalar_lea.vmem [#allocation2], %s550
        %p552 = scmp.lt.s32.totalorder %s34, 1
        %s553 = scalar_select %p552, %s34, 1
        %p554 = scmp.lt.s32.totalorder %s35, 1
        %s555 = scalar_select %p554, %s35, 1
        %s556 = smul.addr %s553, 2
        %s557 = sadd.s32 %s555, %s556
        %s558 = smul.addr %s557, 8
        %s559 = scalar_lea.vmem %s0, %s558
        %p560 = scmp.lt.s32.totalorder %s34, 1
        %s561 = scalar_select %p560, %s34, 1
        %s562 = smul.addr %s561, 2
        %s563 = smul.addr %s562, 8
        %s564 = scalar_lea.vmem %s1, %s563
        %v566 = vld [vmem:[%s559] sm:$0xff]
        %v567 = vld [vmem:[%s564] sm:$0xff]
        %v568 = vld [vmem:[%s564 + $0x8] sm:$0xff]
        %v569 = vld [vmem:[%s2] sm:$0x1]
        %v570 = vld [vmem:[%s3] sm:$0x1]
        %vm571 = vcmask 261120
        %v572 = vsel %vm571, %v567, 0.0
        %573 = vadd.xlane.f32.xlu0 %v572
        %v574 = vpop.xlane.xlu0 %573
        %v575 = vsel %vm571, %v568, 0.0
        %576 = vadd.xlane.f32.xlu0 %v575
        %v577 = vpop.xlane.xlu0 %576
        %v578 = vrcp.pop 32.0
        %v579 = vmul.f32 %v574, %v578
        %v580 = vmul.f32 %v577, %v578
        %v581 = vsub.f32 %v567, %v579
        %v582 = vsub.f32 %v568, %v580
        %v583 = vmul.f32 %v581, %v581
        %v584 = vmul.f32 %v582, %v582
        %v585 = vsel %vm571, %v583, 0.0
        %586 = vadd.xlane.f32.xlu0 %v585
        %v587 = vpop.xlane.xlu0 %586
        %v588 = vsel %vm571, %v584, 0.0
        %589 = vadd.xlane.f32.xlu0 %v588
        %v590 = vpop.xlane.xlu0 %589
        %v591 = vmul.f32 %v587, %v578
        %v592 = vmul.f32 %v590, %v578
        %v593 = vadd.f32 %v591, 1e-05
        %v594 = vadd.f32 %v592, 1e-05
        %v595 = vrsqrt.pop %v593
        %v596 = vrsqrt.pop %v594
        %v597 = vmul.f32 %v581, %v595
        %v598 = vmul.f32 %v582, %v596
        %v600 = vlaneseq
        %v601 = vshrl.u32 %v600, 7
        %v602 = vsub.s32 0, %v601
        %v603 = vrot.slane %v569, %v602
        %v605 = vmul.f32 %v597, %v603
        %v606 = vmul.f32 %v598, %v603
        %v608 = vlaneseq
        %v609 = vshrl.u32 %v608, 7
        %v610 = vsub.s32 0, %v609
        %v611 = vrot.slane %v570, %v610
        %v613 = vadd.f32 %v605, %v611
        %v614 = vadd.f32 %v606, %v611
        %v615 = vpack.c.bf16 %v614, %v613
        %v616 = vld [vmem:[%s6] sm:$0xf]
        %v617 = vld [vmem:[%s6 + $0x4] sm:$0xf]
        %v618 = vld [vmem:[%s6 + $0x8] sm:$0xf]
        %v619 = vld [vmem:[%s6 + $0xc] sm:$0xf]
        %v620 = vld [vmem:[%s7] sm:$0x1]
        %v622 = vlaneseq
        %v623 = vshrl.u32 %v622, 7
        %v624 = vsub.s32 0, %v623
        %v625 = vrot.slane %v620, %v624
        %v631 = vunpack.c.l.b16 %v616
        %v632 = vunpack.c.l.b16 %v617
        %v633 = vunpack.c.l.b16 %v618
        %v634 = vunpack.c.l.b16 %v619
        %v635 = vpack.c.b16 %v632, %v631
        %v636 = vpack.c.b16 %v634, %v633
        %v640 = vsel %vm571, %v615, 0
        %642 = vmatprep.subr.bf16.mxu0 0
        %643 = vmatpush1.bf16.msra.mxu0 0
        %644 = vmatprep.subr.bf16.mxu0 0
        %645 = vmatpush1.bf16.msra.mxu0 0
        %646 = vmatprep.subr.bf16.mxu0 0
        %647 = vmatpush1.bf16.msra.mxu0 0
        %648 = vmatprep.subr.bf16.mxu0 0
        %649 = vmatpush1.bf16.msra.mxu0 0
        %650 = vmatprep.subr.bf16.mxu0 0
        %651 = vmatpush1.bf16.msra.mxu0 0
        %652 = vmatprep.subr.bf16.mxu0 0
        %653 = vmatpush1.bf16.msra.mxu0 0
        %654 = vmatprep.subr.bf16.mxu0 0
        %655 = vmatpush1.bf16.msra.mxu0 %v636
        %656 = vmatprep.subr.bf16.mxu0 0
        %657 = vmatpush1.bf16.msra.mxu0 %v635
        %658 = vmatprep.subr.bf16.mxu0 0
        %659 = vmatpush2.bf16.msra.mxu0 0
        %660 = vmatprep.subr.bf16.mxu0 0
        %661 = vmatpush2.bf16.msra.mxu0 0
        %662 = vmatprep.subr.bf16.mxu0 0
        %663 = vmatpush2.bf16.msra.mxu0 0
        %664 = vmatprep.subr.bf16.mxu0 0
        %665 = vmatpush2.bf16.msra.mxu0 0
        %666 = vmatprep.subr.bf16.mxu0 0
        %667 = vmatpush2.bf16.msra.mxu0 0
        %668 = vmatprep.subr.bf16.mxu0 0
        %669 = vmatpush2.bf16.msra.mxu0 0
        %670 = vmatprep.subr.bf16.mxu0 0
        %671 = vmatpush2.bf16.msra.mxu0 0
        %672 = vmatprep.subr.bf16.mxu0 0
        %673 = vmatpush2.bf16.msra.mxu0 0
        %674 = vmatprep.mubr.bf16.mxu0 0
        %675 = vmatmul.mubr.bf16.gmra.mxu0 %v640
        %v676 = vpop.f32.mrf.mxu0
        %v677 = vadd.f32 %v625, %v676
        %v678 = vpop.f32.mrf.mxu0
        %v679 = vpop.f32.mrf.mxu0
        %v680 = vadd.f32 %v625, %v679
        %v681 = vpop.f32.mrf.mxu0
        %682 = vdwg.mxu0
        %v683 = vmax.f32 %v677, 0.0
        %v684 = vmax.f32 %v680, 0.0
        %v685 = vpack.c.bf16 %v684, %v683
        %v686 = vsel %vm571, %v566, 0.0
        %687 = vadd.xlane.f32.xlu0 %v686
        %v688 = vpop.xlane.xlu0 %687
        %v689 = vmul.f32 %v688, %v578
        %v690 = vsub.f32 %v566, %v689
        %v691 = vmul.f32 %v690, %v690
        %v692 = vsel %vm571, %v691, 0.0
        %693 = vadd.xlane.f32.xlu0 %v692
        %v694 = vpop.xlane.xlu0 %693
        %v695 = vmul.f32 %v694, %v578
        %v696 = vadd.f32 %v695, 1e-05
        %v697 = vrsqrt.pop %v696
        %v698 = vmul.f32 %v690, %v697
        %v699 = vmul.f32 %v698, %v603
        %v700 = vadd.f32 %v699, %v611
        %v701 = vpack.c.bf16 %v700, %v700
        %v702 = vld [vmem:[%s4] sm:$0xf]
        %v703 = vld [vmem:[%s4 + $0x4] sm:$0xf]
        %v704 = vld [vmem:[%s4 + $0x8] sm:$0xf]
        %v705 = vld [vmem:[%s4 + $0xc] sm:$0xf]
        %v706 = vld [vmem:[%s5] sm:$0x1]
        %v708 = vlaneseq
        %v709 = vshrl.u32 %v708, 7
        %v710 = vsub.s32 0, %v709
        %v711 = vrot.slane %v706, %v710
        %v717 = vunpack.c.l.b16 %v702
        %v718 = vunpack.c.l.b16 %v703
        %v719 = vunpack.c.l.b16 %v704
        %v720 = vunpack.c.l.b16 %v705
        %v721 = vpack.c.b16 %v718, %v717
        %v722 = vpack.c.b16 %v720, %v719
        %v726 = vsel %vm571, %v701, 0
        %728 = vmatprep.subr.bf16.mxu0 0
        %729 = vmatpush1.bf16.msra.mxu0 0
        %730 = vmatprep.subr.bf16.mxu0 0
        %731 = vmatpush1.bf16.msra.mxu0 0
        %732 = vmatprep.subr.bf16.mxu0 0
        %733 = vmatpush1.bf16.msra.mxu0 0
        %734 = vmatprep.subr.bf16.mxu0 0
        %735 = vmatpush1.bf16.msra.mxu0 0
        %736 = vmatprep.subr.bf16.mxu0 0
        %737 = vmatpush1.bf16.msra.mxu0 0
        %738 = vmatprep.subr.bf16.mxu0 0
        %739 = vmatpush1.bf16.msra.mxu0 0
        %740 = vmatprep.subr.bf16.mxu0 0
        %741 = vmatpush1.bf16.msra.mxu0 %v722
        %742 = vmatprep.subr.bf16.mxu0 0
        %743 = vmatpush1.bf16.msra.mxu0 %v721
        %744 = vmatprep.subr.bf16.mxu0 0
        %745 = vmatpush2.bf16.msra.mxu0 0
        %746 = vmatprep.subr.bf16.mxu0 0
        %747 = vmatpush2.bf16.msra.mxu0 0
        %748 = vmatprep.subr.bf16.mxu0 0
        %749 = vmatpush2.bf16.msra.mxu0 0
        %750 = vmatprep.subr.bf16.mxu0 0
        %751 = vmatpush2.bf16.msra.mxu0 0
        %752 = vmatprep.subr.bf16.mxu0 0
        %753 = vmatpush2.bf16.msra.mxu0 0
        %754 = vmatprep.subr.bf16.mxu0 0
        %755 = vmatpush2.bf16.msra.mxu0 0
        %756 = vmatprep.subr.bf16.mxu0 0
        %757 = vmatpush2.bf16.msra.mxu0 0
        %758 = vmatprep.subr.bf16.mxu0 0
        %759 = vmatpush2.bf16.msra.mxu0 0
        %760 = vmatprep.mubr.bf16.mxu0 0
        %761 = vmatmul.mubr.bf16.gmra.mxu0 %v726
        %v762 = vpop.f32.mrf.mxu0
        %v763 = vadd.f32 %v711, %v762
        %v764 = vpop.f32.mrf.mxu0
        %v765 = vpop.f32.mrf.mxu0
        %v766 = vpop.f32.mrf.mxu0
        %767 = vdwg.mxu0
        %v768 = vmax.f32 %v763, 0.0
        %v769 = vmul.f32 %v768, 0.35355338
        %v770 = vpack.c.bf16 %v769, %v769
        %772 = vrot.lane.b32.xlu0 %v770, 120
        %v773 = vpop.permute.xlu0 %772
        %774 = vrot.lane.b32.xlu0 %v770, 112
        %v775 = vpop.permute.xlu0 %774
        %776 = vrot.lane.b32.xlu0 %v770, 104
        %v777 = vpop.permute.xlu0 %776
        %779 = vrot.lane.b32.xlu0 %v685, 120
        %v780 = vpop.permute.xlu0 %779
        %781 = vrot.lane.b32.xlu0 %v685, 112
        %v782 = vpop.permute.xlu0 %781
        %783 = vrot.lane.b32.xlu0 %v685, 104
        %v784 = vpop.permute.xlu0 %783
        %vm785 = vcmask 64512
        %v787 = vsel %vm785, %v770, 0
        %v790 = vsel %vm785, %v685, 0
        %792 = vmatprep.subr.bf16.mxu0 0
        %793 = vmatpush1.bf16.xpose.msra.mxu0 0
        %794 = vmatprep.subr.bf16.mxu0 0
        %795 = vmatpush1.bf16.xpose.msra.mxu0 0
        %796 = vmatprep.subr.bf16.mxu0 0
        %797 = vmatpush1.bf16.xpose.msra.mxu0 0
        %798 = vmatprep.subr.bf16.mxu0 0
        %799 = vmatpush1.bf16.xpose.msra.mxu0 0
        %800 = vmatprep.subr.bf16.mxu0 0
        %801 = vmatpush1.bf16.xpose.msra.mxu0 0
        %802 = vmatprep.subr.bf16.mxu0 0
        %803 = vmatpush1.bf16.xpose.msra.mxu0 0
        %804 = vmatprep.subr.bf16.mxu0 0
        %805 = vmatpush1.bf16.xpose.msra.mxu0 0
        %806 = vmatprep.subr.bf16.mxu0 0
        %807 = vmatpush1.bf16.xpose.msra.mxu0 %v790
        %808 = vmatprep.subr.bf16.mxu0 0
        %809 = vmatpush2.bf16.xpose.msra.mxu0 0
        %810 = vmatprep.subr.bf16.mxu0 0
        %811 = vmatpush2.bf16.xpose.msra.mxu0 0
        %812 = vmatprep.subr.bf16.mxu0 0
        %813 = vmatpush2.bf16.xpose.msra.mxu0 0
        %814 = vmatprep.subr.bf16.mxu0 0
        %815 = vmatpush2.bf16.xpose.msra.mxu0 0
        %816 = vmatprep.subr.bf16.mxu0 0
        %817 = vmatpush2.bf16.xpose.msra.mxu0 0
        %818 = vmatprep.subr.bf16.mxu0 0
        %819 = vmatpush2.bf16.xpose.msra.mxu0 0
        %820 = vmatprep.subr.bf16.mxu0 0
        %821 = vmatpush2.bf16.xpose.msra.mxu0 0
        %822 = vmatprep.subr.bf16.mxu0 0
        %823 = vmatpush2.bf16.xpose.msra.mxu0 0
        %824 = vmatprep.mubr.bf16.mxu0 0
        %825 = vmatmul.mubr.bf16.gmra.mxu0 %v787
        %v826 = vpop.f32.mrf.mxu0
        %v827 = vadd.f32 0.0, %v826
        %v828 = vpop.f32.mrf.mxu0
        %v829 = vpop.f32.mrf.mxu0
        %v830 = vpop.f32.mrf.mxu0
        %831 = vdwg.mxu0
        %v833 = vsel %vm785, %v773, 0
        %v836 = vsel %vm785, %v780, 0
        %838 = vmatprep.subr.bf16.mxu0 0
        %839 = vmatpush1.bf16.xpose.msra.mxu0 0
        %840 = vmatprep.subr.bf16.mxu0 0
        %841 = vmatpush1.bf16.xpose.msra.mxu0 0
        %842 = vmatprep.subr.bf16.mxu0 0
        %843 = vmatpush1.bf16.xpose.msra.mxu0 0
        %844 = vmatprep.subr.bf16.mxu0 0
        %845 = vmatpush1.bf16.xpose.msra.mxu0 0
        %846 = vmatprep.subr.bf16.mxu0 0
        %847 = vmatpush1.bf16.xpose.msra.mxu0 0
        %848 = vmatprep.subr.bf16.mxu0 0
        %849 = vmatpush1.bf16.xpose.msra.mxu0 0
        %850 = vmatprep.subr.bf16.mxu0 0
        %851 = vmatpush1.bf16.xpose.msra.mxu0 0
        %852 = vmatprep.subr.bf16.mxu0 0
        %853 = vmatpush1.bf16.xpose.msra.mxu0 %v836
        %854 = vmatprep.subr.bf16.mxu0 0
        %855 = vmatpush2.bf16.xpose.msra.mxu0 0
        %856 = vmatprep.subr.bf16.mxu0 0
        %857 = vmatpush2.bf16.xpose.msra.mxu0 0
        %858 = vmatprep.subr.bf16.mxu0 0
        %859 = vmatpush2.bf16.xpose.msra.mxu0 0
        %860 = vmatprep.subr.bf16.mxu0 0
        %861 = vmatpush2.bf16.xpose.msra.mxu0 0
        %862 = vmatprep.subr.bf16.mxu0 0
        %863 = vmatpush2.bf16.xpose.msra.mxu0 0
        %864 = vmatprep.subr.bf16.mxu0 0
        %865 = vmatpush2.bf16.xpose.msra.mxu0 0
        %866 = vmatprep.subr.bf16.mxu0 0
        %867 = vmatpush2.bf16.xpose.msra.mxu0 0
        %868 = vmatprep.subr.bf16.mxu0 0
        %869 = vmatpush2.bf16.xpose.msra.mxu0 0
        %870 = vmatprep.mubr.bf16.mxu0 0
        %871 = vmatmul.mubr.bf16.gmra.mxu0 %v833
        %v872 = vpop.f32.mrf.mxu0
        %v873 = vadd.f32 0.0, %v872
        %v874 = vpop.f32.mrf.mxu0
        %v875 = vpop.f32.mrf.mxu0
        %v876 = vpop.f32.mrf.mxu0
        %877 = vdwg.mxu0
        %v879 = vsel %vm785, %v775, 0
        %v882 = vsel %vm785, %v782, 0
        %884 = vmatprep.subr.bf16.mxu0 0
        %885 = vmatpush1.bf16.xpose.msra.mxu0 0
        %886 = vmatprep.subr.bf16.mxu0 0
        %887 = vmatpush1.bf16.xpose.msra.mxu0 0
        %888 = vmatprep.subr.bf16.mxu0 0
        %889 = vmatpush1.bf16.xpose.msra.mxu0 0
        %890 = vmatprep.subr.bf16.mxu0 0
        %891 = vmatpush1.bf16.xpose.msra.mxu0 0
        %892 = vmatprep.subr.bf16.mxu0 0
        %893 = vmatpush1.bf16.xpose.msra.mxu0 0
        %894 = vmatprep.subr.bf16.mxu0 0
        %895 = vmatpush1.bf16.xpose.msra.mxu0 0
        %896 = vmatprep.subr.bf16.mxu0 0
        %897 = vmatpush1.bf16.xpose.msra.mxu0 0
        %898 = vmatprep.subr.bf16.mxu0 0
        %899 = vmatpush1.bf16.xpose.msra.mxu0 %v882
        %900 = vmatprep.subr.bf16.mxu0 0
        %901 = vmatpush2.bf16.xpose.msra.mxu0 0
        %902 = vmatprep.subr.bf16.mxu0 0
        %903 = vmatpush2.bf16.xpose.msra.mxu0 0
        %904 = vmatprep.subr.bf16.mxu0 0
        %905 = vmatpush2.bf16.xpose.msra.mxu0 0
        %906 = vmatprep.subr.bf16.mxu0 0
        %907 = vmatpush2.bf16.xpose.msra.mxu0 0
        %908 = vmatprep.subr.bf16.mxu0 0
        %909 = vmatpush2.bf16.xpose.msra.mxu0 0
        %910 = vmatprep.subr.bf16.mxu0 0
        %911 = vmatpush2.bf16.xpose.msra.mxu0 0
        %912 = vmatprep.subr.bf16.mxu0 0
        %913 = vmatpush2.bf16.xpose.msra.mxu0 0
        %914 = vmatprep.subr.bf16.mxu0 0
        %915 = vmatpush2.bf16.xpose.msra.mxu0 0
        %916 = vmatprep.mubr.bf16.mxu0 0
        %917 = vmatmul.mubr.bf16.gmra.mxu0 %v879
        %v918 = vpop.f32.mrf.mxu0
        %v919 = vadd.f32 0.0, %v918
        %v920 = vpop.f32.mrf.mxu0
        %v921 = vpop.f32.mrf.mxu0
        %v922 = vpop.f32.mrf.mxu0
        %923 = vdwg.mxu0
        %v925 = vsel %vm785, %v777, 0
        %v928 = vsel %vm785, %v784, 0
        %930 = vmatprep.subr.bf16.mxu0 0
        %931 = vmatpush1.bf16.xpose.msra.mxu0 0
        %932 = vmatprep.subr.bf16.mxu0 0
        %933 = vmatpush1.bf16.xpose.msra.mxu0 0
        %934 = vmatprep.subr.bf16.mxu0 0
        %935 = vmatpush1.bf16.xpose.msra.mxu0 0
        %936 = vmatprep.subr.bf16.mxu0 0
        %937 = vmatpush1.bf16.xpose.msra.mxu0 0
        %938 = vmatprep.subr.bf16.mxu0 0
        %939 = vmatpush1.bf16.xpose.msra.mxu0 0
        %940 = vmatprep.subr.bf16.mxu0 0
        %941 = vmatpush1.bf16.xpose.msra.mxu0 0
        %942 = vmatprep.subr.bf16.mxu0 0
        %943 = vmatpush1.bf16.xpose.msra.mxu0 0
        %944 = vmatprep.subr.bf16.mxu0 0
        %945 = vmatpush1.bf16.xpose.msra.mxu0 %v928
        %946 = vmatprep.subr.bf16.mxu0 0
        %947 = vmatpush2.bf16.xpose.msra.mxu0 0
        %948 = vmatprep.subr.bf16.mxu0 0
        %949 = vmatpush2.bf16.xpose.msra.mxu0 0
        %950 = vmatprep.subr.bf16.mxu0 0
        %951 = vmatpush2.bf16.xpose.msra.mxu0 0
        %952 = vmatprep.subr.bf16.mxu0 0
        %953 = vmatpush2.bf16.xpose.msra.mxu0 0
        %954 = vmatprep.subr.bf16.mxu0 0
        %955 = vmatpush2.bf16.xpose.msra.mxu0 0
        %956 = vmatprep.subr.bf16.mxu0 0
        %957 = vmatpush2.bf16.xpose.msra.mxu0 0
        %958 = vmatprep.subr.bf16.mxu0 0
        %959 = vmatpush2.bf16.xpose.msra.mxu0 0
        %960 = vmatprep.subr.bf16.mxu0 0
        %961 = vmatpush2.bf16.xpose.msra.mxu0 0
        %962 = vmatprep.mubr.bf16.mxu0 0
        %963 = vmatmul.mubr.bf16.gmra.mxu0 %v925
        %v964 = vpop.f32.mrf.mxu0
        %v965 = vadd.f32 0.0, %v964
        %v966 = vpop.f32.mrf.mxu0
        %v967 = vpop.f32.mrf.mxu0
        %v968 = vpop.f32.mrf.mxu0
        %969 = vdwg.mxu0
        %s970 = smul.u32 %s35, 8
        %v971 = vlaneseq
        %v972 = vshrl.u32 %v971, 7
        %v973 = vstv %s970
        %v974 = vadd.s32 %v973, %v972
        %v975 = vlaneseq
        %v976 = vand.u32 %v975, 127
        %vm977 = vcmp.le.s32.totalorder %v976, %v974
        %v978 = vsel %vm977, 1, 0
        %v979 = vcvt.s32.f32 %v978
        %v980 = vmax.f32 %v827, 0.0
        %v981 = vmax.f32 %v873, 0.0
        %v982 = vmax.f32 %v919, 0.0
        %v983 = vmax.f32 %v965, 0.0
        %v984 = vmul.f32 %v980, %v979
        %v985 = vmul.f32 %v981, %v979
        %v986 = vmul.f32 %v982, %v979
        %v987 = vmul.f32 %v983, %v979
        %v988 = vpack.c.bf16 %v984, %v984
        %v989 = vpack.c.bf16 %v985, %v985
        %v990 = vpack.c.bf16 %v986, %v986
        %v991 = vpack.c.bf16 %v987, %v987
        %992 = vrot.lane.b32.xlu0 %v685, 96
        %v993 = vpop.permute.xlu0 %992
        %vm995 = vcmask 130048
        %v997 = vsel %vm995, %v988, 0
        %999 = vmatprep.subr.bf16.mxu0 0
        %1000 = vmatpush1.bf16.msra.mxu0 0
        %1001 = vmatprep.subr.bf16.mxu0 0
        %1002 = vmatpush1.bf16.msra.mxu0 0
        %1003 = vmatprep.subr.bf16.mxu0 0
        %1004 = vmatpush1.bf16.msra.mxu0 0
        %1005 = vmatprep.subr.bf16.mxu0 0
        %1006 = vmatpush1.bf16.msra.mxu0 0
        %1007 = vmatprep.subr.bf16.mxu0 0
        %1008 = vmatpush1.bf16.msra.mxu0 0
        %1009 = vmatprep.subr.bf16.mxu0 0
        %1010 = vmatpush1.bf16.msra.mxu0 0
        %1011 = vmatprep.subr.bf16.mxu0 0
        %1012 = vmatpush1.bf16.msra.mxu0 0
        %1013 = vmatprep.subr.bf16.mxu0 0
        %1014 = vmatpush1.bf16.msra.mxu0 %v993
        %1015 = vmatprep.subr.bf16.mxu0 0
        %1016 = vmatpush2.bf16.msra.mxu0 0
        %1017 = vmatprep.subr.bf16.mxu0 0
        %1018 = vmatpush2.bf16.msra.mxu0 0
        %1019 = vmatprep.subr.bf16.mxu0 0
        %1020 = vmatpush2.bf16.msra.mxu0 0
        %1021 = vmatprep.subr.bf16.mxu0 0
        %1022 = vmatpush2.bf16.msra.mxu0 0
        %1023 = vmatprep.subr.bf16.mxu0 0
        %1024 = vmatpush2.bf16.msra.mxu0 0
        %1025 = vmatprep.subr.bf16.mxu0 0
        %1026 = vmatpush2.bf16.msra.mxu0 0
        %1027 = vmatprep.subr.bf16.mxu0 0
        %1028 = vmatpush2.bf16.msra.mxu0 0
        %1029 = vmatprep.subr.bf16.mxu0 0
        %1030 = vmatpush2.bf16.msra.mxu0 0
        %1031 = vmatprep.mubr.bf16.mxu0 0
        %1032 = vmatmul.mubr.bf16.gmra.mxu0 %v997
        %v1033 = vpop.f32.mrf.mxu0
        %v1034 = vadd.f32 0.0, %v1033
        %v1035 = vpop.f32.mrf.mxu0
        %v1036 = vpop.f32.mrf.mxu0
        %v1037 = vpop.f32.mrf.mxu0
        %1038 = vdwg.mxu0
        %1039 = vrot.lane.b32.xlu0 %v780, 96
        %v1040 = vpop.permute.xlu0 %1039
        %v1043 = vsel %vm995, %v989, 0
        %1045 = vmatprep.subr.bf16.mxu0 0
        %1046 = vmatpush1.bf16.msra.mxu0 0
        %1047 = vmatprep.subr.bf16.mxu0 0
        %1048 = vmatpush1.bf16.msra.mxu0 0
        %1049 = vmatprep.subr.bf16.mxu0 0
        %1050 = vmatpush1.bf16.msra.mxu0 0
        %1051 = vmatprep.subr.bf16.mxu0 0
        %1052 = vmatpush1.bf16.msra.mxu0 0
        %1053 = vmatprep.subr.bf16.mxu0 0
        %1054 = vmatpush1.bf16.msra.mxu0 0
        %1055 = vmatprep.subr.bf16.mxu0 0
        %1056 = vmatpush1.bf16.msra.mxu0 0
        %1057 = vmatprep.subr.bf16.mxu0 0
        %1058 = vmatpush1.bf16.msra.mxu0 0
        %1059 = vmatprep.subr.bf16.mxu0 0
        %1060 = vmatpush1.bf16.msra.mxu0 %v1040
        %1061 = vmatprep.subr.bf16.mxu0 0
        %1062 = vmatpush2.bf16.msra.mxu0 0
        %1063 = vmatprep.subr.bf16.mxu0 0
        %1064 = vmatpush2.bf16.msra.mxu0 0
        %1065 = vmatprep.subr.bf16.mxu0 0
        %1066 = vmatpush2.bf16.msra.mxu0 0
        %1067 = vmatprep.subr.bf16.mxu0 0
        %1068 = vmatpush2.bf16.msra.mxu0 0
        %1069 = vmatprep.subr.bf16.mxu0 0
        %1070 = vmatpush2.bf16.msra.mxu0 0
        %1071 = vmatprep.subr.bf16.mxu0 0
        %1072 = vmatpush2.bf16.msra.mxu0 0
        %1073 = vmatprep.subr.bf16.mxu0 0
        %1074 = vmatpush2.bf16.msra.mxu0 0
        %1075 = vmatprep.subr.bf16.mxu0 0
        %1076 = vmatpush2.bf16.msra.mxu0 0
        %1077 = vmatprep.mubr.bf16.mxu0 0
        %1078 = vmatmul.mubr.bf16.gmra.mxu0 %v1043
        %v1079 = vpop.f32.mrf.mxu0
        %v1080 = vadd.f32 0.0, %v1079
        %v1081 = vpop.f32.mrf.mxu0
        %v1082 = vpop.f32.mrf.mxu0
        %v1083 = vpop.f32.mrf.mxu0
        %1084 = vdwg.mxu0
        %1085 = vrot.lane.b32.xlu0 %v782, 96
        %v1086 = vpop.permute.xlu0 %1085
        %v1089 = vsel %vm995, %v990, 0
        %1091 = vmatprep.subr.bf16.mxu0 0
        %1092 = vmatpush1.bf16.msra.mxu0 0
        %1093 = vmatprep.subr.bf16.mxu0 0
        %1094 = vmatpush1.bf16.msra.mxu0 0
        %1095 = vmatprep.subr.bf16.mxu0 0
        %1096 = vmatpush1.bf16.msra.mxu0 0
        %1097 = vmatprep.subr.bf16.mxu0 0
        %1098 = vmatpush1.bf16.msra.mxu0 0
        %1099 = vmatprep.subr.bf16.mxu0 0
        %1100 = vmatpush1.bf16.msra.mxu0 0
        %1101 = vmatprep.subr.bf16.mxu0 0
        %1102 = vmatpush1.bf16.msra.mxu0 0
        %1103 = vmatprep.subr.bf16.mxu0 0
        %1104 = vmatpush1.bf16.msra.mxu0 0
        %1105 = vmatprep.subr.bf16.mxu0 0
        %1106 = vmatpush1.bf16.msra.mxu0 %v1086
        %1107 = vmatprep.subr.bf16.mxu0 0
        %1108 = vmatpush2.bf16.msra.mxu0 0
        %1109 = vmatprep.subr.bf16.mxu0 0
        %1110 = vmatpush2.bf16.msra.mxu0 0
        %1111 = vmatprep.subr.bf16.mxu0 0
        %1112 = vmatpush2.bf16.msra.mxu0 0
        %1113 = vmatprep.subr.bf16.mxu0 0
        %1114 = vmatpush2.bf16.msra.mxu0 0
        %1115 = vmatprep.subr.bf16.mxu0 0
        %1116 = vmatpush2.bf16.msra.mxu0 0
        %1117 = vmatprep.subr.bf16.mxu0 0
        %1118 = vmatpush2.bf16.msra.mxu0 0
        %1119 = vmatprep.subr.bf16.mxu0 0
        %1120 = vmatpush2.bf16.msra.mxu0 0
        %1121 = vmatprep.subr.bf16.mxu0 0
        %1122 = vmatpush2.bf16.msra.mxu0 0
        %1123 = vmatprep.mubr.bf16.mxu0 0
        %1124 = vmatmul.mubr.bf16.gmra.mxu0 %v1089
        %v1125 = vpop.f32.mrf.mxu0
        %v1126 = vadd.f32 0.0, %v1125
        %v1127 = vpop.f32.mrf.mxu0
        %v1128 = vpop.f32.mrf.mxu0
        %v1129 = vpop.f32.mrf.mxu0
        %1130 = vdwg.mxu0
        %1131 = vrot.lane.b32.xlu0 %v784, 96
        %v1132 = vpop.permute.xlu0 %1131
        %v1135 = vsel %vm995, %v991, 0
        %1137 = vmatprep.subr.bf16.mxu0 0
        %1138 = vmatpush1.bf16.msra.mxu0 0
        %1139 = vmatprep.subr.bf16.mxu0 0
        %1140 = vmatpush1.bf16.msra.mxu0 0
        %1141 = vmatprep.subr.bf16.mxu0 0
        %1142 = vmatpush1.bf16.msra.mxu0 0
        %1143 = vmatprep.subr.bf16.mxu0 0
        %1144 = vmatpush1.bf16.msra.mxu0 0
        %1145 = vmatprep.subr.bf16.mxu0 0
        %1146 = vmatpush1.bf16.msra.mxu0 0
        %1147 = vmatprep.subr.bf16.mxu0 0
        %1148 = vmatpush1.bf16.msra.mxu0 0
        %1149 = vmatprep.subr.bf16.mxu0 0
        %1150 = vmatpush1.bf16.msra.mxu0 0
        %1151 = vmatprep.subr.bf16.mxu0 0
        %1152 = vmatpush1.bf16.msra.mxu0 %v1132
        %1153 = vmatprep.subr.bf16.mxu0 0
        %1154 = vmatpush2.bf16.msra.mxu0 0
        %1155 = vmatprep.subr.bf16.mxu0 0
        %1156 = vmatpush2.bf16.msra.mxu0 0
        %1157 = vmatprep.subr.bf16.mxu0 0
        %1158 = vmatpush2.bf16.msra.mxu0 0
        %1159 = vmatprep.subr.bf16.mxu0 0
        %1160 = vmatpush2.bf16.msra.mxu0 0
        %1161 = vmatprep.subr.bf16.mxu0 0
        %1162 = vmatpush2.bf16.msra.mxu0 0
        %1163 = vmatprep.subr.bf16.mxu0 0
        %1164 = vmatpush2.bf16.msra.mxu0 0
        %1165 = vmatprep.subr.bf16.mxu0 0
        %1166 = vmatpush2.bf16.msra.mxu0 0
        %1167 = vmatprep.subr.bf16.mxu0 0
        %1168 = vmatpush2.bf16.msra.mxu0 0
        %1169 = vmatprep.mubr.bf16.mxu0 0
        %1170 = vmatmul.mubr.bf16.gmra.mxu0 %v1135
        %v1171 = vpop.f32.mrf.mxu0
        %v1172 = vadd.f32 0.0, %v1171
        %v1173 = vpop.f32.mrf.mxu0
        %v1174 = vpop.f32.mrf.mxu0
        %v1175 = vpop.f32.mrf.mxu0
        %1176 = vdwg.mxu0
        %1178 = vrot.lane.b32.xlu0 %v1080, 8
        %v1179 = vpop.permute.xlu0 %1178
        %1182 = vrot.lane.b32.xlu0 %v1126, 16
        %v1183 = vpop.permute.xlu0 %1182
        %1186 = vrot.lane.b32.xlu0 %v1172, 24
        %v1187 = vpop.permute.xlu0 %1186
        %v1189 = vsel %vm785, %v1034, %v1179
        %v1190 = vsel %vm995, %v1189, %v1183
        %vm1191 = vcmask 195584
        %v1192 = vsel %vm1191, %v1190, %v1187
        %v1193 = vpack.c.bf16 %v1192, %v1192
        %v1194 = vld [vmem:[%s8] sm:$0xf]
        %v1195 = vld [vmem:[%s8 + $0x4] sm:$0xf]
        %v1196 = vld [vmem:[%s8 + $0x8] sm:$0xf]
        %v1197 = vld [vmem:[%s8 + $0xc] sm:$0xf]
        %v1198 = vld [vmem:[%s9] sm:$0x1]
        %v1200 = vlaneseq
        %v1201 = vshrl.u32 %v1200, 7
        %v1202 = vsub.s32 0, %v1201
        %v1203 = vrot.slane %v1198, %v1202
        %v1209 = vunpack.c.l.b16 %v1194
        %v1210 = vunpack.c.l.b16 %v1195
        %v1211 = vunpack.c.l.b16 %v1196
        %v1212 = vunpack.c.l.b16 %v1197
        %v1213 = vpack.c.b16 %v1210, %v1209
        %v1214 = vpack.c.b16 %v1212, %v1211
        %v1218 = vsel %vm571, %v1193, 0
        %1220 = vmatprep.subr.bf16.mxu0 0
        %1221 = vmatpush1.bf16.msra.mxu0 0
        %1222 = vmatprep.subr.bf16.mxu0 0
        %1223 = vmatpush1.bf16.msra.mxu0 0
        %1224 = vmatprep.subr.bf16.mxu0 0
        %1225 = vmatpush1.bf16.msra.mxu0 0
        %1226 = vmatprep.subr.bf16.mxu0 0
        %1227 = vmatpush1.bf16.msra.mxu0 0
        %1228 = vmatprep.subr.bf16.mxu0 0
        %1229 = vmatpush1.bf16.msra.mxu0 0
        %1230 = vmatprep.subr.bf16.mxu0 0
        %1231 = vmatpush1.bf16.msra.mxu0 0
        %1232 = vmatprep.subr.bf16.mxu0 0
        %1233 = vmatpush1.bf16.msra.mxu0 %v1214
        %1234 = vmatprep.subr.bf16.mxu0 0
        %1235 = vmatpush1.bf16.msra.mxu0 %v1213
        %1236 = vmatprep.subr.bf16.mxu0 0
        %1237 = vmatpush2.bf16.msra.mxu0 0
        %1238 = vmatprep.subr.bf16.mxu0 0
        %1239 = vmatpush2.bf16.msra.mxu0 0
        %1240 = vmatprep.subr.bf16.mxu0 0
        %1241 = vmatpush2.bf16.msra.mxu0 0
        %1242 = vmatprep.subr.bf16.mxu0 0
        %1243 = vmatpush2.bf16.msra.mxu0 0
        %1244 = vmatprep.subr.bf16.mxu0 0
        %1245 = vmatpush2.bf16.msra.mxu0 0
        %1246 = vmatprep.subr.bf16.mxu0 0
        %1247 = vmatpush2.bf16.msra.mxu0 0
        %1248 = vmatprep.subr.bf16.mxu0 0
        %1249 = vmatpush2.bf16.msra.mxu0 0
        %1250 = vmatprep.subr.bf16.mxu0 0
        %1251 = vmatpush2.bf16.msra.mxu0 0
        %1252 = vmatprep.mubr.bf16.mxu0 0
        %1253 = vmatmul.mubr.bf16.gmra.mxu0 %v1218
        %v1254 = vpop.f32.mrf.mxu0
        %v1255 = vadd.f32 %v1203, %v1254
        %v1256 = vpop.f32.mrf.mxu0
        %v1257 = vpop.f32.mrf.mxu0
        %v1258 = vpop.f32.mrf.mxu0
        %1259 = vdwg.mxu0
        %v1260 = vadd.f32 %v566, %v1255
        %v1261 = vld [vmem:[%s10] sm:$0x1]
        %v1262 = vld [vmem:[%s11] sm:$0x1]
        %v1263 = vsel %vm571, %v1260, 0.0
        %1264 = vadd.xlane.f32.xlu0 %v1263
        %v1265 = vpop.xlane.xlu0 %1264
        %v1266 = vmul.f32 %v1265, %v578
        %v1267 = vsub.f32 %v1260, %v1266
        %v1268 = vmul.f32 %v1267, %v1267
        %v1269 = vsel %vm571, %v1268, 0.0
        %1270 = vadd.xlane.f32.xlu0 %v1269
        %v1271 = vpop.xlane.xlu0 %1270
        %v1272 = vmul.f32 %v1271, %v578
        %v1273 = vadd.f32 %v1272, 1e-05
        %v1274 = vrsqrt.pop %v1273
        %v1275 = vmul.f32 %v1267, %v1274
        %v1277 = vlaneseq
        %v1278 = vshrl.u32 %v1277, 7
        %v1279 = vsub.s32 0, %v1278
        %v1280 = vrot.slane %v1261, %v1279
        %v1282 = vmul.f32 %v1275, %v1280
        %v1284 = vlaneseq
        %v1285 = vshrl.u32 %v1284, 7
        %v1286 = vsub.s32 0, %v1285
        %v1287 = vrot.slane %v1262, %v1286
        %v1289 = vadd.f32 %v1282, %v1287
        %v1290 = vpack.c.bf16 %v1289, %v1289
        %v1291 = vld [vmem:[%s12] sm:$0xf]
        %v1292 = vld [vmem:[%s12 + $0x4] sm:$0xf]
        %v1293 = vld [vmem:[%s12 + $0x8] sm:$0xf]
        %v1294 = vld [vmem:[%s12 + $0xc] sm:$0xf]
        %v1295 = vld [vmem:[%s13] sm:$0x1]
        %v1297 = vlaneseq
        %v1298 = vshrl.u32 %v1297, 7
        %v1299 = vsub.s32 0, %v1298
        %v1300 = vrot.slane %v1295, %v1299
        %v1306 = vunpack.c.l.b16 %v1291
        %v1307 = vunpack.c.l.b16 %v1292
        %v1308 = vunpack.c.l.b16 %v1293
        %v1309 = vunpack.c.l.b16 %v1294
        %v1310 = vpack.c.b16 %v1307, %v1306
        %v1311 = vpack.c.b16 %v1309, %v1308
        %v1315 = vsel %vm571, %v1290, 0
        %1317 = vmatprep.subr.bf16.mxu0 0
        %1318 = vmatpush1.bf16.msra.mxu0 0
        %1319 = vmatprep.subr.bf16.mxu0 0
        %1320 = vmatpush1.bf16.msra.mxu0 0
        %1321 = vmatprep.subr.bf16.mxu0 0
        %1322 = vmatpush1.bf16.msra.mxu0 0
        %1323 = vmatprep.subr.bf16.mxu0 0
        %1324 = vmatpush1.bf16.msra.mxu0 0
        %1325 = vmatprep.subr.bf16.mxu0 0
        %1326 = vmatpush1.bf16.msra.mxu0 0
        %1327 = vmatprep.subr.bf16.mxu0 0
        %1328 = vmatpush1.bf16.msra.mxu0 0
        %1329 = vmatprep.subr.bf16.mxu0 0
        %1330 = vmatpush1.bf16.msra.mxu0 %v1311
        %1331 = vmatprep.subr.bf16.mxu0 0
        %1332 = vmatpush1.bf16.msra.mxu0 %v1310
        %1333 = vmatprep.subr.bf16.mxu0 0
        %1334 = vmatpush2.bf16.msra.mxu0 0
        %1335 = vmatprep.subr.bf16.mxu0 0
        %1336 = vmatpush2.bf16.msra.mxu0 0
        %1337 = vmatprep.subr.bf16.mxu0 0
        %1338 = vmatpush2.bf16.msra.mxu0 0
        %1339 = vmatprep.subr.bf16.mxu0 0
        %1340 = vmatpush2.bf16.msra.mxu0 0
        %1341 = vmatprep.subr.bf16.mxu0 0
        %1342 = vmatpush2.bf16.msra.mxu0 0
        %1343 = vmatprep.subr.bf16.mxu0 0
        %1344 = vmatpush2.bf16.msra.mxu0 0
        %1345 = vmatprep.subr.bf16.mxu0 0
        %1346 = vmatpush2.bf16.msra.mxu0 0
        %1347 = vmatprep.subr.bf16.mxu0 0
        %1348 = vmatpush2.bf16.msra.mxu0 0
        %1349 = vmatprep.mubr.bf16.mxu0 0
        %1350 = vmatmul.mubr.bf16.gmra.mxu0 %v1315
        %v1351 = vpop.f32.mrf.mxu0
        %v1352 = vadd.f32 %v1300, %v1351
        %v1353 = vpop.f32.mrf.mxu0
        %v1354 = vpop.f32.mrf.mxu0
        %v1355 = vpop.f32.mrf.mxu0
        %1356 = vdwg.mxu0
        %v1357 = vmax.f32 %v1352, 0.0
        %v1358 = vpack.c.bf16 %v1357, %v1357
        %v1359 = vld [vmem:[%s14] sm:$0xf]
        %v1360 = vld [vmem:[%s14 + $0x4] sm:$0xf]
        %v1361 = vld [vmem:[%s14 + $0x8] sm:$0xf]
        %v1362 = vld [vmem:[%s14 + $0xc] sm:$0xf]
        %v1363 = vld [vmem:[%s14 + $0x10] sm:$0xf]
        %v1364 = vld [vmem:[%s14 + $0x14] sm:$0xf]
        %v1365 = vld [vmem:[%s14 + $0x18] sm:$0xf]
        %v1366 = vld [vmem:[%s14 + $0x1c] sm:$0xf]
        %v1367 = vld [vmem:[%s15] sm:$0x1]
        %v1369 = vlaneseq
        %v1370 = vshrl.u32 %v1369, 7
        %v1371 = vsub.s32 0, %v1370
        %v1372 = vrot.slane %v1367, %v1371
        %v1382 = vunpack.c.l.b16 %v1359
        %v1383 = vunpack.c.l.b16 %v1360
        %v1384 = vunpack.c.l.b16 %v1361
        %v1385 = vunpack.c.l.b16 %v1362
        %v1386 = vunpack.c.l.b16 %v1363
        %v1387 = vunpack.c.l.b16 %v1364
        %v1388 = vunpack.c.l.b16 %v1365
        %v1389 = vunpack.c.l.b16 %v1366
        %v1390 = vpack.c.b16 %v1383, %v1382
        %v1391 = vpack.c.b16 %v1385, %v1384
        %v1392 = vpack.c.b16 %v1387, %v1386
        %v1393 = vpack.c.b16 %v1389, %v1388
        %vm1398 = vcmask 523264
        %v1400 = vsel %vm1398, %v1358, 0
        %1402 = vmatprep.subr.bf16.mxu0 0
        %1403 = vmatpush1.bf16.msra.mxu0 0
        %1404 = vmatprep.subr.bf16.mxu0 0
        %1405 = vmatpush1.bf16.msra.mxu0 0
        %1406 = vmatprep.subr.bf16.mxu0 0
        %1407 = vmatpush1.bf16.msra.mxu0 0
        %1408 = vmatprep.subr.bf16.mxu0 0
        %1409 = vmatpush1.bf16.msra.mxu0 0
        %1410 = vmatprep.subr.bf16.mxu0 0
        %1411 = vmatpush1.bf16.msra.mxu0 %v1393
        %1412 = vmatprep.subr.bf16.mxu0 0
        %1413 = vmatpush1.bf16.msra.mxu0 %v1392
        %1414 = vmatprep.subr.bf16.mxu0 0
        %1415 = vmatpush1.bf16.msra.mxu0 %v1391
        %1416 = vmatprep.subr.bf16.mxu0 0
        %1417 = vmatpush1.bf16.msra.mxu0 %v1390
        %1418 = vmatprep.subr.bf16.mxu0 0
        %1419 = vmatpush2.bf16.msra.mxu0 0
        %1420 = vmatprep.subr.bf16.mxu0 0
        %1421 = vmatpush2.bf16.msra.mxu0 0
        %1422 = vmatprep.subr.bf16.mxu0 0
        %1423 = vmatpush2.bf16.msra.mxu0 0
        %1424 = vmatprep.subr.bf16.mxu0 0
        %1425 = vmatpush2.bf16.msra.mxu0 0
        %1426 = vmatprep.subr.bf16.mxu0 0
        %1427 = vmatpush2.bf16.msra.mxu0 0
        %1428 = vmatprep.subr.bf16.mxu0 0
        %1429 = vmatpush2.bf16.msra.mxu0 0
        %1430 = vmatprep.subr.bf16.mxu0 0
        %1431 = vmatpush2.bf16.msra.mxu0 0
        %1432 = vmatprep.subr.bf16.mxu0 0
        %1433 = vmatpush2.bf16.msra.mxu0 0
        %1434 = vmatprep.mubr.bf16.mxu0 0
        %1435 = vmatmul.mubr.bf16.gmra.mxu0 %v1400
        %v1436 = vpop.f32.mrf.mxu0
        %v1437 = vadd.f32 %v1372, %v1436
        %v1438 = vpop.f32.mrf.mxu0
        %v1439 = vpop.f32.mrf.mxu0
        %v1440 = vpop.f32.mrf.mxu0
        %1441 = vdwg.mxu0
        %v1442 = vadd.f32 %v1260, %v1437
        %1443 = vst.msk [vmem:[%s551] sm:$0xff] %vm571, %v1442
        %s1444 = sand.u32 %s400, 1
        %s1445 = scalar_lea.sflag [#allocation3], %s1444
        %s1446 = sand.u32 %s400, 1
        %s1447 = smul.addr %s1446, 8
        %s1448 = scalar_lea.vmem [#allocation2], %s1447
        // Predicated region
        $region85: #{block_forward.1} parent=83 // pred_check
          %p1449 = pneg %p410
        $region86: #{block_forward.1} parent=83 // pred_check_branch
          %1451 = sbr.rel (%p1449) target = $region88
        $region87: #{block_forward.1} parent=83 // pred_region
          %s1453 = ssub.s32 128, 128
          %1454 = vsyncadd %s1445, %s1453
          %s1455 = smul.addr %s34, 2
          %s1456 = sadd.s32 %s35, %s1455
          %s1457 = smul.addr %s1456, 128
          %s1458 = scalar_lea.hbm %s16, %s1457
          %s1460 = sshll.u32 %s1448, 4
          %s1461 = int_to_ptr.vmem [resolvable:$true] %s1460
          %1463 = dma.vmem_to_hbm [thread:$0]  %s1461, 128, %s1458, %s1445
        $region88: #{block_forward.1} parent=83 // pred_fallthru
          _
      $region84: #{block_forward.1} parent=5 // pred_fallthru
        _
      %p1464 = scmp.le.s32.totalorder 2, %s25
      // Predicated region
      $region89: #{block_forward.1} parent=5 // pred_check
        %p1465 = pneg %p1464
      $region90: #{block_forward.1} parent=5 // pred_check_branch
        %1467 = sbr.rel (%p1465) target = $region92
      $region91: #{block_forward.1} parent=5 // pred_region
        %s1468 = ssub.s32 %s25, 2
        // Predicated region
        $region93: #{block_forward.1} parent=91 // pred_check
          %p1469 = pneg %p416
        $region94: #{block_forward.1} parent=91 // pred_check_branch
          %1471 = sbr.rel (%p1469) target = $region96
        $region95: #{block_forward.1} parent=91 // pred_region
          %s1472 = sand.u32 %s401, 1
          %s1473 = scalar_lea.sflag [#allocation3], %s1472
          %s1474 = sand.u32 %s401, 1
          %s1475 = smul.addr %s1474, 8
          %s1476 = scalar_lea.vmem [#allocation2], %s1475
          %1477 = dma.done %s1473, 128
        $region96: #{block_forward.1} parent=91 // pred_fallthru
          _
      $region92: #{block_forward.1} parent=5 // pred_fallthru
        _
    $region6: #{block_forward.1} parent=1 // loop_footer
      %s29 = sadd.s32 1, %s25
    $region7: #{block_forward.1} parent=1 // loop_footer_branch
      %24 = sbr.rel target = $region3
    $region8: #{block_forward.1} parent=1 // loop_exit
      _
    %1478 = vsyncpa [#allocation3], 1
    %s1479 = scalar_lea.sflag [#allocation3], 1
    %1480 = vsyncpa %s1479, 1

</llo_original>
